<compile_context>
chip_gen: v7x
topology: tpu7x:2x2x1
jax: 0.10.0
libtpu: 0.0.40
codegen_flags: <defaults>
</compile_context>

<pallas_src>
from functools import partial

import jax
import jax.numpy as jnp
from jax.experimental import pallas as pl
from jax.experimental.pallas import tpu as pltpu


# ----------------------- relative position index (buffer) -------------------- #

def make_relative_position_index(window_size):
    """Matches the PyTorch buffer construction (torch.meshgrid default 'ij')."""
    wd, wh, ww = window_size
    coords = jnp.stack(jnp.meshgrid(jnp.arange(wd), jnp.arange(wh), jnp.arange(ww),
                                    indexing="ij"))                     # (3, wd, wh, ww)
    coords = coords.reshape(3, -1)                                      # (3, N)
    rel = coords[:, :, None] - coords[:, None, :]                       # (3, N, N)
    rel = jnp.transpose(rel, (1, 2, 0))                                 # (N, N, 3)
    rel = rel.at[:, :, 0].add(wd - 1)
    rel = rel.at[:, :, 1].add(wh - 1)
    rel = rel.at[:, :, 2].add(ww - 1)
    rel = rel.at[:, :, 0].multiply((2 * wh - 1) * (2 * ww - 1))
    rel = rel.at[:, :, 1].multiply(2 * ww - 1)
    return rel.sum(-1).astype(jnp.int32)                                # (N, N)


# --------------------------- fused attention kernel -------------------------- #

def _window_attention_kernel(x_ref, wqkv_ref, bqkv_ref, rpb_ref, mask_ref,
                             wproj_ref, bproj_ref, o_ref, *, num_heads):
    # x_ref    : (WB, N, C)   block of WB windows
    # wqkv_ref : (C, 3C)      q-columns already pre-scaled by head_dim**-0.5
    # bqkv_ref : (1, 3C)
    # rpb_ref  : (H, N, N)    pre-gathered relative position bias
    # mask_ref : (WB, N, N) or (1, N, N)  additive 0/-inf window mask
    # wproj_ref: (C, C)   bproj_ref: (1, C)
    # o_ref    : (WB, N, C)
    wb, n, c = x_ref.shape
    hd = c // num_heads
    rows = wb * n

    x2 = x_ref[...].reshape(rows, c)
    # One wide (rows x C) @ (C x 3C) MXU matmul for the fused QKV projection.
    qkv = jnp.dot(x2, wqkv_ref[...], preferred_element_type=jnp.float32)
    qkv = (qkv + bqkv_ref[...]).reshape(wb, n, 3 * c)

    rpb = rpb_ref[...]                                   # hoisted: loaded once
    mask = mask_ref[...]                                 # hoisted: loaded once

    acc = jnp.zeros((rows, c), jnp.float32)
    for h in range(num_heads):                           # static unroll over heads
        q = qkv[:, :, h * hd:(h + 1) * hd]                                # (wb, n, hd)
        k = qkv[:, :, c + h * hd:c + (h + 1) * hd]                        # (wb, n, hd)
        v = qkv[:, :, 2 * c + h * hd:2 * c + (h + 1) * hd]                # (wb, n, hd)

        attn = jnp.einsum("bqd,bkd->bqk", q, k,
                          preferred_element_type=jnp.float32)             # (wb, n, n)
        attn = attn + rpb[h][None] + mask

        # Softmax over keys: max on XLU, exp on EUP.  The normalization is
        # applied to the (n, hd) context instead of the (n, n) probabilities.
        attn = attn - jnp.max(attn, axis=-1, keepdims=True)
        p = jnp.exp(attn)
        inv_l = pl.reciprocal(jnp.sum(p, axis=-1, keepdims=True), approx=True)

        out_h = jnp.einsum("bqk,bkd->bqd", p, v,
                           preferred_element_type=jnp.float32) * inv_l    # (wb, n, hd)

        # Accumulate this head's slice of the output projection:
        #   concat_h(out_h) @ Wproj  ==  sum_h out_h @ Wproj[h*hd:(h+1)*hd, :]
        acc = acc + jnp.dot(out_h.reshape(rows, hd),
                            wproj_ref[h * hd:(h + 1) * hd, :],
                            preferred_element_type=jnp.float32)

    acc = acc + bproj_ref[...]
    o_ref[...] = acc.reshape(wb, n, c).astype(o_ref.dtype)


def _largest_divisor_leq(n, cap):
    for d in range(min(n, cap), 0, -1):
        if n % d == 0:
            return d
    return 1


def window_attention_3d(x, params, mask=None, *, num_heads, qk_scale=None,
                        max_windows_per_block=8):
    """x: (B_, N, C) with B_ = batch * num_windows (window index fastest)."""
    wqkv, bqkv, wproj, bproj, table, rel_index = params
    B_, N, C = x.shape
    assert C % num_heads == 0
    hd = C // num_heads
    scale = qk_scale if qk_scale is not None else hd ** (-0.5)

    # Fold the q scale into the q-part of the fused QKV weight & bias (one tiny
    # weight-side op; removes rows*C VPU multiplies per grid step in the kernel).
    col_scale = jnp.concatenate([jnp.full((C,), scale, jnp.float32),
                                 jnp.ones((2 * C,), jnp.float32)])
    wqkv_s = (wqkv.astype(jnp.float32) * col_scale[None, :]).astype(wqkv.dtype)
    bqkv_s = (bqkv.astype(jnp.float32) * col_scale).astype(bqkv.dtype)

    # Relative position bias gather (tiny, data independent) -> (H, N, N).
    rpb = table[rel_index[:N, :N].reshape(-1)].reshape(N, N, num_heads)
    rpb = jnp.transpose(rpb, (2, 0, 1)).astype(jnp.float32)

    if mask is not None:
        nW = mask.shape[0]
        assert B_ % nW == 0, "num_windows must divide B_"
        wb = _largest_divisor_leq(nW, max_windows_per_block)  # windows per grid step
        wsteps = nW // wb
        bsteps = B_ // nW
        mask_arr = mask.astype(jnp.float32)
        mask_spec = pl.BlockSpec((wb, N, N), lambda i, j: (j, 0, 0))
    else:
        # No mask: every window is identical, so block the whole batch freely
        # (avoids tiny single-window grid steps).
        wb = _largest_divisor_leq(B_, max_windows_per_block)
        wsteps = B_ // wb
        bsteps = 1
        mask_arr = jnp.zeros((1, N, N), jnp.float32)
        mask_spec = pl.BlockSpec((1, N, N), lambda i, j: (0, 0, 0))

    kernel = partial(_window_attention_kernel, num_heads=num_heads)

    return pl.pallas_call(
        kernel,
        out_shape=jax.ShapeDtypeStruct((B_, N, C), x.dtype),
        grid=(bsteps, wsteps),
        in_specs=[
            pl.BlockSpec((wb, N, C), lambda i, j: (i * wsteps + j, 0, 0)),
            pl.BlockSpec((C, 3 * C), lambda i, j: (0, 0)),
            pl.BlockSpec((1, 3 * C), lambda i, j: (0, 0)),
            pl.BlockSpec((num_heads, N, N), lambda i, j: (0, 0, 0)),
            mask_spec,
            pl.BlockSpec((C, C), lambda i, j: (0, 0)),
            pl.BlockSpec((1, C), lambda i, j: (0, 0)),
        ],
        out_specs=pl.BlockSpec((wb, N, C), lambda i, j: (i * wsteps + j, 0, 0)),
        compiler_params=pltpu.CompilerParams(
            dimension_semantics=("parallel", "parallel")),
    )(x, wqkv_s, bqkv_s.reshape(1, -1), rpb, mask_arr, wproj, bproj.reshape(1, -1))
    # TODO(synk): attn_drop / proj_drop are training-time stochastic ops; this
    # kernel implements inference semantics (identity).


# --------------------------- pure-JAX reference ------------------------------ #

def window_attention_3d_ref(x, params, mask=None, *, num_heads, qk_scale=None):
    wqkv, bqkv, wproj, bproj, table, rel_index = params
    B_, N, C = x.shape
    hd = C // num_heads
    scale = qk_scale if qk_scale is not None else hd ** (-0.5)
    qkv = (x @ wqkv + bqkv).reshape(B_, N, 3, num_heads, hd).transpose(2, 0, 3, 1, 4)
    q, k, v = qkv[0] * scale, qkv[1], qkv[2]
    attn = jnp.einsum("bhqd,bhkd->bhqk", q, k)
    rpb = table[rel_index[:N, :N].reshape(-1)].reshape(N, N, num_heads).transpose(2, 0, 1)
    attn = attn + rpb[None]
    if mask is not None:
        nW = mask.shape[0]
        attn = attn.reshape(B_ // nW, nW, num_heads, N, N) + mask[None, :, None]
        attn = attn.reshape(B_, num_heads, N, N)
    attn = jax.nn.softmax(attn, axis=-1)
    out = jnp.einsum("bhqk,bhkd->bhqd", attn, v)
    out = out.transpose(0, 2, 1, 3).reshape(B_, N, C)
    return out @ wproj + bproj


# ----------------------------------- main ------------------------------------ #

if __name__ == "__main__":
    DIM, NUM_HEADS = 32, 4
    WINDOW = (2, 4, 4)
    N = WINDOW[0] * WINDOW[1] * WINDOW[2]          # 32 tokens per window
    B, NW = 2, 4                                   # 2 images, 4 windows each
    B_ = B * NW                                    # 8

    key = jax.random.PRNGKey(0)
    kx, kq, kb, kp, kpb, kt = jax.random.split(key, 6)
    x = jax.random.normal(kx, (B_, N, DIM), jnp.float32)

    # nn.Linear weights stored transposed to (in, out) for right-multiplication.
    wqkv = 0.2 * jax.random.normal(kq, (DIM, 3 * DIM), jnp.float32)
    bqkv = 0.1 * jax.random.normal(kb, (3 * DIM,), jnp.float32)   # qkv_bias=True path
    wproj = 0.2 * jax.random.normal(kp, (DIM, DIM), jnp.float32)
    bproj = 0.1 * jax.random.normal(kpb, (DIM,), jnp.float32)

    table_len = (2 * WINDOW[0] - 1) * (2 * WINDOW[1] - 1) * (2 * WINDOW[2] - 1)
    table = 0.5 * jax.random.normal(kt, (table_len, NUM_HEADS), jnp.float32)
    rel_index = make_relative_position_index(WINDOW)

    # Deterministic Swin-style shift mask: 0 / -100 per window.
    group = jnp.arange(N) // (N // 4)
    base = jnp.where(group[:, None] == group[None, :], 0.0, -100.0)
    mask = jnp.stack([base * float(w % 2) for w in range(NW)]).astype(jnp.float32)

    params = (wqkv, bqkv, wproj, bproj, table, rel_index)

    # Masked path (shifted windows).
    out = jax.block_until_ready(
        window_attention_3d(x, params, mask, num_heads=NUM_HEADS))
    assert out.shape == (B_, N, DIM)
    assert bool(jnp.all(jnp.isfinite(out)))
    ref = window_attention_3d_ref(x, params, mask, num_heads=NUM_HEADS)
    err_masked = float(jnp.max(jnp.abs(out - ref)))
    assert err_masked < 5e-2, f"masked-path mismatch vs reference: {err_masked}"

    # Unmasked path (regular windows).
    out_nm = jax.block_until_ready(
        window_attention_3d(x, params, None, num_heads=NUM_HEADS))
    ref_nm = window_attention_3d_ref(x, params, None, num_heads=NUM_HEADS)
    err_nomask = float(jnp.max(jnp.abs(out_nm - ref_nm)))
    assert err_nomask < 5e-2, f"unmasked-path mismatch vs reference: {err_nomask}"

    print("KERNEL_OK")
</pallas_src>

<mosaic_0001>
module attributes {stable_mosaic.version = 11 : i64} {
  func.func @_window_attention_kernel(%arg0: i32, %arg1: i32, %arg2: memref<4x32x32xf32, #tpu.memory_space<vmem>>, %arg3: memref<32x96xf32, #tpu.memory_space<vmem>>, %arg4: memref<1x96xf32, #tpu.memory_space<vmem>>, %arg5: memref<4x32x32xf32, #tpu.memory_space<vmem>>, %arg6: memref<4x32x32xf32, #tpu.memory_space<vmem>>, %arg7: memref<32x32xf32, #tpu.memory_space<vmem>>, %arg8: memref<1x32xf32, #tpu.memory_space<vmem>>, %arg9: memref<4x32x32xf32, #tpu.memory_space<vmem>>) attributes {dimension_semantics = [#tpu.dimension_semantics<parallel>, #tpu.dimension_semantics<parallel>], iteration_bounds = array<i64: 2, 1>, scalar_prefetch = 0 : i64, scratch_operands = 0 : i64, tpu.core_type = #tpu.core_type<tc>, window_params = [{transform_indices = @transform_0, window_bounds = array<i64: 4, 32, 32>}, {pipeline_mode = #tpu.pipeline_mode<synchronous>, transform_indices = @transform_1, window_bounds = array<i64: 32, 96>}, {pipeline_mode = #tpu.pipeline_mode<synchronous>, transform_indices = @transform_2, window_bounds = array<i64: 1, 96>}, {pipeline_mode = #tpu.pipeline_mode<synchronous>, transform_indices = @transform_3, window_bounds = array<i64: 4, 32, 32>}, {transform_indices = @transform_4, window_bounds = array<i64: 4, 32, 32>}, {pipeline_mode = #tpu.pipeline_mode<synchronous>, transform_indices = @transform_5, window_bounds = array<i64: 32, 32>}, {pipeline_mode = #tpu.pipeline_mode<synchronous>, transform_indices = @transform_6, window_bounds = array<i64: 1, 32>}, {transform_indices = @transform_7, window_bounds = array<i64: 4, 32, 32>}]} {
    %c0 = arith.constant 0 : index
    %c0_0 = arith.constant 0 : index
    %c0_1 = arith.constant 0 : index
    %0 = vector.load %arg2[%c0, %c0_0, %c0_1] : memref<4x32x32xf32, #tpu.memory_space<vmem>>, vector<4x32x32xf32>
    %1 = vector.shape_cast %0 : vector<4x32x32xf32> to vector<128x32xf32>
    %c0_2 = arith.constant 0 : index
    %c0_3 = arith.constant 0 : index
    %2 = vector.load %arg3[%c0_2, %c0_3] : memref<32x96xf32, #tpu.memory_space<vmem>>, vector<32x96xf32>
    %cst = arith.constant dense<0.000000e+00> : vector<128x96xf32>
    %3 = tpu.matmul %1, %2, %cst {dimension_numbers = #tpu.dot_dimension_numbers<[1], [0], [0], [1], [0, 0, 1, 1], [], []>} : vector<128x32xf32>, vector<32x96xf32>, vector<128x96xf32> -> vector<128x96xf32>
    %c0_4 = arith.constant 0 : index
    %c0_5 = arith.constant 0 : index
    %4 = vector.load %arg4[%c0_4, %c0_5] : memref<1x96xf32, #tpu.memory_space<vmem>>, vector<1x96xf32>
    %5 = vector.broadcast %4 : vector<1x96xf32> to vector<128x96xf32>
    %6 = arith.addf %3, %5 : vector<128x96xf32>
    %7 = vector.shape_cast %6 : vector<128x96xf32> to vector<4x32x96xf32>
    %c0_6 = arith.constant 0 : index
    %c0_7 = arith.constant 0 : index
    %c0_8 = arith.constant 0 : index
    %8 = vector.load %arg5[%c0_6, %c0_7, %c0_8] : memref<4x32x32xf32, #tpu.memory_space<vmem>>, vector<4x32x32xf32>
    %c0_9 = arith.constant 0 : index
    %c0_10 = arith.constant 0 : index
    %c0_11 = arith.constant 0 : index
    %9 = vector.load %arg6[%c0_9, %c0_10, %c0_11] : memref<4x32x32xf32, #tpu.memory_space<vmem>>, vector<4x32x32xf32>
    %cst_12 = arith.constant 0.000000e+00 : f32
    %10 = vector.broadcast %cst_12 : f32 to vector<128x32xf32>
    %11 = vector.extract_strided_slice %7 {offsets = [0, 0, 0], sizes = [4, 32, 8], strides = [1, 1, 1]} : vector<4x32x96xf32> to vector<4x32x8xf32>
    %12 = vector.extract_strided_slice %7 {offsets = [0, 0, 32], sizes = [4, 32, 8], strides = [1, 1, 1]} : vector<4x32x96xf32> to vector<4x32x8xf32>
    %13 = vector.extract_strided_slice %7 {offsets = [0, 0, 64], sizes = [4, 32, 8], strides = [1, 1, 1]} : vector<4x32x96xf32> to vector<4x32x8xf32>
    "tpu.trace_start"() <{level = 10 : i32, message = "bqd,bkd->bqk"}> : () -> ()
    %cst_13 = arith.constant dense<0.000000e+00> : vector<4x32x32xf32>
    %14 = tpu.matmul %11, %12, %cst_13 {dimension_numbers = #tpu.dot_dimension_numbers<[2], [2], [1], [1], [0, 0, 0, 1, 1, 1], [0], [0]>} : vector<4x32x8xf32>, vector<4x32x8xf32>, vector<4x32x32xf32> -> vector<4x32x32xf32>
    "tpu.trace_stop"() : () -> ()
    %15 = vector.extract_strided_slice %8 {offsets = [0, 0, 0], sizes = [1, 32, 32], strides = [1, 1, 1]} : vector<4x32x32xf32> to vector<1x32x32xf32>
    %16 = vector.shape_cast %15 : vector<1x32x32xf32> to vector<32x32xf32>
    %17 = vector.shape_cast %16 : vector<32x32xf32> to vector<1x32x32xf32>
    %18 = vector.broadcast %17 : vector<1x32x32xf32> to vector<4x32x32xf32>
    %19 = arith.addf %14, %18 : vector<4x32x32xf32>
    %20 = arith.addf %19, %9 : vector<4x32x32xf32>
    %cst_14 = arith.constant dense<0xFF800000> : vector<4x32xf32>
    %21 = vector.multi_reduction <maximumf>, %20, %cst_14 [2] : vector<4x32x32xf32> to vector<4x32xf32>
    %22 = vector.shape_cast %21 : vector<4x32xf32> to vector<4x32x1xf32>
    %23 = vector.broadcast %22 : vector<4x32x1xf32> to vector<4x32x32xf32>
    %24 = arith.subf %20, %23 : vector<4x32x32xf32>
    %25 = math.exp %24 : vector<4x32x32xf32>
    %cst_15 = arith.constant dense<0.000000e+00> : vector<4x32xf32>
    %26 = vector.multi_reduction <add>, %25, %cst_15 [2] : vector<4x32x32xf32> to vector<4x32xf32>
    %27 = vector.shape_cast %26 : vector<4x32xf32> to vector<4x32x1xf32>
    %28 = tpu.reciprocal %27 {approx = true} : vector<4x32x1xf32> -> vector<4x32x1xf32>
    "tpu.trace_start"() <{level = 10 : i32, message = "bqk,bkd->bqd"}> : () -> ()
    %cst_16 = arith.constant dense<0.000000e+00> : vector<4x32x8xf32>
    %29 = tpu.matmul %25, %13, %cst_16 {dimension_numbers = #tpu.dot_dimension_numbers<[2], [1], [1], [2], [0, 0, 0, 1, 1, 2], [0], [0]>} : vector<4x32x32xf32>, vector<4x32x8xf32>, vector<4x32x8xf32> -> vector<4x32x8xf32>
    "tpu.trace_stop"() : () -> ()
    %30 = vector.broadcast %28 : vector<4x32x1xf32> to vector<4x32x8xf32>
    %31 = arith.mulf %29, %30 : vector<4x32x8xf32>
    %32 = vector.shape_cast %31 : vector<4x32x8xf32> to vector<128x8xf32>
    %c0_17 = arith.constant 0 : index
    %c0_18 = arith.constant 0 : index
    %33 = vector.load %arg7[%c0_17, %c0_18] : memref<32x32xf32, #tpu.memory_space<vmem>>, vector<8x32xf32>
    %cst_19 = arith.constant dense<0.000000e+00> : vector<128x32xf32>
    %34 = tpu.matmul %32, %33, %cst_19 {dimension_numbers = #tpu.dot_dimension_numbers<[1], [0], [0], [1], [0, 0, 1, 1], [], []>} : vector<128x8xf32>, vector<8x32xf32>, vector<128x32xf32> -> vector<128x32xf32>
    %35 = arith.addf %10, %34 : vector<128x32xf32>
    %36 = vector.extract_strided_slice %7 {offsets = [0, 0, 8], sizes = [4, 32, 8], strides = [1, 1, 1]} : vector<4x32x96xf32> to vector<4x32x8xf32>
    %37 = vector.extract_strided_slice %7 {offsets = [0, 0, 40], sizes = [4, 32, 8], strides = [1, 1, 1]} : vector<4x32x96xf32> to vector<4x32x8xf32>
    %38 = vector.extract_strided_slice %7 {offsets = [0, 0, 72], sizes = [4, 32, 8], strides = [1, 1, 1]} : vector<4x32x96xf32> to vector<4x32x8xf32>
    "tpu.trace_start"() <{level = 10 : i32, message = "bqd,bkd->bqk"}> : () -> ()
    %cst_20 = arith.constant dense<0.000000e+00> : vector<4x32x32xf32>
    %39 = tpu.matmul %36, %37, %cst_20 {dimension_numbers = #tpu.dot_dimension_numbers<[2], [2], [1], [1], [0, 0, 0, 1, 1, 1], [0], [0]>} : vector<4x32x8xf32>, vector<4x32x8xf32>, vector<4x32x32xf32> -> vector<4x32x32xf32>
    "tpu.trace_stop"() : () -> ()
    %40 = vector.extract_strided_slice %8 {offsets = [1, 0, 0], sizes = [1, 32, 32], strides = [1, 1, 1]} : vector<4x32x32xf32> to vector<1x32x32xf32>
    %41 = vector.shape_cast %40 : vector<1x32x32xf32> to vector<32x32xf32>
    %42 = vector.shape_cast %41 : vector<32x32xf32> to vector<1x32x32xf32>
    %43 = vector.broadcast %42 : vector<1x32x32xf32> to vector<4x32x32xf32>
    %44 = arith.addf %39, %43 : vector<4x32x32xf32>
    %45 = arith.addf %44, %9 : vector<4x32x32xf32>
    %cst_21 = arith.constant dense<0xFF800000> : vector<4x32xf32>
    %46 = vector.multi_reduction <maximumf>, %45, %cst_21 [2] : vector<4x32x32xf32> to vector<4x32xf32>
    %47 = vector.shape_cast %46 : vector<4x32xf32> to vector<4x32x1xf32>
    %48 = vector.broadcast %47 : vector<4x32x1xf32> to vector<4x32x32xf32>
    %49 = arith.subf %45, %48 : vector<4x32x32xf32>
    %50 = math.exp %49 : vector<4x32x32xf32>
    %cst_22 = arith.constant dense<0.000000e+00> : vector<4x32xf32>
    %51 = vector.multi_reduction <add>, %50, %cst_22 [2] : vector<4x32x32xf32> to vector<4x32xf32>
    %52 = vector.shape_cast %51 : vector<4x32xf32> to vector<4x32x1xf32>
    %53 = tpu.reciprocal %52 {approx = true} : vector<4x32x1xf32> -> vector<4x32x1xf32>
    "tpu.trace_start"() <{level = 10 : i32, message = "bqk,bkd->bqd"}> : () -> ()
    %cst_23 = arith.constant dense<0.000000e+00> : vector<4x32x8xf32>
    %54 = tpu.matmul %50, %38, %cst_23 {dimension_numbers = #tpu.dot_dimension_numbers<[2], [1], [1], [2], [0, 0, 0, 1, 1, 2], [0], [0]>} : vector<4x32x32xf32>, vector<4x32x8xf32>, vector<4x32x8xf32> -> vector<4x32x8xf32>
    "tpu.trace_stop"() : () -> ()
    %55 = vector.broadcast %53 : vector<4x32x1xf32> to vector<4x32x8xf32>
    %56 = arith.mulf %54, %55 : vector<4x32x8xf32>
    %57 = vector.shape_cast %56 : vector<4x32x8xf32> to vector<128x8xf32>
    %c8 = arith.constant 8 : index
    %c0_24 = arith.constant 0 : index
    %58 = vector.load %arg7[%c8, %c0_24] : memref<32x32xf32, #tpu.memory_space<vmem>>, vector<8x32xf32>
    %cst_25 = arith.constant dense<0.000000e+00> : vector<128x32xf32>
    %59 = tpu.matmul %57, %58, %cst_25 {dimension_numbers = #tpu.dot_dimension_numbers<[1], [0], [0], [1], [0, 0, 1, 1], [], []>} : vector<128x8xf32>, vector<8x32xf32>, vector<128x32xf32> -> vector<128x32xf32>
    %60 = arith.addf %35, %59 : vector<128x32xf32>
    %61 = vector.extract_strided_slice %7 {offsets = [0, 0, 16], sizes = [4, 32, 8], strides = [1, 1, 1]} : vector<4x32x96xf32> to vector<4x32x8xf32>
    %62 = vector.extract_strided_slice %7 {offsets = [0, 0, 48], sizes = [4, 32, 8], strides = [1, 1, 1]} : vector<4x32x96xf32> to vector<4x32x8xf32>
    %63 = vector.extract_strided_slice %7 {offsets = [0, 0, 80], sizes = [4, 32, 8], strides = [1, 1, 1]} : vector<4x32x96xf32> to vector<4x32x8xf32>
    "tpu.trace_start"() <{level = 10 : i32, message = "bqd,bkd->bqk"}> : () -> ()
    %cst_26 = arith.constant dense<0.000000e+00> : vector<4x32x32xf32>
    %64 = tpu.matmul %61, %62, %cst_26 {dimension_numbers = #tpu.dot_dimension_numbers<[2], [2], [1], [1], [0, 0, 0, 1, 1, 1], [0], [0]>} : vector<4x32x8xf32>, vector<4x32x8xf32>, vector<4x32x32xf32> -> vector<4x32x32xf32>
    "tpu.trace_stop"() : () -> ()
    %65 = vector.extract_strided_slice %8 {offsets = [2, 0, 0], sizes = [1, 32, 32], strides = [1, 1, 1]} : vector<4x32x32xf32> to vector<1x32x32xf32>
    %66 = vector.shape_cast %65 : vector<1x32x32xf32> to vector<32x32xf32>
    %67 = vector.shape_cast %66 : vector<32x32xf32> to vector<1x32x32xf32>
    %68 = vector.broadcast %67 : vector<1x32x32xf32> to vector<4x32x32xf32>
    %69 = arith.addf %64, %68 : vector<4x32x32xf32>
    %70 = arith.addf %69, %9 : vector<4x32x32xf32>
    %cst_27 = arith.constant dense<0xFF800000> : vector<4x32xf32>
    %71 = vector.multi_reduction <maximumf>, %70, %cst_27 [2] : vector<4x32x32xf32> to vector<4x32xf32>
    %72 = vector.shape_cast %71 : vector<4x32xf32> to vector<4x32x1xf32>
    %73 = vector.broadcast %72 : vector<4x32x1xf32> to vector<4x32x32xf32>
    %74 = arith.subf %70, %73 : vector<4x32x32xf32>
    %75 = math.exp %74 : vector<4x32x32xf32>
    %cst_28 = arith.constant dense<0.000000e+00> : vector<4x32xf32>
    %76 = vector.multi_reduction <add>, %75, %cst_28 [2] : vector<4x32x32xf32> to vector<4x32xf32>
    %77 = vector.shape_cast %76 : vector<4x32xf32> to vector<4x32x1xf32>
    %78 = tpu.reciprocal %77 {approx = true} : vector<4x32x1xf32> -> vector<4x32x1xf32>
    "tpu.trace_start"() <{level = 10 : i32, message = "bqk,bkd->bqd"}> : () -> ()
    %cst_29 = arith.constant dense<0.000000e+00> : vector<4x32x8xf32>
    %79 = tpu.matmul %75, %63, %cst_29 {dimension_numbers = #tpu.dot_dimension_numbers<[2], [1], [1], [2], [0, 0, 0, 1, 1, 2], [0], [0]>} : vector<4x32x32xf32>, vector<4x32x8xf32>, vector<4x32x8xf32> -> vector<4x32x8xf32>
    "tpu.trace_stop"() : () -> ()
    %80 = vector.broadcast %78 : vector<4x32x1xf32> to vector<4x32x8xf32>
    %81 = arith.mulf %79, %80 : vector<4x32x8xf32>
    %82 = vector.shape_cast %81 : vector<4x32x8xf32> to vector<128x8xf32>
    %c16 = arith.constant 16 : index
    %c0_30 = arith.constant 0 : index
    %83 = vector.load %arg7[%c16, %c0_30] : memref<32x32xf32, #tpu.memory_space<vmem>>, vector<8x32xf32>
    %cst_31 = arith.constant dense<0.000000e+00> : vector<128x32xf32>
    %84 = tpu.matmul %82, %83, %cst_31 {dimension_numbers = #tpu.dot_dimension_numbers<[1], [0], [0], [1], [0, 0, 1, 1], [], []>} : vector<128x8xf32>, vector<8x32xf32>, vector<128x32xf32> -> vector<128x32xf32>
    %85 = arith.addf %60, %84 : vector<128x32xf32>
    %86 = vector.extract_strided_slice %7 {offsets = [0, 0, 24], sizes = [4, 32, 8], strides = [1, 1, 1]} : vector<4x32x96xf32> to vector<4x32x8xf32>
    %87 = vector.extract_strided_slice %7 {offsets = [0, 0, 56], sizes = [4, 32, 8], strides = [1, 1, 1]} : vector<4x32x96xf32> to vector<4x32x8xf32>
    %88 = vector.extract_strided_slice %7 {offsets = [0, 0, 88], sizes = [4, 32, 8], strides = [1, 1, 1]} : vector<4x32x96xf32> to vector<4x32x8xf32>
    "tpu.trace_start"() <{level = 10 : i32, message = "bqd,bkd->bqk"}> : () -> ()
    %cst_32 = arith.constant dense<0.000000e+00> : vector<4x32x32xf32>
    %89 = tpu.matmul %86, %87, %cst_32 {dimension_numbers = #tpu.dot_dimension_numbers<[2], [2], [1], [1], [0, 0, 0, 1, 1, 1], [0], [0]>} : vector<4x32x8xf32>, vector<4x32x8xf32>, vector<4x32x32xf32> -> vector<4x32x32xf32>
    "tpu.trace_stop"() : () -> ()
    %90 = vector.extract_strided_slice %8 {offsets = [3, 0, 0], sizes = [1, 32, 32], strides = [1, 1, 1]} : vector<4x32x32xf32> to vector<1x32x32xf32>
    %91 = vector.shape_cast %90 : vector<1x32x32xf32> to vector<32x32xf32>
    %92 = vector.shape_cast %91 : vector<32x32xf32> to vector<1x32x32xf32>
    %93 = vector.broadcast %92 : vector<1x32x32xf32> to vector<4x32x32xf32>
    %94 = arith.addf %89, %93 : vector<4x32x32xf32>
    %95 = arith.addf %94, %9 : vector<4x32x32xf32>
    %cst_33 = arith.constant dense<0xFF800000> : vector<4x32xf32>
    %96 = vector.multi_reduction <maximumf>, %95, %cst_33 [2] : vector<4x32x32xf32> to vector<4x32xf32>
    %97 = vector.shape_cast %96 : vector<4x32xf32> to vector<4x32x1xf32>
    %98 = vector.broadcast %97 : vector<4x32x1xf32> to vector<4x32x32xf32>
    %99 = arith.subf %95, %98 : vector<4x32x32xf32>
    %100 = math.exp %99 : vector<4x32x32xf32>
    %cst_34 = arith.constant dense<0.000000e+00> : vector<4x32xf32>
    %101 = vector.multi_reduction <add>, %100, %cst_34 [2] : vector<4x32x32xf32> to vector<4x32xf32>
    %102 = vector.shape_cast %101 : vector<4x32xf32> to vector<4x32x1xf32>
    %103 = tpu.reciprocal %102 {approx = true} : vector<4x32x1xf32> -> vector<4x32x1xf32>
    "tpu.trace_start"() <{level = 10 : i32, message = "bqk,bkd->bqd"}> : () -> ()
    %cst_35 = arith.constant dense<0.000000e+00> : vector<4x32x8xf32>
    %104 = tpu.matmul %100, %88, %cst_35 {dimension_numbers = #tpu.dot_dimension_numbers<[2], [1], [1], [2], [0, 0, 0, 1, 1, 2], [0], [0]>} : vector<4x32x32xf32>, vector<4x32x8xf32>, vector<4x32x8xf32> -> vector<4x32x8xf32>
    "tpu.trace_stop"() : () -> ()
    %105 = vector.broadcast %103 : vector<4x32x1xf32> to vector<4x32x8xf32>
    %106 = arith.mulf %104, %105 : vector<4x32x8xf32>
    %107 = vector.shape_cast %106 : vector<4x32x8xf32> to vector<128x8xf32>
    %c24 = arith.constant 24 : index
    %c0_36 = arith.constant 0 : index
    %108 = vector.load %arg7[%c24, %c0_36] : memref<32x32xf32, #tpu.memory_space<vmem>>, vector<8x32xf32>
    %cst_37 = arith.constant dense<0.000000e+00> : vector<128x32xf32>
    %109 = tpu.matmul %107, %108, %cst_37 {dimension_numbers = #tpu.dot_dimension_numbers<[1], [0], [0], [1], [0, 0, 1, 1], [], []>} : vector<128x8xf32>, vector<8x32xf32>, vector<128x32xf32> -> vector<128x32xf32>
    %110 = arith.addf %85, %109 : vector<128x32xf32>
    %c0_38 = arith.constant 0 : index
    %c0_39 = arith.constant 0 : index
    %111 = vector.load %arg8[%c0_38, %c0_39] : memref<1x32xf32, #tpu.memory_space<vmem>>, vector<1x32xf32>
    %112 = vector.broadcast %111 : vector<1x32xf32> to vector<128x32xf32>
    %113 = arith.addf %110, %112 : vector<128x32xf32>
    %114 = vector.shape_cast %113 : vector<128x32xf32> to vector<4x32x32xf32>
    %c0_40 = arith.constant 0 : index
    %c0_41 = arith.constant 0 : index
    %c0_42 = arith.constant 0 : index
    %115 = vector.load %arg9[%c0_40, %c0_41, %c0_42] : memref<4x32x32xf32, #tpu.memory_space<vmem>>, vector<4x32x32xf32>
    tpu.vector_store %arg9[%c0_40, %c0_41, %c0_42], %114 {strides = array<i32>} : memref<4x32x32xf32, #tpu.memory_space<vmem>>, vector<4x32x32xf32>,
    return
  }
  func.func @transform_0(%arg0: i32, %arg1: i32) -> (i32, i32, i32) {
    %c1_i32 = arith.constant 1 : i32
    %0 = arith.muli %arg0, %c1_i32 : i32
    %1 = arith.addi %0, %arg1 : i32
    %c0_i32 = arith.constant 0 : i32
    %c0_i32_0 = arith.constant 0 : i32
    %c0_i32_1 = arith.constant 0 : i32
    return %1, %c0_i32, %c0_i32_0 : i32, i32, i32
  }
  func.func @transform_1(%arg0: i32, %arg1: i32) -> (i32, i32) {
    %c0_i32 = arith.constant 0 : i32
    %c0_i32_0 = arith.constant 0 : i32
    %c0_i32_1 = arith.constant 0 : i32
    return %c0_i32, %c0_i32_0 : i32, i32
  }
  func.func @transform_2(%arg0: i32, %arg1: i32) -> (i32, i32) {
    %c0_i32 = arith.constant 0 : i32
    %c0_i32_0 = arith.constant 0 : i32
    %c0_i32_1 = arith.constant 0 : i32
    return %c0_i32, %c0_i32_0 : i32, i32
  }
  func.func @transform_3(%arg0: i32, %arg1: i32) -> (i32, i32, i32) {
    %c0_i32 = arith.constant 0 : i32
    %c0_i32_0 = arith.constant 0 : i32
    %c0_i32_1 = arith.constant 0 : i32
    %c0_i32_2 = arith.constant 0 : i32
    return %c0_i32, %c0_i32_0, %c0_i32_1 : i32, i32, i32
  }
  func.func @transform_4(%arg0: i32, %arg1: i32) -> (i32, i32, i32) {
    %c0_i32 = arith.constant 0 : i32
    %c0_i32_0 = arith.constant 0 : i32
    %c0_i32_1 = arith.constant 0 : i32
    return %arg1, %c0_i32, %c0_i32_0 : i32, i32, i32
  }
  func.func @transform_5(%arg0: i32, %arg1: i32) -> (i32, i32) {
    %c0_i32 = arith.constant 0 : i32
    %c0_i32_0 = arith.constant 0 : i32
    %c0_i32_1 = arith.constant 0 : i32
    return %c0_i32, %c0_i32_0 : i32, i32
  }
  func.func @transform_6(%arg0: i32, %arg1: i32) -> (i32, i32) {
    %c0_i32 = arith.constant 0 : i32
    %c0_i32_0 = arith.constant 0 : i32
    %c0_i32_1 = arith.constant 0 : i32
    return %c0_i32, %c0_i32_0 : i32, i32
  }
  func.func @transform_7(%arg0: i32, %arg1: i32) -> (i32, i32, i32) {
    %c1_i32 = arith.constant 1 : i32
    %0 = arith.muli %arg0, %c1_i32 : i32
    %1 = arith.addi %0, %arg1 : i32
    %c0_i32 = arith.constant 0 : i32
    %c0_i32_0 = arith.constant 0 : i32
    %c0_i32_1 = arith.constant 0 : i32
    return %1, %c0_i32, %c0_i32_0 : i32, i32, i32
  }
}

</mosaic_0001>

<llo_original>
// kernel: tpu_custom_call.1
$region0: #{tpu_custom_call.1}
  #allocation0 [shape = 'u32[]', space=smem, size = 0x4, offset = 0x4, fixed_abs, tag = 'smem constant byte address 0x4 - core index']
  #allocation1 [shape = 'u32[144,128]{1,0:T(1,128)}', space=vmem, size = 0x12000, scoped, tag = 'internal scratch']
  %s0 = inlined_call_operand.hbm [shape: f32[8,32,32], index: 0, kind: input, shape index: {}]
  %s1 = inlined_call_operand.hbm [shape: f32[32,96], index: 1, kind: input, shape index: {}]
  %s2 = inlined_call_operand.vmem [shape: f32[1,96], index: 2, kind: input, shape index: {}]
  %s3 = inlined_call_operand.hbm [shape: f32[4,32,32], index: 3, kind: input, shape index: {}]
  %s4 = inlined_call_operand.hbm [shape: f32[4,32,32], index: 4, kind: input, shape index: {}]
  %s5 = inlined_call_operand.hbm [shape: f32[32,32], index: 5, kind: input, shape index: {}]
  %s6 = inlined_call_operand.vmem [shape: f32[1,32], index: 6, kind: input, shape index: {}]
  %s7 = inlined_call_operand.hbm [shape: f32[8,32,32], index: 7, kind: output, shape index: {}]
  %s8 = sld [smem:[#allocation0]]
  $region81: #{tpu_custom_call.1} parent=0
    _
  %s10 = ssub.s32 1, %s8
  %s11 = scalar_select 0, %s10, %s8
  $region1: #{tpu_custom_call.1} parent=0
    #allocation2 [shape = 'u8[131072]{0}', space=vmem, size = 0x20000, scoped, tag = 'input window, operand 0']
    #allocation3 [shape = 's32[2]{0}', space=sflag, size = 0x8, scoped, tag = 'scoped memory for tpu_custom_call.1']
    #allocation4 [shape = 's32[2]{0}', space=sflag, size = 0x8, scoped, tag = 'scoped memory for tpu_custom_call.1']
    #allocation5 [shape = 'u8[16384]{0}', space=vmem, size = 0x4000, scoped, tag = 'input window, operand 1, single buffered']
    #allocation6 [shape = 's32[1]{0}', space=sflag, size = 0x4, scoped, tag = 'scoped memory for tpu_custom_call.1']
    #allocation7 [shape = 'u8[65536]{0}', space=vmem, size = 0x10000, scoped, tag = 'input window, operand 3, single buffered']
    #allocation8 [shape = 'u8[65536]{0}', space=vmem, size = 0x10000, scoped, tag = 'input window, operand 4, single buffered']
    #allocation9 [shape = 's32[1]{0}', space=sflag, size = 0x4, scoped, tag = 'scoped memory for tpu_custom_call.1']
    #allocation10 [shape = 'u8[16384]{0}', space=vmem, size = 0x4000, scoped, tag = 'input window, operand 5, single buffered']
    #allocation11 [shape = 'u8[131072]{0}', space=vmem, size = 0x20000, scoped, tag = 'output window, operand 0']
    %12 = vsyncpa [#allocation3], 0
    %s13 = scalar_lea.sflag [#allocation3], 1
    %14 = vsyncpa %s13, 0
    %15 = vsyncpa [#allocation6], 0
    %16 = vsyncpa [#allocation9], 0
    %17 = vsyncpa [#allocation4], 0
    %s18 = scalar_lea.sflag [#allocation4], 1
    %19 = vsyncpa %s18, 0
    loop: start=0, step=1, limit=4
    $region2: #{tpu_custom_call.1} parent=1 // loop_pre_header
      _
    $region3: #{tpu_custom_call.1} parent=1 // loop_header
      %s21 = sphi 0, %s25
      %p22 = scmp.ge.s32.totalorder %s21, 4
      %s28 = sphi 0, %s40
      %s29 = sphi 0, %s36
      %s30 = sphi 0, %s28
      %s31 = sphi 0, %s29
      %s32 = sphi 0, %s30
      %s33 = sphi 0, %s31
      %s45 = sphi 0, %s47
      %s48 = sphi 0, %s45
      %s49 = sphi 0, %s48
      %s65 = sphi 0, %s49
      %s69 = sphi 0, %s69
      %s71 = sphi 0, %s69
      %s72 = sphi 0, %s71
      %s86 = sphi 0, %s72
      %s90 = sphi 0, %s90
      %s92 = sphi 0, %s90
      %s93 = sphi 0, %s92
      %s107 = sphi 0, %s93
      %s111 = sphi 0, %s111
      %s113 = sphi 0, %s111
      %s114 = sphi 0, %s113
      %s128 = sphi 0, %s114
      %s134 = sphi 0, %s136
      %s137 = sphi 0, %s134
      %s138 = sphi 0, %s137
      %s154 = sphi 0, %s138
      %s158 = sphi 0, %s158
      %s160 = sphi 0, %s158
      %s161 = sphi 0, %s160
      %s175 = sphi 0, %s161
      %s179 = sphi 0, %s179
      %s181 = sphi 0, %s179
      %s182 = sphi 0, %s181
      %s196 = sphi 0, %s182
      %s204 = sphi 0, %s206
      %s207 = sphi 0, %s204
      %s208 = sphi 0, %s207
      %s224 = sphi 0, %s208
    $region4: #{tpu_custom_call.1} parent=1 // loop_header_branch
      %24 = sbr.rel (%p22) target = $region8
    $region5: #{tpu_custom_call.1} parent=1 // loop_body
      %s26 = ssub.s32 %s21, 1
      %s27 = ssub.s32 %s21, 2
      %s34 = sadd.s32 1, %s29
      %p35 = scmp.ge.s32.totalorder %s34, 1
      %s36 = scalar_select %p35, 0, %s34
      %s37 = sadd.s32 1, %s28
      %s38 = scalar_select %p35, %s37, %s28
      %p39 = scmp.ge.s32.totalorder %s38, 2
      %s40 = scalar_select %p39, 0, %s38
      %s41 = sadd.s32 %s28, %s29
      %s42 = sadd.s32 %s40, %s36
      %s43 = ssub.s32 %s41, %s42
      %p44 = scmp.eq.s32.totalorder %s43, 0
      %s46 = sadd.s32 %s45, 1
      %s47 = scalar_select %p44, %s45, %s46
      %p50 = pneg %p44
      %p51 = scmp.eq.s32.totalorder %s21, 1
      %p52 = por %p50, %p51
      %p53 = scmp.ne.s32.totalorder %s45, %s48
      %p54 = scmp.eq.s32.totalorder %s21, 0
      %p55 = por %p53, %p54
      %p56 = scmp.ne.s32.totalorder %s45, %s48
      %p57 = scmp.eq.s32.totalorder %s26, 1
      %p58 = por %p56, %p57
      %p59 = scmp.ne.s32.totalorder %s48, %s49
      %p60 = scmp.eq.s32.totalorder %s26, 0
      %p61 = por %p59, %p60
      %p62 = scmp.ne.s32.totalorder %s48, %s49
      %p63 = scmp.eq.s32.totalorder %s27, 1
      %p64 = por %p62, %p63
      %p66 = scmp.ne.s32.totalorder %s49, %s65
      %p67 = scmp.eq.s32.totalorder %s27, 0
      %p68 = por %p66, %p67
      %s70 = sadd.s32 %s69, 1
      %p73 = scmp.eq.s32.totalorder %s21, 1
      %p74 = scmp.ne.s32.totalorder %s69, %s71
      %p75 = scmp.eq.s32.totalorder %s21, 0
      %p76 = por %p74, %p75
      %p77 = scmp.ne.s32.totalorder %s69, %s71
      %p78 = scmp.eq.s32.totalorder %s26, 1
      %p79 = por %p77, %p78
      %p80 = scmp.ne.s32.totalorder %s71, %s72
      %p81 = scmp.eq.s32.totalorder %s26, 0
      %p82 = por %p80, %p81
      %p83 = scmp.ne.s32.totalorder %s71, %s72
      %p84 = scmp.eq.s32.totalorder %s27, 1
      %p85 = por %p83, %p84
      %p87 = scmp.ne.s32.totalorder %s72, %s86
      %p88 = scmp.eq.s32.totalorder %s27, 0
      %p89 = por %p87, %p88
      %s91 = sadd.s32 %s90, 1
      %p94 = scmp.eq.s32.totalorder %s21, 1
      %p95 = scmp.ne.s32.totalorder %s90, %s92
      %p96 = scmp.eq.s32.totalorder %s21, 0
      %p97 = por %p95, %p96
      %p98 = scmp.ne.s32.totalorder %s90, %s92
      %p99 = scmp.eq.s32.totalorder %s26, 1
      %p100 = por %p98, %p99
      %p101 = scmp.ne.s32.totalorder %s92, %s93
      %p102 = scmp.eq.s32.totalorder %s26, 0
      %p103 = por %p101, %p102
      %p104 = scmp.ne.s32.totalorder %s92, %s93
      %p105 = scmp.eq.s32.totalorder %s27, 1
      %p106 = por %p104, %p105
      %p108 = scmp.ne.s32.totalorder %s93, %s107
      %p109 = scmp.eq.s32.totalorder %s27, 0
      %p110 = por %p108, %p109
      %s112 = sadd.s32 %s111, 1
      %p115 = scmp.eq.s32.totalorder %s21, 1
      %p116 = scmp.ne.s32.totalorder %s111, %s113
      %p117 = scmp.eq.s32.totalorder %s21, 0
      %p118 = por %p116, %p117
      %p119 = scmp.ne.s32.totalorder %s111, %s113
      %p120 = scmp.eq.s32.totalorder %s26, 1
      %p121 = por %p119, %p120
      %p122 = scmp.ne.s32.totalorder %s113, %s114
      %p123 = scmp.eq.s32.totalorder %s26, 0
      %p124 = por %p122, %p123
      %p125 = scmp.ne.s32.totalorder %s113, %s114
      %p126 = scmp.eq.s32.totalorder %s27, 1
      %p127 = por %p125, %p126
      %p129 = scmp.ne.s32.totalorder %s114, %s128
      %p130 = scmp.eq.s32.totalorder %s27, 0
      %p131 = por %p129, %p130
      %s132 = ssub.s32 %s29, %s36
      %p133 = scmp.eq.s32.totalorder %s132, 0
      %s135 = sadd.s32 %s134, 1
      %s136 = scalar_select %p133, %s134, %s135
      %p139 = pneg %p133
      %p140 = scmp.eq.s32.totalorder %s21, 1
      %p141 = por %p139, %p140
      %p142 = scmp.ne.s32.totalorder %s134, %s137
      %p143 = scmp.eq.s32.totalorder %s21, 0
      %p144 = por %p142, %p143
      %p145 = scmp.ne.s32.totalorder %s134, %s137
      %p146 = scmp.eq.s32.totalorder %s26, 1
      %p147 = por %p145, %p146
      %p148 = scmp.ne.s32.totalorder %s137, %s138
      %p149 = scmp.eq.s32.totalorder %s26, 0
      %p150 = por %p148, %p149
      %p151 = scmp.ne.s32.totalorder %s137, %s138
      %p152 = scmp.eq.s32.totalorder %s27, 1
      %p153 = por %p151, %p152
      %p155 = scmp.ne.s32.totalorder %s138, %s154
      %p156 = scmp.eq.s32.totalorder %s27, 0
      %p157 = por %p155, %p156
      %s159 = sadd.s32 %s158, 1
      %p162 = scmp.eq.s32.totalorder %s21, 1
      %p163 = scmp.ne.s32.totalorder %s158, %s160
      %p164 = scmp.eq.s32.totalorder %s21, 0
      %p165 = por %p163, %p164
      %p166 = scmp.ne.s32.totalorder %s158, %s160
      %p167 = scmp.eq.s32.totalorder %s26, 1
      %p168 = por %p166, %p167
      %p169 = scmp.ne.s32.totalorder %s160, %s161
      %p170 = scmp.eq.s32.totalorder %s26, 0
      %p171 = por %p169, %p170
      %p172 = scmp.ne.s32.totalorder %s160, %s161
      %p173 = scmp.eq.s32.totalorder %s27, 1
      %p174 = por %p172, %p173
      %p176 = scmp.ne.s32.totalorder %s161, %s175
      %p177 = scmp.eq.s32.totalorder %s27, 0
      %p178 = por %p176, %p177
      %s180 = sadd.s32 %s179, 1
      %p183 = scmp.eq.s32.totalorder %s21, 1
      %p184 = scmp.ne.s32.totalorder %s179, %s181
      %p185 = scmp.eq.s32.totalorder %s21, 0
      %p186 = por %p184, %p185
      %p187 = scmp.ne.s32.totalorder %s179, %s181
      %p188 = scmp.eq.s32.totalorder %s26, 1
      %p189 = por %p187, %p188
      %p190 = scmp.ne.s32.totalorder %s181, %s182
      %p191 = scmp.eq.s32.totalorder %s26, 0
      %p192 = por %p190, %p191
      %p193 = scmp.ne.s32.totalorder %s181, %s182
      %p194 = scmp.eq.s32.totalorder %s27, 1
      %p195 = por %p193, %p194
      %p197 = scmp.ne.s32.totalorder %s182, %s196
      %p198 = scmp.eq.s32.totalorder %s27, 0
      %p199 = por %p197, %p198
      %s200 = sadd.s32 %s28, %s29
      %s201 = sadd.s32 %s40, %s36
      %s202 = ssub.s32 %s200, %s201
      %p203 = scmp.eq.s32.totalorder %s202, 0
      %s205 = sadd.s32 %s204, 1
      %s206 = scalar_select %p203, %s204, %s205
      %p209 = pneg %p203
      %p210 = scmp.eq.s32.totalorder %s21, 1
      %p211 = por %p209, %p210
      %p212 = scmp.ne.s32.totalorder %s204, %s207
      %p213 = scmp.eq.s32.totalorder %s21, 0
      %p214 = por %p212, %p213
      %p215 = scmp.ne.s32.totalorder %s204, %s207
      %p216 = scmp.eq.s32.totalorder %s26, 1
      %p217 = por %p215, %p216
      %p218 = scmp.ne.s32.totalorder %s207, %s208
      %p219 = scmp.eq.s32.totalorder %s26, 0
      %p220 = por %p218, %p219
      %p221 = scmp.ne.s32.totalorder %s207, %s208
      %p222 = scmp.eq.s32.totalorder %s27, 1
      %p223 = por %p221, %p222
      %p225 = scmp.ne.s32.totalorder %s208, %s224
      %p226 = scmp.eq.s32.totalorder %s27, 0
      %p227 = por %p225, %p226
      %p228 = scmp.le.s32.totalorder 1, %s21
      %p229 = scmp.lt.s32.totalorder %s21, 3
      %p230 = pnand %p228, %p229
      %p231 = pneg %p230
      // Predicated region
      $region9: #{tpu_custom_call.1} parent=5 // pred_check
        _
      $region10: #{tpu_custom_call.1} parent=5 // pred_check_branch
        %233 = sbr.rel (%p230) target = $region12
      $region11: #{tpu_custom_call.1} parent=5 // pred_region
        %s234 = ssub.s32 %s21, 1
        // Predicated region
        $region13: #{tpu_custom_call.1} parent=11 // pred_check
          %p235 = pneg %p82
        $region14: #{tpu_custom_call.1} parent=11 // pred_check_branch
          %237 = sbr.rel (%p235) target = $region16
        $region15: #{tpu_custom_call.1} parent=11 // pred_region
          %s239 = ssub.s32 512, 512
          %240 = vsyncadd [#allocation6], %s239
          %s241 = sshll.u32 [#allocation5], 4
          %s242 = int_to_ptr.vmem [resolvable:$true] %s241
          %247 = dma.hbm_to_vmem [thread:$0]  %s1, 512, %s242, [#allocation6], 128, 128, 8
        $region16: #{tpu_custom_call.1} parent=11 // pred_fallthru
          _
        // Predicated region
        $region17: #{tpu_custom_call.1} parent=11 // pred_check
          %p248 = pneg %p103
        $region18: #{tpu_custom_call.1} parent=11 // pred_check_branch
          %250 = sbr.rel (%p248) target = $region20
        $region19: #{tpu_custom_call.1} parent=11 // pred_region
          _
        $region20: #{tpu_custom_call.1} parent=11 // pred_fallthru
          _
        // Predicated region
        $region21: #{tpu_custom_call.1} parent=11 // pred_check
          %p251 = pneg %p124
        $region22: #{tpu_custom_call.1} parent=11 // pred_check_branch
          %253 = sbr.rel (%p251) target = $region24
        $region23: #{tpu_custom_call.1} parent=11 // pred_region
          %s255 = ssub.s32 2048, 2048
          %256 = vsyncadd [#allocation6], %s255
          %s257 = sshll.u32 [#allocation7], 4
          %s258 = int_to_ptr.vmem [resolvable:$true] %s257
          %263 = dma.hbm_to_vmem [thread:$0]  %s3, 2048, %s258, [#allocation6], 128, 128, 8
        $region24: #{tpu_custom_call.1} parent=11 // pred_fallthru
          _
        // Predicated region
        $region25: #{tpu_custom_call.1} parent=11 // pred_check
          %p264 = pneg %p150
        $region26: #{tpu_custom_call.1} parent=11 // pred_check_branch
          %266 = sbr.rel (%p264) target = $region28
        $region27: #{tpu_custom_call.1} parent=11 // pred_region
          %s267 = smul.u32 4, %s31
          %s269 = ssub.s32 2048, 2048
          %270 = vsyncadd [#allocation9], %s269
          %s271 = smul.addr %s267, 4
          %s272 = smul.addr %s271, 128
          %s273 = scalar_lea.hbm %s4, %s272
          %s274 = sshll.u32 [#allocation8], 4
          %s275 = int_to_ptr.vmem [resolvable:$true] %s274
          %280 = dma.hbm_to_vmem [thread:$0]  %s273, 2048, %s275, [#allocation9], 128, 128, 8
        $region28: #{tpu_custom_call.1} parent=11 // pred_fallthru
          _
        // Predicated region
        $region29: #{tpu_custom_call.1} parent=11 // pred_check
          %p281 = pneg %p171
        $region30: #{tpu_custom_call.1} parent=11 // pred_check_branch
          %283 = sbr.rel (%p281) target = $region32
        $region31: #{tpu_custom_call.1} parent=11 // pred_region
          %s285 = ssub.s32 512, 512
          %286 = vsyncadd [#allocation9], %s285
          %s287 = sshll.u32 [#allocation10], 4
          %s288 = int_to_ptr.vmem [resolvable:$true] %s287
          %293 = dma.hbm_to_vmem [thread:$0]  %s5, 512, %s288, [#allocation9], 128, 128, 8
        $region32: #{tpu_custom_call.1} parent=11 // pred_fallthru
          _
        // Predicated region
        $region33: #{tpu_custom_call.1} parent=11 // pred_check
          %p294 = pneg %p192
        $region34: #{tpu_custom_call.1} parent=11 // pred_check_branch
          %296 = sbr.rel (%p294) target = $region36
        $region35: #{tpu_custom_call.1} parent=11 // pred_region
          _
        $region36: #{tpu_custom_call.1} parent=11 // pred_fallthru
          _
      $region12: #{tpu_custom_call.1} parent=5 // pred_fallthru
        _
      %p297 = scmp.lt.s32.totalorder %s21, 2
      // Predicated region
      $region37: #{tpu_custom_call.1} parent=5 // pred_check
        %p298 = pneg %p297
      $region38: #{tpu_custom_call.1} parent=5 // pred_check_branch
        %300 = sbr.rel (%p298) target = $region40
      $region39: #{tpu_custom_call.1} parent=5 // pred_region
        // Predicated region
        $region41: #{tpu_custom_call.1} parent=39 // pred_check
          %p301 = pneg %p55
        $region42: #{tpu_custom_call.1} parent=39 // pred_check_branch
          %303 = sbr.rel (%p301) target = $region44
        $region43: #{tpu_custom_call.1} parent=39 // pred_region
          %s304 = sand.u32 %s45, 1
          %s305 = scalar_lea.sflag [#allocation3], %s304
          %s306 = sand.u32 %s45, 1
          %s307 = smul.addr %s306, 128
          %s308 = scalar_lea.vmem [#allocation2], %s307
          %s309 = sadd.s32 %s28, %s29
          %s310 = smul.u32 4, %s309
          %s312 = ssub.s32 2048, 2048
          %313 = vsyncadd %s305, %s312
          %s314 = smul.addr %s310, 4
          %s315 = smul.addr %s314, 128
          %s316 = scalar_lea.hbm %s0, %s315
          %s317 = sshll.u32 %s308, 4
          %s318 = int_to_ptr.vmem [resolvable:$true] %s317
          %323 = dma.hbm_to_vmem [thread:$0]  %s316, 2048, %s318, %s305, 128, 128, 8
        $region44: #{tpu_custom_call.1} parent=39 // pred_fallthru
          _
      $region40: #{tpu_custom_call.1} parent=5 // pred_fallthru
        _
      %p324 = scmp.le.s32.totalorder 1, %s21
      %p325 = scmp.lt.s32.totalorder %s21, 3
      %p326 = pnand %p324, %p325
      %p327 = pneg %p326
      // Predicated region
      $region45: #{tpu_custom_call.1} parent=5 // pred_check
        _
      $region46: #{tpu_custom_call.1} parent=5 // pred_check_branch
        %329 = sbr.rel (%p326) target = $region48
      $region47: #{tpu_custom_call.1} parent=5 // pred_region
        %s330 = ssub.s32 %s21, 1
        %s331 = sand.u32 %s48, 1
        %s332 = scalar_lea.sflag [#allocation3], %s331
        %s333 = sand.u32 %s48, 1
        %s334 = smul.addr %s333, 128
        %s335 = scalar_lea.vmem [#allocation2], %s334
        // Predicated region
        $region49: #{tpu_custom_call.1} parent=47 // pred_check
          %p336 = pneg %p61
        $region50: #{tpu_custom_call.1} parent=47 // pred_check_branch
          %338 = sbr.rel (%p336) target = $region52
        $region51: #{tpu_custom_call.1} parent=47 // pred_region
          %339 = dma.done %s332, 2048
        $region52: #{tpu_custom_call.1} parent=47 // pred_fallthru
          _
        // Predicated region
        $region53: #{tpu_custom_call.1} parent=47 // pred_check
          %p340 = pneg %p82
        $region54: #{tpu_custom_call.1} parent=47 // pred_check_branch
          %342 = sbr.rel (%p340) target = $region56
        $region55: #{tpu_custom_call.1} parent=47 // pred_region
          %343 = dma.done [#allocation6], 512
        $region56: #{tpu_custom_call.1} parent=47 // pred_fallthru
          _
        // Predicated region
        $region57: #{tpu_custom_call.1} parent=47 // pred_check
          %p344 = pneg %p124
        $region58: #{tpu_custom_call.1} parent=47 // pred_check_branch
          %346 = sbr.rel (%p344) target = $region60
        $region59: #{tpu_custom_call.1} parent=47 // pred_region
          %347 = dma.done [#allocation6], 2048
        $region60: #{tpu_custom_call.1} parent=47 // pred_fallthru
          _
        // Predicated region
        $region61: #{tpu_custom_call.1} parent=47 // pred_check
          %p348 = pneg %p150
        $region62: #{tpu_custom_call.1} parent=47 // pred_check_branch
          %350 = sbr.rel (%p348) target = $region64
        $region63: #{tpu_custom_call.1} parent=47 // pred_region
          %351 = dma.done [#allocation9], 2048
        $region64: #{tpu_custom_call.1} parent=47 // pred_fallthru
          _
        // Predicated region
        $region65: #{tpu_custom_call.1} parent=47 // pred_check
          %p352 = pneg %p171
        $region66: #{tpu_custom_call.1} parent=47 // pred_check_branch
          %354 = sbr.rel (%p352) target = $region68
        $region67: #{tpu_custom_call.1} parent=47 // pred_region
          %355 = dma.done [#allocation9], 512
        $region68: #{tpu_custom_call.1} parent=47 // pred_fallthru
          _
        %s356 = sand.u32 %s48, 1
        %s357 = scalar_lea.sflag [#allocation3], %s356
        %s358 = sand.u32 %s48, 1
        %s359 = smul.addr %s358, 128
        %s360 = scalar_lea.vmem [#allocation2], %s359
        %p361 = pneg %p61
        %p362 = pneg %p58
        %p363 = pneg %p82
        %p364 = pneg %p79
        %p365 = pneg %p103
        %p366 = pneg %p100
        %p367 = pneg %p124
        %p368 = pneg %p121
        %p369 = pneg %p150
        %p370 = pneg %p147
        %p371 = pneg %p171
        %p372 = pneg %p168
        %p373 = pneg %p192
        %p374 = pneg %p189
        %p375 = pneg %p220
        %p376 = pneg %p217
        %s377 = sand.u32 %s207, 1
        %s378 = scalar_lea.sflag [#allocation4], %s377
        %s379 = sand.u32 %s207, 1
        %s380 = smul.addr %s379, 128
        %s381 = scalar_lea.vmem [#allocation11], %s380
        %s382 = sadd.s32 %s30, %s31
        %s383 = smul.u32 4, %s382
        %s384 = smul.u32 4, %s31
        %s385 = sadd.s32 %s30, %s31
        %s386 = smul.u32 4, %s385
        %v387 = vld [vmem:[%s335] sm:$0xff]
        %v388 = vld [vmem:[%s335 + $0x8] sm:$0xff]
        %v389 = vld [vmem:[%s335 + $0x10] sm:$0xff]
        %v390 = vld [vmem:[%s335 + $0x18] sm:$0xff]
        %v391 = vld [vmem:[%s335 + $0x20] sm:$0xff]
        %v392 = vld [vmem:[%s335 + $0x28] sm:$0xff]
        %v393 = vld [vmem:[%s335 + $0x30] sm:$0xff]
        %v394 = vld [vmem:[%s335 + $0x38] sm:$0xff]
        %v395 = vld [vmem:[%s335 + $0x40] sm:$0xff]
        %v396 = vld [vmem:[%s335 + $0x48] sm:$0xff]
        %v397 = vld [vmem:[%s335 + $0x50] sm:$0xff]
        %v398 = vld [vmem:[%s335 + $0x58] sm:$0xff]
        %v399 = vld [vmem:[%s335 + $0x60] sm:$0xff]
        %v400 = vld [vmem:[%s335 + $0x68] sm:$0xff]
        %v401 = vld [vmem:[%s335 + $0x70] sm:$0xff]
        %v402 = vld [vmem:[%s335 + $0x78] sm:$0xff]
        %v403 = vld [vmem:[#allocation5] sm:$0xff]
        %v404 = vld [vmem:[#allocation5 + $0x8] sm:$0xff]
        %v405 = vld [vmem:[#allocation5 + $0x10] sm:$0xff]
        %v406 = vld [vmem:[#allocation5 + $0x18] sm:$0xff]
        %v407 = vld [vmem:[%s2] sm:$0x1]
        %v409 = vlaneseq
        %v410 = vshrl.u32 %v409, 7
        %v411 = vsub.s32 0, %v410
        %v412 = vrot.slane %v407, %v411
        %vm414 = vcmask 261120
        %v416 = vsel %vm414, %v387, 0
        %v419 = vsel %vm414, %v388, 0
        %v422 = vsel %vm414, %v389, 0
        %v425 = vsel %vm414, %v390, 0
        %v428 = vsel %vm414, %v391, 0
        %v431 = vsel %vm414, %v392, 0
        %v434 = vsel %vm414, %v393, 0
        %v437 = vsel %vm414, %v394, 0
        %v440 = vsel %vm414, %v395, 0
        %v443 = vsel %vm414, %v396, 0
        %v446 = vsel %vm414, %v397, 0
        %v449 = vsel %vm414, %v398, 0
        %v452 = vsel %vm414, %v399, 0
        %v455 = vsel %vm414, %v400, 0
        %v458 = vsel %vm414, %v401, 0
        %v461 = vsel %vm414, %v402, 0
        %463 = vmatprep.subr.mxu0 0.0
        %464 = vmatpush1.msra.mxu0 %v403
        %465 = vmatprep.subr.mxu0 0.0
        %466 = vmatpush1.msra.mxu0 %v404
        %467 = vmatprep.subr.mxu0 0.0
        %468 = vmatpush1.msra.mxu0 %v405
        %469 = vmatprep.subr.mxu0 0.0
        %470 = vmatpush1.msra.mxu0 %v406
        %471 = vmatprep.subr.mxu0 0.0
        %472 = vmatpush1.msra.mxu0 0.0
        %473 = vmatprep.subr.mxu0 0.0
        %474 = vmatpush1.msra.mxu0 0.0
        %475 = vmatprep.subr.mxu0 0.0
        %476 = vmatpush1.msra.mxu0 0.0
        %477 = vmatprep.subr.mxu0 0.0
        %478 = vmatpush1.msra.mxu0 0.0
        %479 = vmatprep.subr.mxu0 0.0
        %480 = vmatpush1.msra.mxu0 0.0
        %481 = vmatprep.subr.mxu0 0.0
        %482 = vmatpush1.msra.mxu0 0.0
        %483 = vmatprep.subr.mxu0 0.0
        %484 = vmatpush1.msra.mxu0 0.0
        %485 = vmatprep.subr.mxu0 0.0
        %486 = vmatpush1.msra.mxu0 0.0
        %487 = vmatprep.subr.mxu0 0.0
        %488 = vmatpush1.msra.mxu0 0.0
        %489 = vmatprep.subr.mxu0 0.0
        %490 = vmatpush1.msra.mxu0 0.0
        %491 = vmatprep.subr.mxu0 0.0
        %492 = vmatpush1.msra.mxu0 0.0
        %493 = vmatprep.subr.mxu0 0.0
        %494 = vmatpush1.msra.mxu0 0.0
        %495 = vmatprep.subr.mxu0 0.0
        %496 = vmatpush1.msra.mxu0 0.0
        %497 = vmatprep.subr.mxu0 0.0
        %498 = vmatpush1.msra.mxu0 0.0
        %499 = vmatprep.subr.mxu0 0.0
        %500 = vmatpush1.msra.mxu0 0.0
        %501 = vmatprep.subr.mxu0 0.0
        %502 = vmatpush1.msra.mxu0 0.0
        %503 = vmatprep.subr.mxu0 0.0
        %504 = vmatpush1.msra.mxu0 0.0
        %505 = vmatprep.subr.mxu0 0.0
        %506 = vmatpush1.msra.mxu0 0.0
        %507 = vmatprep.subr.mxu0 0.0
        %508 = vmatpush1.msra.mxu0 0.0
        %509 = vmatprep.subr.mxu0 0.0
        %510 = vmatpush1.msra.mxu0 0.0
        %511 = vmatprep.subr.mxu0 0.0
        %512 = vmatpush1.msra.mxu0 0.0
        %513 = vmatprep.subr.mxu0 0.0
        %514 = vmatpush1.msra.mxu0 0.0
        %515 = vmatprep.subr.mxu0 0.0
        %516 = vmatpush1.msra.mxu0 0.0
        %517 = vmatprep.subr.mxu0 0.0
        %518 = vmatpush1.msra.mxu0 0.0
        %519 = vmatprep.subr.mxu0 0.0
        %520 = vmatpush1.msra.mxu0 0.0
        %521 = vmatprep.subr.mxu0 0.0
        %522 = vmatpush1.msra.mxu0 0.0
        %523 = vmatprep.subr.mxu0 0.0
        %524 = vmatpush1.msra.mxu0 0.0
        %525 = vmatprep.subr.mxu0 0.0
        %526 = vmatpush1.msra.mxu0 0.0
        %527 = vmatprep.mubr.f32.mxu0 0.0
        %528 = vmatmul.mubr.f32.gmra.mrb[0].mxu0 %v416
        %v529 = vpop.f32.mrb[0].mxu0
        %v530 = vadd.f32 %v412, %v529
        %v531 = vpop.f32.mrb[0].mxu0
        %532 = vmatprep.mubr.f32.mxu0 0.0
        %533 = vmatmul.mubr.f32.gmra.mrb[0].mxu0 %v419
        %v534 = vpop.f32.mrb[0].mxu0
        %v535 = vadd.f32 %v412, %v534
        %v536 = vpop.f32.mrb[0].mxu0
        %537 = vmatprep.mubr.f32.mxu0 0.0
        %538 = vmatmul.mubr.f32.gmra.mrb[0].mxu0 %v422
        %v539 = vpop.f32.mrb[0].mxu0
        %v540 = vadd.f32 %v412, %v539
        %v541 = vpop.f32.mrb[0].mxu0
        %542 = vmatprep.mubr.f32.mxu0 0.0
        %543 = vmatmul.mubr.f32.gmra.mrb[0].mxu0 %v425
        %v544 = vpop.f32.mrb[0].mxu0
        %v545 = vadd.f32 %v412, %v544
        %v546 = vpop.f32.mrb[0].mxu0
        %547 = vmatprep.mubr.f32.mxu0 0.0
        %548 = vmatmul.mubr.f32.gmra.mrb[0].mxu0 %v428
        %v549 = vpop.f32.mrb[0].mxu0
        %v550 = vadd.f32 %v412, %v549
        %v551 = vpop.f32.mrb[0].mxu0
        %552 = vmatprep.mubr.f32.mxu0 0.0
        %553 = vmatmul.mubr.f32.gmra.mrb[0].mxu0 %v431
        %v554 = vpop.f32.mrb[0].mxu0
        %v555 = vadd.f32 %v412, %v554
        %v556 = vpop.f32.mrb[0].mxu0
        %557 = vmatprep.mubr.f32.mxu0 0.0
        %558 = vmatmul.mubr.f32.gmra.mrb[0].mxu0 %v434
        %v559 = vpop.f32.mrb[0].mxu0
        %v560 = vadd.f32 %v412, %v559
        %v561 = vpop.f32.mrb[0].mxu0
        %562 = vmatprep.mubr.f32.mxu0 0.0
        %563 = vmatmul.mubr.f32.gmra.mrb[0].mxu0 %v437
        %v564 = vpop.f32.mrb[0].mxu0
        %v565 = vadd.f32 %v412, %v564
        %v566 = vpop.f32.mrb[0].mxu0
        %567 = vmatprep.mubr.f32.mxu0 0.0
        %568 = vmatmul.mubr.f32.gmra.mrb[0].mxu0 %v440
        %v569 = vpop.f32.mrb[0].mxu0
        %v570 = vadd.f32 %v412, %v569
        %v571 = vpop.f32.mrb[0].mxu0
        %572 = vmatprep.mubr.f32.mxu0 0.0
        %573 = vmatmul.mubr.f32.gmra.mrb[0].mxu0 %v443
        %v574 = vpop.f32.mrb[0].mxu0
        %v575 = vadd.f32 %v412, %v574
        %v576 = vpop.f32.mrb[0].mxu0
        %577 = vmatprep.mubr.f32.mxu0 0.0
        %578 = vmatmul.mubr.f32.gmra.mrb[0].mxu0 %v446
        %v579 = vpop.f32.mrb[0].mxu0
        %v580 = vadd.f32 %v412, %v579
        %v581 = vpop.f32.mrb[0].mxu0
        %582 = vmatprep.mubr.f32.mxu0 0.0
        %583 = vmatmul.mubr.f32.gmra.mrb[0].mxu0 %v449
        %v584 = vpop.f32.mrb[0].mxu0
        %v585 = vadd.f32 %v412, %v584
        %v586 = vpop.f32.mrb[0].mxu0
        %587 = vmatprep.mubr.f32.mxu0 0.0
        %588 = vmatmul.mubr.f32.gmra.mrb[0].mxu0 %v452
        %v589 = vpop.f32.mrb[0].mxu0
        %v590 = vadd.f32 %v412, %v589
        %v591 = vpop.f32.mrb[0].mxu0
        %592 = vmatprep.mubr.f32.mxu0 0.0
        %593 = vmatmul.mubr.f32.gmra.mrb[0].mxu0 %v455
        %v594 = vpop.f32.mrb[0].mxu0
        %v595 = vadd.f32 %v412, %v594
        %v596 = vpop.f32.mrb[0].mxu0
        %597 = vmatprep.mubr.f32.mxu0 0.0
        %598 = vmatmul.mubr.f32.gmra.mrb[0].mxu0 %v458
        %v599 = vpop.f32.mrb[0].mxu0
        %v600 = vadd.f32 %v412, %v599
        %v601 = vpop.f32.mrb[0].mxu0
        %602 = vmatprep.mubr.f32.mxu0 0.0
        %603 = vmatmul.mubr.f32.gmra.mrb[0].mxu0 %v461
        %v604 = vpop.f32.mrb[0].mxu0
        %v605 = vadd.f32 %v412, %v604
        %v606 = vpop.f32.mrb[0].mxu0
        %607 = vdwg.mxu0
        %v608 = vld [vmem:[#allocation7] sm:$0xff]
        %v609 = vld [vmem:[#allocation7 + $0x8] sm:$0xff]
        %v610 = vld [vmem:[#allocation7 + $0x10] sm:$0xff]
        %v611 = vld [vmem:[#allocation7 + $0x18] sm:$0xff]
        %v612 = vld [vmem:[#allocation7 + $0x20] sm:$0xff]
        %v613 = vld [vmem:[#allocation7 + $0x28] sm:$0xff]
        %v614 = vld [vmem:[#allocation7 + $0x30] sm:$0xff]
        %v615 = vld [vmem:[#allocation7 + $0x38] sm:$0xff]
        %v616 = vld [vmem:[#allocation7 + $0x40] sm:$0xff]
        %v617 = vld [vmem:[#allocation7 + $0x48] sm:$0xff]
        %v618 = vld [vmem:[#allocation7 + $0x50] sm:$0xff]
        %v619 = vld [vmem:[#allocation7 + $0x58] sm:$0xff]
        %v620 = vld [vmem:[#allocation7 + $0x60] sm:$0xff]
        %v621 = vld [vmem:[#allocation7 + $0x68] sm:$0xff]
        %v622 = vld [vmem:[#allocation7 + $0x70] sm:$0xff]
        %v623 = vld [vmem:[#allocation7 + $0x78] sm:$0xff]
        %v624 = vld [vmem:[#allocation8] sm:$0xff]
        %v625 = vld [vmem:[#allocation8 + $0x8] sm:$0xff]
        %v626 = vld [vmem:[#allocation8 + $0x10] sm:$0xff]
        %v627 = vld [vmem:[#allocation8 + $0x18] sm:$0xff]
        %v628 = vld [vmem:[#allocation8 + $0x20] sm:$0xff]
        %v629 = vld [vmem:[#allocation8 + $0x28] sm:$0xff]
        %v630 = vld [vmem:[#allocation8 + $0x30] sm:$0xff]
        %v631 = vld [vmem:[#allocation8 + $0x38] sm:$0xff]
        %v632 = vld [vmem:[#allocation8 + $0x40] sm:$0xff]
        %v633 = vld [vmem:[#allocation8 + $0x48] sm:$0xff]
        %v634 = vld [vmem:[#allocation8 + $0x50] sm:$0xff]
        %v635 = vld [vmem:[#allocation8 + $0x58] sm:$0xff]
        %v636 = vld [vmem:[#allocation8 + $0x60] sm:$0xff]
        %v637 = vld [vmem:[#allocation8 + $0x68] sm:$0xff]
        %v638 = vld [vmem:[#allocation8 + $0x70] sm:$0xff]
        %v639 = vld [vmem:[#allocation8 + $0x78] sm:$0xff]
        %644 = vrot.lane.b32.xlu0 %v530, 96
        %v645 = vpop.permute.xlu0 %644
        %646 = vrot.lane.b32.xlu0 %v535, 96
        %v647 = vpop.permute.xlu0 %646
        %648 = vrot.lane.b32.xlu0 %v540, 96
        %v649 = vpop.permute.xlu0 %648
        %650 = vrot.lane.b32.xlu0 %v545, 96
        %v651 = vpop.permute.xlu0 %650
        %vm652 = vcmask 64512
        %v653 = vsel %vm652, %v530, 0
        %v655 = vsel %vm652, %v535, 0
        %v657 = vsel %vm652, %v540, 0
        %v659 = vsel %vm652, %v545, 0
        %v661 = vsel %vm652, %v645, 0
        %v663 = vsel %vm652, %v647, 0
        %v665 = vsel %vm652, %v649, 0
        %v667 = vsel %vm652, %v651, 0
        %669 = vmatprep.subr.mxu0 0.0
        %670 = vmatpush1.xpose.msra.mxu0 %v661
        %671 = vmatprep.subr.mxu0 0.0
        %672 = vmatpush1.xpose.msra.mxu0 %v663
        %673 = vmatprep.subr.mxu0 0.0
        %674 = vmatpush1.xpose.msra.mxu0 %v665
        %675 = vmatprep.subr.mxu0 0.0
        %676 = vmatpush1.xpose.msra.mxu0 %v667
        %677 = vmatprep.subr.mxu0 0.0
        %678 = vmatpush1.xpose.msra.mxu0 0.0
        %679 = vmatprep.subr.mxu0 0.0
        %680 = vmatpush1.xpose.msra.mxu0 0.0
        %681 = vmatprep.subr.mxu0 0.0
        %682 = vmatpush1.xpose.msra.mxu0 0.0
        %683 = vmatprep.subr.mxu0 0.0
        %684 = vmatpush1.xpose.msra.mxu0 0.0
        %685 = vmatprep.subr.mxu0 0.0
        %686 = vmatpush1.xpose.msra.mxu0 0.0
        %687 = vmatprep.subr.mxu0 0.0
        %688 = vmatpush1.xpose.msra.mxu0 0.0
        %689 = vmatprep.subr.mxu0 0.0
        %690 = vmatpush1.xpose.msra.mxu0 0.0
        %691 = vmatprep.subr.mxu0 0.0
        %692 = vmatpush1.xpose.msra.mxu0 0.0
        %693 = vmatprep.subr.mxu0 0.0
        %694 = vmatpush1.xpose.msra.mxu0 0.0
        %695 = vmatprep.subr.mxu0 0.0
        %696 = vmatpush1.xpose.msra.mxu0 0.0
        %697 = vmatprep.subr.mxu0 0.0
        %698 = vmatpush1.xpose.msra.mxu0 0.0
        %699 = vmatprep.subr.mxu0 0.0
        %700 = vmatpush1.xpose.msra.mxu0 0.0
        %701 = vmatprep.subr.mxu0 0.0
        %702 = vmatpush1.xpose.msra.mxu0 0.0
        %703 = vmatprep.subr.mxu0 0.0
        %704 = vmatpush1.xpose.msra.mxu0 0.0
        %705 = vmatprep.subr.mxu0 0.0
        %706 = vmatpush1.xpose.msra.mxu0 0.0
        %707 = vmatprep.subr.mxu0 0.0
        %708 = vmatpush1.xpose.msra.mxu0 0.0
        %709 = vmatprep.subr.mxu0 0.0
        %710 = vmatpush1.xpose.msra.mxu0 0.0
        %711 = vmatprep.subr.mxu0 0.0
        %712 = vmatpush1.xpose.msra.mxu0 0.0
        %713 = vmatprep.subr.mxu0 0.0
        %714 = vmatpush1.xpose.msra.mxu0 0.0
        %715 = vmatprep.subr.mxu0 0.0
        %716 = vmatpush1.xpose.msra.mxu0 0.0
        %717 = vmatprep.subr.mxu0 0.0
        %718 = vmatpush1.xpose.msra.mxu0 0.0
        %719 = vmatprep.subr.mxu0 0.0
        %720 = vmatpush1.xpose.msra.mxu0 0.0
        %721 = vmatprep.subr.mxu0 0.0
        %722 = vmatpush1.xpose.msra.mxu0 0.0
        %723 = vmatprep.subr.mxu0 0.0
        %724 = vmatpush1.xpose.msra.mxu0 0.0
        %725 = vmatprep.subr.mxu0 0.0
        %726 = vmatpush1.xpose.msra.mxu0 0.0
        %727 = vmatprep.subr.mxu0 0.0
        %728 = vmatpush1.xpose.msra.mxu0 0.0
        %729 = vmatprep.subr.mxu0 0.0
        %730 = vmatpush1.xpose.msra.mxu0 0.0
        %731 = vmatprep.subr.mxu0 0.0
        %732 = vmatpush1.xpose.msra.mxu0 0.0
        %733 = vmatprep.mubr.f32.mxu0 0.0
        %734 = vmatmul.mubr.f32.gmra.mrb[0].mxu0 %v653
        %v735 = vpop.f32.mrb[0].mxu0
        %v736 = vadd.f32 %v608, %v735
        %v737 = vpop.f32.mrb[0].mxu0
        %738 = vmatprep.mubr.f32.mxu0 0.0
        %739 = vmatmul.mubr.f32.gmra.mrb[0].mxu0 %v655
        %v740 = vpop.f32.mrb[0].mxu0
        %v741 = vadd.f32 %v609, %v740
        %v742 = vpop.f32.mrb[0].mxu0
        %743 = vmatprep.mubr.f32.mxu0 0.0
        %744 = vmatmul.mubr.f32.gmra.mrb[0].mxu0 %v657
        %v745 = vpop.f32.mrb[0].mxu0
        %v746 = vadd.f32 %v610, %v745
        %v747 = vpop.f32.mrb[0].mxu0
        %748 = vmatprep.mubr.f32.mxu0 0.0
        %749 = vmatmul.mubr.f32.gmra.mrb[0].mxu0 %v659
        %v750 = vpop.f32.mrb[0].mxu0
        %v751 = vadd.f32 %v611, %v750
        %v752 = vpop.f32.mrb[0].mxu0
        %753 = vdwg.mxu0
        %758 = vrot.lane.b32.xlu0 %v550, 96
        %v759 = vpop.permute.xlu0 %758
        %760 = vrot.lane.b32.xlu0 %v555, 96
        %v761 = vpop.permute.xlu0 %760
        %762 = vrot.lane.b32.xlu0 %v560, 96
        %v763 = vpop.permute.xlu0 %762
        %764 = vrot.lane.b32.xlu0 %v565, 96
        %v765 = vpop.permute.xlu0 %764
        %v766 = vsel %vm652, %v550, 0
        %v768 = vsel %vm652, %v555, 0
        %v770 = vsel %vm652, %v560, 0
        %v772 = vsel %vm652, %v565, 0
        %v774 = vsel %vm652, %v759, 0
        %v776 = vsel %vm652, %v761, 0
        %v778 = vsel %vm652, %v763, 0
        %v780 = vsel %vm652, %v765, 0
        %782 = vmatprep.subr.mxu0 0.0
        %783 = vmatpush1.xpose.msra.mxu0 %v774
        %784 = vmatprep.subr.mxu0 0.0
        %785 = vmatpush1.xpose.msra.mxu0 %v776
        %786 = vmatprep.subr.mxu0 0.0
        %787 = vmatpush1.xpose.msra.mxu0 %v778
        %788 = vmatprep.subr.mxu0 0.0
        %789 = vmatpush1.xpose.msra.mxu0 %v780
        %790 = vmatprep.subr.mxu0 0.0
        %791 = vmatpush1.xpose.msra.mxu0 0.0
        %792 = vmatprep.subr.mxu0 0.0
        %793 = vmatpush1.xpose.msra.mxu0 0.0
        %794 = vmatprep.subr.mxu0 0.0
        %795 = vmatpush1.xpose.msra.mxu0 0.0
        %796 = vmatprep.subr.mxu0 0.0
        %797 = vmatpush1.xpose.msra.mxu0 0.0
        %798 = vmatprep.subr.mxu0 0.0
        %799 = vmatpush1.xpose.msra.mxu0 0.0
        %800 = vmatprep.subr.mxu0 0.0
        %801 = vmatpush1.xpose.msra.mxu0 0.0
        %802 = vmatprep.subr.mxu0 0.0
        %803 = vmatpush1.xpose.msra.mxu0 0.0
        %804 = vmatprep.subr.mxu0 0.0
        %805 = vmatpush1.xpose.msra.mxu0 0.0
        %806 = vmatprep.subr.mxu0 0.0
        %807 = vmatpush1.xpose.msra.mxu0 0.0
        %808 = vmatprep.subr.mxu0 0.0
        %809 = vmatpush1.xpose.msra.mxu0 0.0
        %810 = vmatprep.subr.mxu0 0.0
        %811 = vmatpush1.xpose.msra.mxu0 0.0
        %812 = vmatprep.subr.mxu0 0.0
        %813 = vmatpush1.xpose.msra.mxu0 0.0
        %814 = vmatprep.subr.mxu0 0.0
        %815 = vmatpush1.xpose.msra.mxu0 0.0
        %816 = vmatprep.subr.mxu0 0.0
        %817 = vmatpush1.xpose.msra.mxu0 0.0
        %818 = vmatprep.subr.mxu0 0.0
        %819 = vmatpush1.xpose.msra.mxu0 0.0
        %820 = vmatprep.subr.mxu0 0.0
        %821 = vmatpush1.xpose.msra.mxu0 0.0
        %822 = vmatprep.subr.mxu0 0.0
        %823 = vmatpush1.xpose.msra.mxu0 0.0
        %824 = vmatprep.subr.mxu0 0.0
        %825 = vmatpush1.xpose.msra.mxu0 0.0
        %826 = vmatprep.subr.mxu0 0.0
        %827 = vmatpush1.xpose.msra.mxu0 0.0
        %828 = vmatprep.subr.mxu0 0.0
        %829 = vmatpush1.xpose.msra.mxu0 0.0
        %830 = vmatprep.subr.mxu0 0.0
        %831 = vmatpush1.xpose.msra.mxu0 0.0
        %832 = vmatprep.subr.mxu0 0.0
        %833 = vmatpush1.xpose.msra.mxu0 0.0
        %834 = vmatprep.subr.mxu0 0.0
        %835 = vmatpush1.xpose.msra.mxu0 0.0
        %836 = vmatprep.subr.mxu0 0.0
        %837 = vmatpush1.xpose.msra.mxu0 0.0
        %838 = vmatprep.subr.mxu0 0.0
        %839 = vmatpush1.xpose.msra.mxu0 0.0
        %840 = vmatprep.subr.mxu0 0.0
        %841 = vmatpush1.xpose.msra.mxu0 0.0
        %842 = vmatprep.subr.mxu0 0.0
        %843 = vmatpush1.xpose.msra.mxu0 0.0
        %844 = vmatprep.subr.mxu0 0.0
        %845 = vmatpush1.xpose.msra.mxu0 0.0
        %846 = vmatprep.mubr.f32.mxu0 0.0
        %847 = vmatmul.mubr.f32.gmra.mrb[0].mxu0 %v766
        %v848 = vpop.f32.mrb[0].mxu0
        %v849 = vadd.f32 %v608, %v848
        %v850 = vpop.f32.mrb[0].mxu0
        %851 = vmatprep.mubr.f32.mxu0 0.0
        %852 = vmatmul.mubr.f32.gmra.mrb[0].mxu0 %v768
        %v853 = vpop.f32.mrb[0].mxu0
        %v854 = vadd.f32 %v609, %v853
        %v855 = vpop.f32.mrb[0].mxu0
        %856 = vmatprep.mubr.f32.mxu0 0.0
        %857 = vmatmul.mubr.f32.gmra.mrb[0].mxu0 %v770
        %v858 = vpop.f32.mrb[0].mxu0
        %v859 = vadd.f32 %v610, %v858
        %v860 = vpop.f32.mrb[0].mxu0
        %861 = vmatprep.mubr.f32.mxu0 0.0
        %862 = vmatmul.mubr.f32.gmra.mrb[0].mxu0 %v772
        %v863 = vpop.f32.mrb[0].mxu0
        %v864 = vadd.f32 %v611, %v863
        %v865 = vpop.f32.mrb[0].mxu0
        %866 = vdwg.mxu0
        %871 = vrot.lane.b32.xlu0 %v570, 96
        %v872 = vpop.permute.xlu0 %871
        %873 = vrot.lane.b32.xlu0 %v575, 96
        %v874 = vpop.permute.xlu0 %873
        %875 = vrot.lane.b32.xlu0 %v580, 96
        %v876 = vpop.permute.xlu0 %875
        %877 = vrot.lane.b32.xlu0 %v585, 96
        %v878 = vpop.permute.xlu0 %877
        %v879 = vsel %vm652, %v570, 0
        %v881 = vsel %vm652, %v575, 0
        %v883 = vsel %vm652, %v580, 0
        %v885 = vsel %vm652, %v585, 0
        %v887 = vsel %vm652, %v872, 0
        %v889 = vsel %vm652, %v874, 0
        %v891 = vsel %vm652, %v876, 0
        %v893 = vsel %vm652, %v878, 0
        %895 = vmatprep.subr.mxu0 0.0
        %896 = vmatpush1.xpose.msra.mxu0 %v887
        %897 = vmatprep.subr.mxu0 0.0
        %898 = vmatpush1.xpose.msra.mxu0 %v889
        %899 = vmatprep.subr.mxu0 0.0
        %900 = vmatpush1.xpose.msra.mxu0 %v891
        %901 = vmatprep.subr.mxu0 0.0
        %902 = vmatpush1.xpose.msra.mxu0 %v893
        %903 = vmatprep.subr.mxu0 0.0
        %904 = vmatpush1.xpose.msra.mxu0 0.0
        %905 = vmatprep.subr.mxu0 0.0
        %906 = vmatpush1.xpose.msra.mxu0 0.0
        %907 = vmatprep.subr.mxu0 0.0
        %908 = vmatpush1.xpose.msra.mxu0 0.0
        %909 = vmatprep.subr.mxu0 0.0
        %910 = vmatpush1.xpose.msra.mxu0 0.0
        %911 = vmatprep.subr.mxu0 0.0
        %912 = vmatpush1.xpose.msra.mxu0 0.0
        %913 = vmatprep.subr.mxu0 0.0
        %914 = vmatpush1.xpose.msra.mxu0 0.0
        %915 = vmatprep.subr.mxu0 0.0
        %916 = vmatpush1.xpose.msra.mxu0 0.0
        %917 = vmatprep.subr.mxu0 0.0
        %918 = vmatpush1.xpose.msra.mxu0 0.0
        %919 = vmatprep.subr.mxu0 0.0
        %920 = vmatpush1.xpose.msra.mxu0 0.0
        %921 = vmatprep.subr.mxu0 0.0
        %922 = vmatpush1.xpose.msra.mxu0 0.0
        %923 = vmatprep.subr.mxu0 0.0
        %924 = vmatpush1.xpose.msra.mxu0 0.0
        %925 = vmatprep.subr.mxu0 0.0
        %926 = vmatpush1.xpose.msra.mxu0 0.0
        %927 = vmatprep.subr.mxu0 0.0
        %928 = vmatpush1.xpose.msra.mxu0 0.0
        %929 = vmatprep.subr.mxu0 0.0
        %930 = vmatpush1.xpose.msra.mxu0 0.0
        %931 = vmatprep.subr.mxu0 0.0
        %932 = vmatpush1.xpose.msra.mxu0 0.0
        %933 = vmatprep.subr.mxu0 0.0
        %934 = vmatpush1.xpose.msra.mxu0 0.0
        %935 = vmatprep.subr.mxu0 0.0
        %936 = vmatpush1.xpose.msra.mxu0 0.0
        %937 = vmatprep.subr.mxu0 0.0
        %938 = vmatpush1.xpose.msra.mxu0 0.0
        %939 = vmatprep.subr.mxu0 0.0
        %940 = vmatpush1.xpose.msra.mxu0 0.0
        %941 = vmatprep.subr.mxu0 0.0
        %942 = vmatpush1.xpose.msra.mxu0 0.0
        %943 = vmatprep.subr.mxu0 0.0
        %944 = vmatpush1.xpose.msra.mxu0 0.0
        %945 = vmatprep.subr.mxu0 0.0
        %946 = vmatpush1.xpose.msra.mxu0 0.0
        %947 = vmatprep.subr.mxu0 0.0
        %948 = vmatpush1.xpose.msra.mxu0 0.0
        %949 = vmatprep.subr.mxu0 0.0
        %950 = vmatpush1.xpose.msra.mxu0 0.0
        %951 = vmatprep.subr.mxu0 0.0
        %952 = vmatpush1.xpose.msra.mxu0 0.0
        %953 = vmatprep.subr.mxu0 0.0
        %954 = vmatpush1.xpose.msra.mxu0 0.0
        %955 = vmatprep.subr.mxu0 0.0
        %956 = vmatpush1.xpose.msra.mxu0 0.0
        %957 = vmatprep.subr.mxu0 0.0
        %958 = vmatpush1.xpose.msra.mxu0 0.0
        %959 = vmatprep.mubr.f32.mxu0 0.0
        %960 = vmatmul.mubr.f32.gmra.mrb[0].mxu0 %v879
        %v961 = vpop.f32.mrb[0].mxu0
        %v962 = vadd.f32 %v608, %v961
        %v963 = vpop.f32.mrb[0].mxu0
        %964 = vmatprep.mubr.f32.mxu0 0.0
        %965 = vmatmul.mubr.f32.gmra.mrb[0].mxu0 %v881
        %v966 = vpop.f32.mrb[0].mxu0
        %v967 = vadd.f32 %v609, %v966
        %v968 = vpop.f32.mrb[0].mxu0
        %969 = vmatprep.mubr.f32.mxu0 0.0
        %970 = vmatmul.mubr.f32.gmra.mrb[0].mxu0 %v883
        %v971 = vpop.f32.mrb[0].mxu0
        %v972 = vadd.f32 %v610, %v971
        %v973 = vpop.f32.mrb[0].mxu0
        %974 = vmatprep.mubr.f32.mxu0 0.0
        %975 = vmatmul.mubr.f32.gmra.mrb[0].mxu0 %v885
        %v976 = vpop.f32.mrb[0].mxu0
        %v977 = vadd.f32 %v611, %v976
        %v978 = vpop.f32.mrb[0].mxu0
        %979 = vdwg.mxu0
        %984 = vrot.lane.b32.xlu0 %v590, 96
        %v985 = vpop.permute.xlu0 %984
        %986 = vrot.lane.b32.xlu0 %v595, 96
        %v987 = vpop.permute.xlu0 %986
        %988 = vrot.lane.b32.xlu0 %v600, 96
        %v989 = vpop.permute.xlu0 %988
        %990 = vrot.lane.b32.xlu0 %v605, 96
        %v991 = vpop.permute.xlu0 %990
        %v992 = vsel %vm652, %v590, 0
        %v994 = vsel %vm652, %v595, 0
        %v996 = vsel %vm652, %v600, 0
        %v998 = vsel %vm652, %v605, 0
        %v1000 = vsel %vm652, %v985, 0
        %v1002 = vsel %vm652, %v987, 0
        %v1004 = vsel %vm652, %v989, 0
        %v1006 = vsel %vm652, %v991, 0
        %1008 = vmatprep.subr.mxu0 0.0
        %1009 = vmatpush1.xpose.msra.mxu0 %v1000
        %1010 = vmatprep.subr.mxu0 0.0
        %1011 = vmatpush1.xpose.msra.mxu0 %v1002
        %1012 = vmatprep.subr.mxu0 0.0
        %1013 = vmatpush1.xpose.msra.mxu0 %v1004
        %1014 = vmatprep.subr.mxu0 0.0
        %1015 = vmatpush1.xpose.msra.mxu0 %v1006
        %1016 = vmatprep.subr.mxu0 0.0
        %1017 = vmatpush1.xpose.msra.mxu0 0.0
        %1018 = vmatprep.subr.mxu0 0.0
        %1019 = vmatpush1.xpose.msra.mxu0 0.0
        %1020 = vmatprep.subr.mxu0 0.0
        %1021 = vmatpush1.xpose.msra.mxu0 0.0
        %1022 = vmatprep.subr.mxu0 0.0
        %1023 = vmatpush1.xpose.msra.mxu0 0.0
        %1024 = vmatprep.subr.mxu0 0.0
        %1025 = vmatpush1.xpose.msra.mxu0 0.0
        %1026 = vmatprep.subr.mxu0 0.0
        %1027 = vmatpush1.xpose.msra.mxu0 0.0
        %1028 = vmatprep.subr.mxu0 0.0
        %1029 = vmatpush1.xpose.msra.mxu0 0.0
        %1030 = vmatprep.subr.mxu0 0.0
        %1031 = vmatpush1.xpose.msra.mxu0 0.0
        %1032 = vmatprep.subr.mxu0 0.0
        %1033 = vmatpush1.xpose.msra.mxu0 0.0
        %1034 = vmatprep.subr.mxu0 0.0
        %1035 = vmatpush1.xpose.msra.mxu0 0.0
        %1036 = vmatprep.subr.mxu0 0.0
        %1037 = vmatpush1.xpose.msra.mxu0 0.0
        %1038 = vmatprep.subr.mxu0 0.0
        %1039 = vmatpush1.xpose.msra.mxu0 0.0
        %1040 = vmatprep.subr.mxu0 0.0
        %1041 = vmatpush1.xpose.msra.mxu0 0.0
        %1042 = vmatprep.subr.mxu0 0.0
        %1043 = vmatpush1.xpose.msra.mxu0 0.0
        %1044 = vmatprep.subr.mxu0 0.0
        %1045 = vmatpush1.xpose.msra.mxu0 0.0
        %1046 = vmatprep.subr.mxu0 0.0
        %1047 = vmatpush1.xpose.msra.mxu0 0.0
        %1048 = vmatprep.subr.mxu0 0.0
        %1049 = vmatpush1.xpose.msra.mxu0 0.0
        %1050 = vmatprep.subr.mxu0 0.0
        %1051 = vmatpush1.xpose.msra.mxu0 0.0
        %1052 = vmatprep.subr.mxu0 0.0
        %1053 = vmatpush1.xpose.msra.mxu0 0.0
        %1054 = vmatprep.subr.mxu0 0.0
        %1055 = vmatpush1.xpose.msra.mxu0 0.0
        %1056 = vmatprep.subr.mxu0 0.0
        %1057 = vmatpush1.xpose.msra.mxu0 0.0
        %1058 = vmatprep.subr.mxu0 0.0
        %1059 = vmatpush1.xpose.msra.mxu0 0.0
        %1060 = vmatprep.subr.mxu0 0.0
        %1061 = vmatpush1.xpose.msra.mxu0 0.0
        %1062 = vmatprep.subr.mxu0 0.0
        %1063 = vmatpush1.xpose.msra.mxu0 0.0
        %1064 = vmatprep.subr.mxu0 0.0
        %1065 = vmatpush1.xpose.msra.mxu0 0.0
        %1066 = vmatprep.subr.mxu0 0.0
        %1067 = vmatpush1.xpose.msra.mxu0 0.0
        %1068 = vmatprep.subr.mxu0 0.0
        %1069 = vmatpush1.xpose.msra.mxu0 0.0
        %1070 = vmatprep.subr.mxu0 0.0
        %1071 = vmatpush1.xpose.msra.mxu0 0.0
        %1072 = vmatprep.mubr.f32.mxu0 0.0
        %1073 = vmatmul.mubr.f32.gmra.mrb[0].mxu0 %v992
        %v1074 = vpop.f32.mrb[0].mxu0
        %v1075 = vadd.f32 %v608, %v1074
        %v1076 = vpop.f32.mrb[0].mxu0
        %1077 = vmatprep.mubr.f32.mxu0 0.0
        %1078 = vmatmul.mubr.f32.gmra.mrb[0].mxu0 %v994
        %v1079 = vpop.f32.mrb[0].mxu0
        %v1080 = vadd.f32 %v609, %v1079
        %v1081 = vpop.f32.mrb[0].mxu0
        %1082 = vmatprep.mubr.f32.mxu0 0.0
        %1083 = vmatmul.mubr.f32.gmra.mrb[0].mxu0 %v996
        %v1084 = vpop.f32.mrb[0].mxu0
        %v1085 = vadd.f32 %v610, %v1084
        %v1086 = vpop.f32.mrb[0].mxu0
        %1087 = vmatprep.mubr.f32.mxu0 0.0
        %1088 = vmatmul.mubr.f32.gmra.mrb[0].mxu0 %v998
        %v1089 = vpop.f32.mrb[0].mxu0
        %v1090 = vadd.f32 %v611, %v1089
        %v1091 = vpop.f32.mrb[0].mxu0
        %1092 = vdwg.mxu0
        %v1093 = vadd.f32 %v736, %v624
        %v1094 = vadd.f32 %v741, %v625
        %v1095 = vadd.f32 %v746, %v626
        %v1096 = vadd.f32 %v751, %v627
        %v1097 = vadd.f32 %v849, %v628
        %v1098 = vadd.f32 %v854, %v629
        %v1099 = vadd.f32 %v859, %v630
        %v1100 = vadd.f32 %v864, %v631
        %v1101 = vadd.f32 %v962, %v632
        %v1102 = vadd.f32 %v967, %v633
        %v1103 = vadd.f32 %v972, %v634
        %v1104 = vadd.f32 %v977, %v635
        %v1105 = vadd.f32 %v1075, %v636
        %v1106 = vadd.f32 %v1080, %v637
        %v1107 = vadd.f32 %v1085, %v638
        %v1108 = vadd.f32 %v1090, %v639
        %v1109 = vsel %vm414, %v1093, -inf
        %1110 = vmax.xlane.f32.xlu0 %v1109
        %v1111 = vpop.xlane.xlu0 %1110
        %v1112 = vsel %vm414, %v1094, -inf
        %1113 = vmax.xlane.f32.xlu0 %v1112
        %v1114 = vpop.xlane.xlu0 %1113
        %v1115 = vsel %vm414, %v1095, -inf
        %1116 = vmax.xlane.f32.xlu0 %v1115
        %v1117 = vpop.xlane.xlu0 %1116
        %v1118 = vsel %vm414, %v1096, -inf
        %1119 = vmax.xlane.f32.xlu0 %v1118
        %v1120 = vpop.xlane.xlu0 %1119
        %v1121 = vsel %vm414, %v1097, -inf
        %1122 = vmax.xlane.f32.xlu0 %v1121
        %v1123 = vpop.xlane.xlu0 %1122
        %v1124 = vsel %vm414, %v1098, -inf
        %1125 = vmax.xlane.f32.xlu0 %v1124
        %v1126 = vpop.xlane.xlu0 %1125
        %v1127 = vsel %vm414, %v1099, -inf
        %1128 = vmax.xlane.f32.xlu0 %v1127
        %v1129 = vpop.xlane.xlu0 %1128
        %v1130 = vsel %vm414, %v1100, -inf
        %1131 = vmax.xlane.f32.xlu0 %v1130
        %v1132 = vpop.xlane.xlu0 %1131
        %v1133 = vsel %vm414, %v1101, -inf
        %1134 = vmax.xlane.f32.xlu0 %v1133
        %v1135 = vpop.xlane.xlu0 %1134
        %v1136 = vsel %vm414, %v1102, -inf
        %1137 = vmax.xlane.f32.xlu0 %v1136
        %v1138 = vpop.xlane.xlu0 %1137
        %v1139 = vsel %vm414, %v1103, -inf
        %1140 = vmax.xlane.f32.xlu0 %v1139
        %v1141 = vpop.xlane.xlu0 %1140
        %v1142 = vsel %vm414, %v1104, -inf
        %1143 = vmax.xlane.f32.xlu0 %v1142
        %v1144 = vpop.xlane.xlu0 %1143
        %v1145 = vsel %vm414, %v1105, -inf
        %1146 = vmax.xlane.f32.xlu0 %v1145
        %v1147 = vpop.xlane.xlu0 %1146
        %v1148 = vsel %vm414, %v1106, -inf
        %1149 = vmax.xlane.f32.xlu0 %v1148
        %v1150 = vpop.xlane.xlu0 %1149
        %v1151 = vsel %vm414, %v1107, -inf
        %1152 = vmax.xlane.f32.xlu0 %v1151
        %v1153 = vpop.xlane.xlu0 %1152
        %v1154 = vsel %vm414, %v1108, -inf
        %1155 = vmax.xlane.f32.xlu0 %v1154
        %v1156 = vpop.xlane.xlu0 %1155
        %v1157 = vsub.f32 %v1093, %v1111
        %v1158 = vsub.f32 %v1094, %v1114
        %v1159 = vsub.f32 %v1095, %v1117
        %v1160 = vsub.f32 %v1096, %v1120
        %v1161 = vsub.f32 %v1097, %v1123
        %v1162 = vsub.f32 %v1098, %v1126
        %v1163 = vsub.f32 %v1099, %v1129
        %v1164 = vsub.f32 %v1100, %v1132
        %v1165 = vsub.f32 %v1101, %v1135
        %v1166 = vsub.f32 %v1102, %v1138
        %v1167 = vsub.f32 %v1103, %v1141
        %v1168 = vsub.f32 %v1104, %v1144
        %v1169 = vsub.f32 %v1105, %v1147
        %v1170 = vsub.f32 %v1106, %v1150
        %v1171 = vsub.f32 %v1107, %v1153
        %v1172 = vsub.f32 %v1108, %v1156
        %v1173 = vmul.f32 %v1157, 1.442695
        %v1174 = vpow.pop %v1173
        %v1175 = vmul.f32 %v1158, 1.442695
        %v1176 = vpow.pop %v1175
        %v1177 = vmul.f32 %v1159, 1.442695
        %v1178 = vpow.pop %v1177
        %v1179 = vmul.f32 %v1160, 1.442695
        %v1180 = vpow.pop %v1179
        %v1181 = vmul.f32 %v1161, 1.442695
        %v1182 = vpow.pop %v1181
        %v1183 = vmul.f32 %v1162, 1.442695
        %v1184 = vpow.pop %v1183
        %v1185 = vmul.f32 %v1163, 1.442695
        %v1186 = vpow.pop %v1185
        %v1187 = vmul.f32 %v1164, 1.442695
        %v1188 = vpow.pop %v1187
        %v1189 = vmul.f32 %v1165, 1.442695
        %v1190 = vpow.pop %v1189
        %v1191 = vmul.f32 %v1166, 1.442695
        %v1192 = vpow.pop %v1191
        %v1193 = vmul.f32 %v1167, 1.442695
        %v1194 = vpow.pop %v1193
        %v1195 = vmul.f32 %v1168, 1.442695
        %v1196 = vpow.pop %v1195
        %v1197 = vmul.f32 %v1169, 1.442695
        %v1198 = vpow.pop %v1197
        %v1199 = vmul.f32 %v1170, 1.442695
        %v1200 = vpow.pop %v1199
        %v1201 = vmul.f32 %v1171, 1.442695
        %v1202 = vpow.pop %v1201
        %v1203 = vmul.f32 %v1172, 1.442695
        %v1204 = vpow.pop %v1203
        %v1205 = vsel %vm414, %v1174, 0.0
        %1206 = vadd.xlane.f32.xlu0 %v1205
        %v1207 = vpop.xlane.xlu0 %1206
        %v1208 = vsel %vm414, %v1176, 0.0
        %1209 = vadd.xlane.f32.xlu0 %v1208
        %v1210 = vpop.xlane.xlu0 %1209
        %v1211 = vsel %vm414, %v1178, 0.0
        %1212 = vadd.xlane.f32.xlu0 %v1211
        %v1213 = vpop.xlane.xlu0 %1212
        %v1214 = vsel %vm414, %v1180, 0.0
        %1215 = vadd.xlane.f32.xlu0 %v1214
        %v1216 = vpop.xlane.xlu0 %1215
        %v1217 = vsel %vm414, %v1182, 0.0
        %1218 = vadd.xlane.f32.xlu0 %v1217
        %v1219 = vpop.xlane.xlu0 %1218
        %v1220 = vsel %vm414, %v1184, 0.0
        %1221 = vadd.xlane.f32.xlu0 %v1220
        %v1222 = vpop.xlane.xlu0 %1221
        %v1223 = vsel %vm414, %v1186, 0.0
        %1224 = vadd.xlane.f32.xlu0 %v1223
        %v1225 = vpop.xlane.xlu0 %1224
        %v1226 = vsel %vm414, %v1188, 0.0
        %1227 = vadd.xlane.f32.xlu0 %v1226
        %v1228 = vpop.xlane.xlu0 %1227
        %v1229 = vsel %vm414, %v1190, 0.0
        %1230 = vadd.xlane.f32.xlu0 %v1229
        %v1231 = vpop.xlane.xlu0 %1230
        %v1232 = vsel %vm414, %v1192, 0.0
        %1233 = vadd.xlane.f32.xlu0 %v1232
        %v1234 = vpop.xlane.xlu0 %1233
        %v1235 = vsel %vm414, %v1194, 0.0
        %1236 = vadd.xlane.f32.xlu0 %v1235
        %v1237 = vpop.xlane.xlu0 %1236
        %v1238 = vsel %vm414, %v1196, 0.0
        %1239 = vadd.xlane.f32.xlu0 %v1238
        %v1240 = vpop.xlane.xlu0 %1239
        %v1241 = vsel %vm414, %v1198, 0.0
        %1242 = vadd.xlane.f32.xlu0 %v1241
        %v1243 = vpop.xlane.xlu0 %1242
        %v1244 = vsel %vm414, %v1200, 0.0
        %1245 = vadd.xlane.f32.xlu0 %v1244
        %v1246 = vpop.xlane.xlu0 %1245
        %v1247 = vsel %vm414, %v1202, 0.0
        %1248 = vadd.xlane.f32.xlu0 %v1247
        %v1249 = vpop.xlane.xlu0 %1248
        %v1250 = vsel %vm414, %v1204, 0.0
        %1251 = vadd.xlane.f32.xlu0 %v1250
        %v1252 = vpop.xlane.xlu0 %1251
        %v1253 = vrcp.pop %v1207
        %v1254 = vrcp.pop %v1210
        %v1255 = vrcp.pop %v1213
        %v1256 = vrcp.pop %v1216
        %v1257 = vrcp.pop %v1219
        %v1258 = vrcp.pop %v1222
        %v1259 = vrcp.pop %v1225
        %v1260 = vrcp.pop %v1228
        %v1261 = vrcp.pop %v1231
        %v1262 = vrcp.pop %v1234
        %v1263 = vrcp.pop %v1237
        %v1264 = vrcp.pop %v1240
        %v1265 = vrcp.pop %v1243
        %v1266 = vrcp.pop %v1246
        %v1267 = vrcp.pop %v1249
        %v1268 = vrcp.pop %v1252
        %1269 = vrot.lane.b32.xlu0 %v530, 64
        %v1270 = vpop.permute.xlu0 %1269
        %1271 = vrot.lane.b32.xlu0 %v535, 64
        %v1272 = vpop.permute.xlu0 %1271
        %1273 = vrot.lane.b32.xlu0 %v540, 64
        %v1274 = vpop.permute.xlu0 %1273
        %1275 = vrot.lane.b32.xlu0 %v545, 64
        %v1276 = vpop.permute.xlu0 %1275
        %v1282 = vsel %vm414, %v1174, 0
        %v1285 = vsel %vm414, %v1176, 0
        %v1288 = vsel %vm414, %v1178, 0
        %v1291 = vsel %vm414, %v1180, 0
        %1293 = vmatprep.subr.mxu0 0.0
        %1294 = vmatpush1.msra.mxu0 %v1270
        %1295 = vmatprep.subr.mxu0 0.0
        %1296 = vmatpush1.msra.mxu0 %v1272
        %1297 = vmatprep.subr.mxu0 0.0
        %1298 = vmatpush1.msra.mxu0 %v1274
        %1299 = vmatprep.subr.mxu0 0.0
        %1300 = vmatpush1.msra.mxu0 %v1276
        %1301 = vmatprep.subr.mxu0 0.0
        %1302 = vmatpush1.msra.mxu0 0.0
        %1303 = vmatprep.subr.mxu0 0.0
        %1304 = vmatpush1.msra.mxu0 0.0
        %1305 = vmatprep.subr.mxu0 0.0
        %1306 = vmatpush1.msra.mxu0 0.0
        %1307 = vmatprep.subr.mxu0 0.0
        %1308 = vmatpush1.msra.mxu0 0.0
        %1309 = vmatprep.subr.mxu0 0.0
        %1310 = vmatpush1.msra.mxu0 0.0
        %1311 = vmatprep.subr.mxu0 0.0
        %1312 = vmatpush1.msra.mxu0 0.0
        %1313 = vmatprep.subr.mxu0 0.0
        %1314 = vmatpush1.msra.mxu0 0.0
        %1315 = vmatprep.subr.mxu0 0.0
        %1316 = vmatpush1.msra.mxu0 0.0
        %1317 = vmatprep.subr.mxu0 0.0
        %1318 = vmatpush1.msra.mxu0 0.0
        %1319 = vmatprep.subr.mxu0 0.0
        %1320 = vmatpush1.msra.mxu0 0.0
        %1321 = vmatprep.subr.mxu0 0.0
        %1322 = vmatpush1.msra.mxu0 0.0
        %1323 = vmatprep.subr.mxu0 0.0
        %1324 = vmatpush1.msra.mxu0 0.0
        %1325 = vmatprep.subr.mxu0 0.0
        %1326 = vmatpush1.msra.mxu0 0.0
        %1327 = vmatprep.subr.mxu0 0.0
        %1328 = vmatpush1.msra.mxu0 0.0
        %1329 = vmatprep.subr.mxu0 0.0
        %1330 = vmatpush1.msra.mxu0 0.0
        %1331 = vmatprep.subr.mxu0 0.0
        %1332 = vmatpush1.msra.mxu0 0.0
        %1333 = vmatprep.subr.mxu0 0.0
        %1334 = vmatpush1.msra.mxu0 0.0
        %1335 = vmatprep.subr.mxu0 0.0
        %1336 = vmatpush1.msra.mxu0 0.0
        %1337 = vmatprep.subr.mxu0 0.0
        %1338 = vmatpush1.msra.mxu0 0.0
        %1339 = vmatprep.subr.mxu0 0.0
        %1340 = vmatpush1.msra.mxu0 0.0
        %1341 = vmatprep.subr.mxu0 0.0
        %1342 = vmatpush1.msra.mxu0 0.0
        %1343 = vmatprep.subr.mxu0 0.0
        %1344 = vmatpush1.msra.mxu0 0.0
        %1345 = vmatprep.subr.mxu0 0.0
        %1346 = vmatpush1.msra.mxu0 0.0
        %1347 = vmatprep.subr.mxu0 0.0
        %1348 = vmatpush1.msra.mxu0 0.0
        %1349 = vmatprep.subr.mxu0 0.0
        %1350 = vmatpush1.msra.mxu0 0.0
        %1351 = vmatprep.subr.mxu0 0.0
        %1352 = vmatpush1.msra.mxu0 0.0
        %1353 = vmatprep.subr.mxu0 0.0
        %1354 = vmatpush1.msra.mxu0 0.0
        %1355 = vmatprep.subr.mxu0 0.0
        %1356 = vmatpush1.msra.mxu0 0.0
        %1357 = vmatprep.mubr.f32.mxu0 0.0
        %1358 = vmatmul.mubr.f32.gmra.mrb[0].mxu0 %v1282
        %v1359 = vpop.f32.mrb[0].mxu0
        %v1360 = vadd.f32 0.0, %v1359
        %v1361 = vpop.f32.mrb[0].mxu0
        %1362 = vmatprep.mubr.f32.mxu0 0.0
        %1363 = vmatmul.mubr.f32.gmra.mrb[0].mxu0 %v1285
        %v1364 = vpop.f32.mrb[0].mxu0
        %v1365 = vadd.f32 0.0, %v1364
        %v1366 = vpop.f32.mrb[0].mxu0
        %1367 = vmatprep.mubr.f32.mxu0 0.0
        %1368 = vmatmul.mubr.f32.gmra.mrb[0].mxu0 %v1288
        %v1369 = vpop.f32.mrb[0].mxu0
        %v1370 = vadd.f32 0.0, %v1369
        %v1371 = vpop.f32.mrb[0].mxu0
        %1372 = vmatprep.mubr.f32.mxu0 0.0
        %1373 = vmatmul.mubr.f32.gmra.mrb[0].mxu0 %v1291
        %v1374 = vpop.f32.mrb[0].mxu0
        %v1375 = vadd.f32 0.0, %v1374
        %v1376 = vpop.f32.mrb[0].mxu0
        %1377 = vdwg.mxu0
        %1378 = vrot.lane.b32.xlu0 %v550, 64
        %v1379 = vpop.permute.xlu0 %1378
        %1380 = vrot.lane.b32.xlu0 %v555, 64
        %v1381 = vpop.permute.xlu0 %1380
        %1382 = vrot.lane.b32.xlu0 %v560, 64
        %v1383 = vpop.permute.xlu0 %1382
        %1384 = vrot.lane.b32.xlu0 %v565, 64
        %v1385 = vpop.permute.xlu0 %1384
        %v1391 = vsel %vm414, %v1182, 0
        %v1394 = vsel %vm414, %v1184, 0
        %v1397 = vsel %vm414, %v1186, 0
        %v1400 = vsel %vm414, %v1188, 0
        %1402 = vmatprep.subr.mxu0 0.0
        %1403 = vmatpush1.msra.mxu0 %v1379
        %1404 = vmatprep.subr.mxu0 0.0
        %1405 = vmatpush1.msra.mxu0 %v1381
        %1406 = vmatprep.subr.mxu0 0.0
        %1407 = vmatpush1.msra.mxu0 %v1383
        %1408 = vmatprep.subr.mxu0 0.0
        %1409 = vmatpush1.msra.mxu0 %v1385
        %1410 = vmatprep.subr.mxu0 0.0
        %1411 = vmatpush1.msra.mxu0 0.0
        %1412 = vmatprep.subr.mxu0 0.0
        %1413 = vmatpush1.msra.mxu0 0.0
        %1414 = vmatprep.subr.mxu0 0.0
        %1415 = vmatpush1.msra.mxu0 0.0
        %1416 = vmatprep.subr.mxu0 0.0
        %1417 = vmatpush1.msra.mxu0 0.0
        %1418 = vmatprep.subr.mxu0 0.0
        %1419 = vmatpush1.msra.mxu0 0.0
        %1420 = vmatprep.subr.mxu0 0.0
        %1421 = vmatpush1.msra.mxu0 0.0
        %1422 = vmatprep.subr.mxu0 0.0
        %1423 = vmatpush1.msra.mxu0 0.0
        %1424 = vmatprep.subr.mxu0 0.0
        %1425 = vmatpush1.msra.mxu0 0.0
        %1426 = vmatprep.subr.mxu0 0.0
        %1427 = vmatpush1.msra.mxu0 0.0
        %1428 = vmatprep.subr.mxu0 0.0
        %1429 = vmatpush1.msra.mxu0 0.0
        %1430 = vmatprep.subr.mxu0 0.0
        %1431 = vmatpush1.msra.mxu0 0.0
        %1432 = vmatprep.subr.mxu0 0.0
        %1433 = vmatpush1.msra.mxu0 0.0
        %1434 = vmatprep.subr.mxu0 0.0
        %1435 = vmatpush1.msra.mxu0 0.0
        %1436 = vmatprep.subr.mxu0 0.0
        %1437 = vmatpush1.msra.mxu0 0.0
        %1438 = vmatprep.subr.mxu0 0.0
        %1439 = vmatpush1.msra.mxu0 0.0
        %1440 = vmatprep.subr.mxu0 0.0
        %1441 = vmatpush1.msra.mxu0 0.0
        %1442 = vmatprep.subr.mxu0 0.0
        %1443 = vmatpush1.msra.mxu0 0.0
        %1444 = vmatprep.subr.mxu0 0.0
        %1445 = vmatpush1.msra.mxu0 0.0
        %1446 = vmatprep.subr.mxu0 0.0
        %1447 = vmatpush1.msra.mxu0 0.0
        %1448 = vmatprep.subr.mxu0 0.0
        %1449 = vmatpush1.msra.mxu0 0.0
        %1450 = vmatprep.subr.mxu0 0.0
        %1451 = vmatpush1.msra.mxu0 0.0
        %1452 = vmatprep.subr.mxu0 0.0
        %1453 = vmatpush1.msra.mxu0 0.0
        %1454 = vmatprep.subr.mxu0 0.0
        %1455 = vmatpush1.msra.mxu0 0.0
        %1456 = vmatprep.subr.mxu0 0.0
        %1457 = vmatpush1.msra.mxu0 0.0
        %1458 = vmatprep.subr.mxu0 0.0
        %1459 = vmatpush1.msra.mxu0 0.0
        %1460 = vmatprep.subr.mxu0 0.0
        %1461 = vmatpush1.msra.mxu0 0.0
        %1462 = vmatprep.subr.mxu0 0.0
        %1463 = vmatpush1.msra.mxu0 0.0
        %1464 = vmatprep.subr.mxu0 0.0
        %1465 = vmatpush1.msra.mxu0 0.0
        %1466 = vmatprep.mubr.f32.mxu0 0.0
        %1467 = vmatmul.mubr.f32.gmra.mrb[0].mxu0 %v1391
        %v1468 = vpop.f32.mrb[0].mxu0
        %v1469 = vadd.f32 0.0, %v1468
        %v1470 = vpop.f32.mrb[0].mxu0
        %1471 = vmatprep.mubr.f32.mxu0 0.0
        %1472 = vmatmul.mubr.f32.gmra.mrb[0].mxu0 %v1394
        %v1473 = vpop.f32.mrb[0].mxu0
        %v1474 = vadd.f32 0.0, %v1473
        %v1475 = vpop.f32.mrb[0].mxu0
        %1476 = vmatprep.mubr.f32.mxu0 0.0
        %1477 = vmatmul.mubr.f32.gmra.mrb[0].mxu0 %v1397
        %v1478 = vpop.f32.mrb[0].mxu0
        %v1479 = vadd.f32 0.0, %v1478
        %v1480 = vpop.f32.mrb[0].mxu0
        %1481 = vmatprep.mubr.f32.mxu0 0.0
        %1482 = vmatmul.mubr.f32.gmra.mrb[0].mxu0 %v1400
        %v1483 = vpop.f32.mrb[0].mxu0
        %v1484 = vadd.f32 0.0, %v1483
        %v1485 = vpop.f32.mrb[0].mxu0
        %1486 = vdwg.mxu0
        %1487 = vrot.lane.b32.xlu0 %v570, 64
        %v1488 = vpop.permute.xlu0 %1487
        %1489 = vrot.lane.b32.xlu0 %v575, 64
        %v1490 = vpop.permute.xlu0 %1489
        %1491 = vrot.lane.b32.xlu0 %v580, 64
        %v1492 = vpop.permute.xlu0 %1491
        %1493 = vrot.lane.b32.xlu0 %v585, 64
        %v1494 = vpop.permute.xlu0 %1493
        %v1500 = vsel %vm414, %v1190, 0
        %v1503 = vsel %vm414, %v1192, 0
        %v1506 = vsel %vm414, %v1194, 0
        %v1509 = vsel %vm414, %v1196, 0
        %1511 = vmatprep.subr.mxu0 0.0
        %1512 = vmatpush1.msra.mxu0 %v1488
        %1513 = vmatprep.subr.mxu0 0.0
        %1514 = vmatpush1.msra.mxu0 %v1490
        %1515 = vmatprep.subr.mxu0 0.0
        %1516 = vmatpush1.msra.mxu0 %v1492
        %1517 = vmatprep.subr.mxu0 0.0
        %1518 = vmatpush1.msra.mxu0 %v1494
        %1519 = vmatprep.subr.mxu0 0.0
        %1520 = vmatpush1.msra.mxu0 0.0
        %1521 = vmatprep.subr.mxu0 0.0
        %1522 = vmatpush1.msra.mxu0 0.0
        %1523 = vmatprep.subr.mxu0 0.0
        %1524 = vmatpush1.msra.mxu0 0.0
        %1525 = vmatprep.subr.mxu0 0.0
        %1526 = vmatpush1.msra.mxu0 0.0
        %1527 = vmatprep.subr.mxu0 0.0
        %1528 = vmatpush1.msra.mxu0 0.0
        %1529 = vmatprep.subr.mxu0 0.0
        %1530 = vmatpush1.msra.mxu0 0.0
        %1531 = vmatprep.subr.mxu0 0.0
        %1532 = vmatpush1.msra.mxu0 0.0
        %1533 = vmatprep.subr.mxu0 0.0
        %1534 = vmatpush1.msra.mxu0 0.0
        %1535 = vmatprep.subr.mxu0 0.0
        %1536 = vmatpush1.msra.mxu0 0.0
        %1537 = vmatprep.subr.mxu0 0.0
        %1538 = vmatpush1.msra.mxu0 0.0
        %1539 = vmatprep.subr.mxu0 0.0
        %1540 = vmatpush1.msra.mxu0 0.0
        %1541 = vmatprep.subr.mxu0 0.0
        %1542 = vmatpush1.msra.mxu0 0.0
        %1543 = vmatprep.subr.mxu0 0.0
        %1544 = vmatpush1.msra.mxu0 0.0
        %1545 = vmatprep.subr.mxu0 0.0
        %1546 = vmatpush1.msra.mxu0 0.0
        %1547 = vmatprep.subr.mxu0 0.0
        %1548 = vmatpush1.msra.mxu0 0.0
        %1549 = vmatprep.subr.mxu0 0.0
        %1550 = vmatpush1.msra.mxu0 0.0
        %1551 = vmatprep.subr.mxu0 0.0
        %1552 = vmatpush1.msra.mxu0 0.0
        %1553 = vmatprep.subr.mxu0 0.0
        %1554 = vmatpush1.msra.mxu0 0.0
        %1555 = vmatprep.subr.mxu0 0.0
        %1556 = vmatpush1.msra.mxu0 0.0
        %1557 = vmatprep.subr.mxu0 0.0
        %1558 = vmatpush1.msra.mxu0 0.0
        %1559 = vmatprep.subr.mxu0 0.0
        %1560 = vmatpush1.msra.mxu0 0.0
        %1561 = vmatprep.subr.mxu0 0.0
        %1562 = vmatpush1.msra.mxu0 0.0
        %1563 = vmatprep.subr.mxu0 0.0
        %1564 = vmatpush1.msra.mxu0 0.0
        %1565 = vmatprep.subr.mxu0 0.0
        %1566 = vmatpush1.msra.mxu0 0.0
        %1567 = vmatprep.subr.mxu0 0.0
        %1568 = vmatpush1.msra.mxu0 0.0
        %1569 = vmatprep.subr.mxu0 0.0
        %1570 = vmatpush1.msra.mxu0 0.0
        %1571 = vmatprep.subr.mxu0 0.0
        %1572 = vmatpush1.msra.mxu0 0.0
        %1573 = vmatprep.subr.mxu0 0.0
        %1574 = vmatpush1.msra.mxu0 0.0
        %1575 = vmatprep.mubr.f32.mxu0 0.0
        %1576 = vmatmul.mubr.f32.gmra.mrb[0].mxu0 %v1500
        %v1577 = vpop.f32.mrb[0].mxu0
        %v1578 = vadd.f32 0.0, %v1577
        %v1579 = vpop.f32.mrb[0].mxu0
        %1580 = vmatprep.mubr.f32.mxu0 0.0
        %1581 = vmatmul.mubr.f32.gmra.mrb[0].mxu0 %v1503
        %v1582 = vpop.f32.mrb[0].mxu0
        %v1583 = vadd.f32 0.0, %v1582
        %v1584 = vpop.f32.mrb[0].mxu0
        %1585 = vmatprep.mubr.f32.mxu0 0.0
        %1586 = vmatmul.mubr.f32.gmra.mrb[0].mxu0 %v1506
        %v1587 = vpop.f32.mrb[0].mxu0
        %v1588 = vadd.f32 0.0, %v1587
        %v1589 = vpop.f32.mrb[0].mxu0
        %1590 = vmatprep.mubr.f32.mxu0 0.0
        %1591 = vmatmul.mubr.f32.gmra.mrb[0].mxu0 %v1509
        %v1592 = vpop.f32.mrb[0].mxu0
        %v1593 = vadd.f32 0.0, %v1592
        %v1594 = vpop.f32.mrb[0].mxu0
        %1595 = vdwg.mxu0
        %1596 = vrot.lane.b32.xlu0 %v590, 64
        %v1597 = vpop.permute.xlu0 %1596
        %1598 = vrot.lane.b32.xlu0 %v595, 64
        %v1599 = vpop.permute.xlu0 %1598
        %1600 = vrot.lane.b32.xlu0 %v600, 64
        %v1601 = vpop.permute.xlu0 %1600
        %1602 = vrot.lane.b32.xlu0 %v605, 64
        %v1603 = vpop.permute.xlu0 %1602
        %v1609 = vsel %vm414, %v1198, 0
        %v1612 = vsel %vm414, %v1200, 0
        %v1615 = vsel %vm414, %v1202, 0
        %v1618 = vsel %vm414, %v1204, 0
        %1620 = vmatprep.subr.mxu0 0.0
        %1621 = vmatpush1.msra.mxu0 %v1597
        %1622 = vmatprep.subr.mxu0 0.0
        %1623 = vmatpush1.msra.mxu0 %v1599
        %1624 = vmatprep.subr.mxu0 0.0
        %1625 = vmatpush1.msra.mxu0 %v1601
        %1626 = vmatprep.subr.mxu0 0.0
        %1627 = vmatpush1.msra.mxu0 %v1603
        %1628 = vmatprep.subr.mxu0 0.0
        %1629 = vmatpush1.msra.mxu0 0.0
        %1630 = vmatprep.subr.mxu0 0.0
        %1631 = vmatpush1.msra.mxu0 0.0
        %1632 = vmatprep.subr.mxu0 0.0
        %1633 = vmatpush1.msra.mxu0 0.0
        %1634 = vmatprep.subr.mxu0 0.0
        %1635 = vmatpush1.msra.mxu0 0.0
        %1636 = vmatprep.subr.mxu0 0.0
        %1637 = vmatpush1.msra.mxu0 0.0
        %1638 = vmatprep.subr.mxu0 0.0
        %1639 = vmatpush1.msra.mxu0 0.0
        %1640 = vmatprep.subr.mxu0 0.0
        %1641 = vmatpush1.msra.mxu0 0.0
        %1642 = vmatprep.subr.mxu0 0.0
        %1643 = vmatpush1.msra.mxu0 0.0
        %1644 = vmatprep.subr.mxu0 0.0
        %1645 = vmatpush1.msra.mxu0 0.0
        %1646 = vmatprep.subr.mxu0 0.0
        %1647 = vmatpush1.msra.mxu0 0.0
        %1648 = vmatprep.subr.mxu0 0.0
        %1649 = vmatpush1.msra.mxu0 0.0
        %1650 = vmatprep.subr.mxu0 0.0
        %1651 = vmatpush1.msra.mxu0 0.0
        %1652 = vmatprep.subr.mxu0 0.0
        %1653 = vmatpush1.msra.mxu0 0.0
        %1654 = vmatprep.subr.mxu0 0.0
        %1655 = vmatpush1.msra.mxu0 0.0
        %1656 = vmatprep.subr.mxu0 0.0
        %1657 = vmatpush1.msra.mxu0 0.0
        %1658 = vmatprep.subr.mxu0 0.0
        %1659 = vmatpush1.msra.mxu0 0.0
        %1660 = vmatprep.subr.mxu0 0.0
        %1661 = vmatpush1.msra.mxu0 0.0
        %1662 = vmatprep.subr.mxu0 0.0
        %1663 = vmatpush1.msra.mxu0 0.0
        %1664 = vmatprep.subr.mxu0 0.0
        %1665 = vmatpush1.msra.mxu0 0.0
        %1666 = vmatprep.subr.mxu0 0.0
        %1667 = vmatpush1.msra.mxu0 0.0
        %1668 = vmatprep.subr.mxu0 0.0
        %1669 = vmatpush1.msra.mxu0 0.0
        %1670 = vmatprep.subr.mxu0 0.0
        %1671 = vmatpush1.msra.mxu0 0.0
        %1672 = vmatprep.subr.mxu0 0.0
        %1673 = vmatpush1.msra.mxu0 0.0
        %1674 = vmatprep.subr.mxu0 0.0
        %1675 = vmatpush1.msra.mxu0 0.0
        %1676 = vmatprep.subr.mxu0 0.0
        %1677 = vmatpush1.msra.mxu0 0.0
        %1678 = vmatprep.subr.mxu0 0.0
        %1679 = vmatpush1.msra.mxu0 0.0
        %1680 = vmatprep.subr.mxu0 0.0
        %1681 = vmatpush1.msra.mxu0 0.0
        %1682 = vmatprep.subr.mxu0 0.0
        %1683 = vmatpush1.msra.mxu0 0.0
        %1684 = vmatprep.mubr.f32.mxu0 0.0
        %1685 = vmatmul.mubr.f32.gmra.mrb[0].mxu0 %v1609
        %v1686 = vpop.f32.mrb[0].mxu0
        %v1687 = vadd.f32 0.0, %v1686
        %v1688 = vpop.f32.mrb[0].mxu0
        %1689 = vmatprep.mubr.f32.mxu0 0.0
        %1690 = vmatmul.mubr.f32.gmra.mrb[0].mxu0 %v1612
        %v1691 = vpop.f32.mrb[0].mxu0
        %v1692 = vadd.f32 0.0, %v1691
        %v1693 = vpop.f32.mrb[0].mxu0
        %1694 = vmatprep.mubr.f32.mxu0 0.0
        %1695 = vmatmul.mubr.f32.gmra.mrb[0].mxu0 %v1615
        %v1696 = vpop.f32.mrb[0].mxu0
        %v1697 = vadd.f32 0.0, %v1696
        %v1698 = vpop.f32.mrb[0].mxu0
        %1699 = vmatprep.mubr.f32.mxu0 0.0
        %1700 = vmatmul.mubr.f32.gmra.mrb[0].mxu0 %v1618
        %v1701 = vpop.f32.mrb[0].mxu0
        %v1702 = vadd.f32 0.0, %v1701
        %v1703 = vpop.f32.mrb[0].mxu0
        %1704 = vdwg.mxu0
        %v1705 = vmul.f32 %v1360, %v1253
        %v1706 = vmul.f32 %v1365, %v1254
        %v1707 = vmul.f32 %v1370, %v1255
        %v1708 = vmul.f32 %v1375, %v1256
        %v1709 = vmul.f32 %v1469, %v1257
        %v1710 = vmul.f32 %v1474, %v1258
        %v1711 = vmul.f32 %v1479, %v1259
        %v1712 = vmul.f32 %v1484, %v1260
        %v1713 = vmul.f32 %v1578, %v1261
        %v1714 = vmul.f32 %v1583, %v1262
        %v1715 = vmul.f32 %v1588, %v1263
        %v1716 = vmul.f32 %v1593, %v1264
        %v1717 = vmul.f32 %v1687, %v1265
        %v1718 = vmul.f32 %v1692, %v1266
        %v1719 = vmul.f32 %v1697, %v1267
        %v1720 = vmul.f32 %v1702, %v1268
        %v1721 = vld [vmem:[#allocation10] sm:$0xff]
        %1722 = vrot.lane.b32.xlu0 %v530, 120
        %v1723 = vpop.permute.xlu0 %1722
        %1724 = vrot.lane.b32.xlu0 %v535, 120
        %v1725 = vpop.permute.xlu0 %1724
        %1726 = vrot.lane.b32.xlu0 %v540, 120
        %v1727 = vpop.permute.xlu0 %1726
        %1728 = vrot.lane.b32.xlu0 %v545, 120
        %v1729 = vpop.permute.xlu0 %1728
        %1730 = vrot.lane.b32.xlu0 %v530, 88
        %v1731 = vpop.permute.xlu0 %1730
        %1732 = vrot.lane.b32.xlu0 %v535, 88
        %v1733 = vpop.permute.xlu0 %1732
        %1734 = vrot.lane.b32.xlu0 %v540, 88
        %v1735 = vpop.permute.xlu0 %1734
        %1736 = vrot.lane.b32.xlu0 %v545, 88
        %v1737 = vpop.permute.xlu0 %1736
        %v1738 = vsel %vm652, %v1723, 0
        %v1740 = vsel %vm652, %v1725, 0
        %v1742 = vsel %vm652, %v1727, 0
        %v1744 = vsel %vm652, %v1729, 0
        %v1746 = vsel %vm652, %v1731, 0
        %v1748 = vsel %vm652, %v1733, 0
        %v1750 = vsel %vm652, %v1735, 0
        %v1752 = vsel %vm652, %v1737, 0
        %1754 = vmatprep.subr.mxu0 0.0
        %1755 = vmatpush1.xpose.msra.mxu0 %v1746
        %1756 = vmatprep.subr.mxu0 0.0
        %1757 = vmatpush1.xpose.msra.mxu0 %v1748
        %1758 = vmatprep.subr.mxu0 0.0
        %1759 = vmatpush1.xpose.msra.mxu0 %v1750
        %1760 = vmatprep.subr.mxu0 0.0
        %1761 = vmatpush1.xpose.msra.mxu0 %v1752
        %1762 = vmatprep.subr.mxu0 0.0
        %1763 = vmatpush1.xpose.msra.mxu0 0.0
        %1764 = vmatprep.subr.mxu0 0.0
        %1765 = vmatpush1.xpose.msra.mxu0 0.0
        %1766 = vmatprep.subr.mxu0 0.0
        %1767 = vmatpush1.xpose.msra.mxu0 0.0
        %1768 = vmatprep.subr.mxu0 0.0
        %1769 = vmatpush1.xpose.msra.mxu0 0.0
        %1770 = vmatprep.subr.mxu0 0.0
        %1771 = vmatpush1.xpose.msra.mxu0 0.0
        %1772 = vmatprep.subr.mxu0 0.0
        %1773 = vmatpush1.xpose.msra.mxu0 0.0
        %1774 = vmatprep.subr.mxu0 0.0
        %1775 = vmatpush1.xpose.msra.mxu0 0.0
        %1776 = vmatprep.subr.mxu0 0.0
        %1777 = vmatpush1.xpose.msra.mxu0 0.0
        %1778 = vmatprep.subr.mxu0 0.0
        %1779 = vmatpush1.xpose.msra.mxu0 0.0
        %1780 = vmatprep.subr.mxu0 0.0
        %1781 = vmatpush1.xpose.msra.mxu0 0.0
        %1782 = vmatprep.subr.mxu0 0.0
        %1783 = vmatpush1.xpose.msra.mxu0 0.0
        %1784 = vmatprep.subr.mxu0 0.0
        %1785 = vmatpush1.xpose.msra.mxu0 0.0
        %1786 = vmatprep.subr.mxu0 0.0
        %1787 = vmatpush1.xpose.msra.mxu0 0.0
        %1788 = vmatprep.subr.mxu0 0.0
        %1789 = vmatpush1.xpose.msra.mxu0 0.0
        %1790 = vmatprep.subr.mxu0 0.0
        %1791 = vmatpush1.xpose.msra.mxu0 0.0
        %1792 = vmatprep.subr.mxu0 0.0
        %1793 = vmatpush1.xpose.msra.mxu0 0.0
        %1794 = vmatprep.subr.mxu0 0.0
        %1795 = vmatpush1.xpose.msra.mxu0 0.0
        %1796 = vmatprep.subr.mxu0 0.0
        %1797 = vmatpush1.xpose.msra.mxu0 0.0
        %1798 = vmatprep.subr.mxu0 0.0
        %1799 = vmatpush1.xpose.msra.mxu0 0.0
        %1800 = vmatprep.subr.mxu0 0.0
        %1801 = vmatpush1.xpose.msra.mxu0 0.0
        %1802 = vmatprep.subr.mxu0 0.0
        %1803 = vmatpush1.xpose.msra.mxu0 0.0
        %1804 = vmatprep.subr.mxu0 0.0
        %1805 = vmatpush1.xpose.msra.mxu0 0.0
        %1806 = vmatprep.subr.mxu0 0.0
        %1807 = vmatpush1.xpose.msra.mxu0 0.0
        %1808 = vmatprep.subr.mxu0 0.0
        %1809 = vmatpush1.xpose.msra.mxu0 0.0
        %1810 = vmatprep.subr.mxu0 0.0
        %1811 = vmatpush1.xpose.msra.mxu0 0.0
        %1812 = vmatprep.subr.mxu0 0.0
        %1813 = vmatpush1.xpose.msra.mxu0 0.0
        %1814 = vmatprep.subr.mxu0 0.0
        %1815 = vmatpush1.xpose.msra.mxu0 0.0
        %1816 = vmatprep.subr.mxu0 0.0
        %1817 = vmatpush1.xpose.msra.mxu0 0.0
        %1818 = vmatprep.mubr.f32.mxu0 0.0
        %1819 = vmatmul.mubr.f32.gmra.mrb[0].mxu0 %v1738
        %v1820 = vpop.f32.mrb[0].mxu0
        %v1821 = vadd.f32 %v612, %v1820
        %v1822 = vpop.f32.mrb[0].mxu0
        %1823 = vmatprep.mubr.f32.mxu0 0.0
        %1824 = vmatmul.mubr.f32.gmra.mrb[0].mxu0 %v1740
        %v1825 = vpop.f32.mrb[0].mxu0
        %v1826 = vadd.f32 %v613, %v1825
        %v1827 = vpop.f32.mrb[0].mxu0
        %1828 = vmatprep.mubr.f32.mxu0 0.0
        %1829 = vmatmul.mubr.f32.gmra.mrb[0].mxu0 %v1742
        %v1830 = vpop.f32.mrb[0].mxu0
        %v1831 = vadd.f32 %v614, %v1830
        %v1832 = vpop.f32.mrb[0].mxu0
        %1833 = vmatprep.mubr.f32.mxu0 0.0
        %1834 = vmatmul.mubr.f32.gmra.mrb[0].mxu0 %v1744
        %v1835 = vpop.f32.mrb[0].mxu0
        %v1836 = vadd.f32 %v615, %v1835
        %v1837 = vpop.f32.mrb[0].mxu0
        %1838 = vdwg.mxu0
        %1839 = vrot.lane.b32.xlu0 %v550, 120
        %v1840 = vpop.permute.xlu0 %1839
        %1841 = vrot.lane.b32.xlu0 %v555, 120
        %v1842 = vpop.permute.xlu0 %1841
        %1843 = vrot.lane.b32.xlu0 %v560, 120
        %v1844 = vpop.permute.xlu0 %1843
        %1845 = vrot.lane.b32.xlu0 %v565, 120
        %v1846 = vpop.permute.xlu0 %1845
        %1847 = vrot.lane.b32.xlu0 %v550, 88
        %v1848 = vpop.permute.xlu0 %1847
        %1849 = vrot.lane.b32.xlu0 %v555, 88
        %v1850 = vpop.permute.xlu0 %1849
        %1851 = vrot.lane.b32.xlu0 %v560, 88
        %v1852 = vpop.permute.xlu0 %1851
        %1853 = vrot.lane.b32.xlu0 %v565, 88
        %v1854 = vpop.permute.xlu0 %1853
        %v1855 = vsel %vm652, %v1840, 0
        %v1857 = vsel %vm652, %v1842, 0
        %v1859 = vsel %vm652, %v1844, 0
        %v1861 = vsel %vm652, %v1846, 0
        %v1863 = vsel %vm652, %v1848, 0
        %v1865 = vsel %vm652, %v1850, 0
        %v1867 = vsel %vm652, %v1852, 0
        %v1869 = vsel %vm652, %v1854, 0
        %1871 = vmatprep.subr.mxu0 0.0
        %1872 = vmatpush1.xpose.msra.mxu0 %v1863
        %1873 = vmatprep.subr.mxu0 0.0
        %1874 = vmatpush1.xpose.msra.mxu0 %v1865
        %1875 = vmatprep.subr.mxu0 0.0
        %1876 = vmatpush1.xpose.msra.mxu0 %v1867
        %1877 = vmatprep.subr.mxu0 0.0
        %1878 = vmatpush1.xpose.msra.mxu0 %v1869
        %1879 = vmatprep.subr.mxu0 0.0
        %1880 = vmatpush1.xpose.msra.mxu0 0.0
        %1881 = vmatprep.subr.mxu0 0.0
        %1882 = vmatpush1.xpose.msra.mxu0 0.0
        %1883 = vmatprep.subr.mxu0 0.0
        %1884 = vmatpush1.xpose.msra.mxu0 0.0
        %1885 = vmatprep.subr.mxu0 0.0
        %1886 = vmatpush1.xpose.msra.mxu0 0.0
        %1887 = vmatprep.subr.mxu0 0.0
        %1888 = vmatpush1.xpose.msra.mxu0 0.0
        %1889 = vmatprep.subr.mxu0 0.0
        %1890 = vmatpush1.xpose.msra.mxu0 0.0
        %1891 = vmatprep.subr.mxu0 0.0
        %1892 = vmatpush1.xpose.msra.mxu0 0.0
        %1893 = vmatprep.subr.mxu0 0.0
        %1894 = vmatpush1.xpose.msra.mxu0 0.0
        %1895 = vmatprep.subr.mxu0 0.0
        %1896 = vmatpush1.xpose.msra.mxu0 0.0
        %1897 = vmatprep.subr.mxu0 0.0
        %1898 = vmatpush1.xpose.msra.mxu0 0.0
        %1899 = vmatprep.subr.mxu0 0.0
        %1900 = vmatpush1.xpose.msra.mxu0 0.0
        %1901 = vmatprep.subr.mxu0 0.0
        %1902 = vmatpush1.xpose.msra.mxu0 0.0
        %1903 = vmatprep.subr.mxu0 0.0
        %1904 = vmatpush1.xpose.msra.mxu0 0.0
        %1905 = vmatprep.subr.mxu0 0.0
        %1906 = vmatpush1.xpose.msra.mxu0 0.0
        %1907 = vmatprep.subr.mxu0 0.0
        %1908 = vmatpush1.xpose.msra.mxu0 0.0
        %1909 = vmatprep.subr.mxu0 0.0
        %1910 = vmatpush1.xpose.msra.mxu0 0.0
        %1911 = vmatprep.subr.mxu0 0.0
        %1912 = vmatpush1.xpose.msra.mxu0 0.0
        %1913 = vmatprep.subr.mxu0 0.0
        %1914 = vmatpush1.xpose.msra.mxu0 0.0
        %1915 = vmatprep.subr.mxu0 0.0
        %1916 = vmatpush1.xpose.msra.mxu0 0.0
        %1917 = vmatprep.subr.mxu0 0.0
        %1918 = vmatpush1.xpose.msra.mxu0 0.0
        %1919 = vmatprep.subr.mxu0 0.0
        %1920 = vmatpush1.xpose.msra.mxu0 0.0
        %1921 = vmatprep.subr.mxu0 0.0
        %1922 = vmatpush1.xpose.msra.mxu0 0.0
        %1923 = vmatprep.subr.mxu0 0.0
        %1924 = vmatpush1.xpose.msra.mxu0 0.0
        %1925 = vmatprep.subr.mxu0 0.0
        %1926 = vmatpush1.xpose.msra.mxu0 0.0
        %1927 = vmatprep.subr.mxu0 0.0
        %1928 = vmatpush1.xpose.msra.mxu0 0.0
        %1929 = vmatprep.subr.mxu0 0.0
        %1930 = vmatpush1.xpose.msra.mxu0 0.0
        %1931 = vmatprep.subr.mxu0 0.0
        %1932 = vmatpush1.xpose.msra.mxu0 0.0
        %1933 = vmatprep.subr.mxu0 0.0
        %1934 = vmatpush1.xpose.msra.mxu0 0.0
        %1935 = vmatprep.mubr.f32.mxu0 0.0
        %1936 = vmatmul.mubr.f32.gmra.mrb[0].mxu0 %v1855
        %v1937 = vpop.f32.mrb[0].mxu0
        %v1938 = vadd.f32 %v612, %v1937
        %v1939 = vpop.f32.mrb[0].mxu0
        %1940 = vmatprep.mubr.f32.mxu0 0.0
        %1941 = vmatmul.mubr.f32.gmra.mrb[0].mxu0 %v1857
        %v1942 = vpop.f32.mrb[0].mxu0
        %v1943 = vadd.f32 %v613, %v1942
        %v1944 = vpop.f32.mrb[0].mxu0
        %1945 = vmatprep.mubr.f32.mxu0 0.0
        %1946 = vmatmul.mubr.f32.gmra.mrb[0].mxu0 %v1859
        %v1947 = vpop.f32.mrb[0].mxu0
        %v1948 = vadd.f32 %v614, %v1947
        %v1949 = vpop.f32.mrb[0].mxu0
        %1950 = vmatprep.mubr.f32.mxu0 0.0
        %1951 = vmatmul.mubr.f32.gmra.mrb[0].mxu0 %v1861
        %v1952 = vpop.f32.mrb[0].mxu0
        %v1953 = vadd.f32 %v615, %v1952
        %v1954 = vpop.f32.mrb[0].mxu0
        %1955 = vdwg.mxu0
        %1956 = vrot.lane.b32.xlu0 %v570, 120
        %v1957 = vpop.permute.xlu0 %1956
        %1958 = vrot.lane.b32.xlu0 %v575, 120
        %v1959 = vpop.permute.xlu0 %1958
        %1960 = vrot.lane.b32.xlu0 %v580, 120
        %v1961 = vpop.permute.xlu0 %1960
        %1962 = vrot.lane.b32.xlu0 %v585, 120
        %v1963 = vpop.permute.xlu0 %1962
        %1964 = vrot.lane.b32.xlu0 %v570, 88
        %v1965 = vpop.permute.xlu0 %1964
        %1966 = vrot.lane.b32.xlu0 %v575, 88
        %v1967 = vpop.permute.xlu0 %1966
        %1968 = vrot.lane.b32.xlu0 %v580, 88
        %v1969 = vpop.permute.xlu0 %1968
        %1970 = vrot.lane.b32.xlu0 %v585, 88
        %v1971 = vpop.permute.xlu0 %1970
        %v1972 = vsel %vm652, %v1957, 0
        %v1974 = vsel %vm652, %v1959, 0
        %v1976 = vsel %vm652, %v1961, 0
        %v1978 = vsel %vm652, %v1963, 0
        %v1980 = vsel %vm652, %v1965, 0
        %v1982 = vsel %vm652, %v1967, 0
        %v1984 = vsel %vm652, %v1969, 0
        %v1986 = vsel %vm652, %v1971, 0
        %1988 = vmatprep.subr.mxu0 0.0
        %1989 = vmatpush1.xpose.msra.mxu0 %v1980
        %1990 = vmatprep.subr.mxu0 0.0
        %1991 = vmatpush1.xpose.msra.mxu0 %v1982
        %1992 = vmatprep.subr.mxu0 0.0
        %1993 = vmatpush1.xpose.msra.mxu0 %v1984
        %1994 = vmatprep.subr.mxu0 0.0
        %1995 = vmatpush1.xpose.msra.mxu0 %v1986
        %1996 = vmatprep.subr.mxu0 0.0
        %1997 = vmatpush1.xpose.msra.mxu0 0.0
        %1998 = vmatprep.subr.mxu0 0.0
        %1999 = vmatpush1.xpose.msra.mxu0 0.0
        %2000 = vmatprep.subr.mxu0 0.0
        %2001 = vmatpush1.xpose.msra.mxu0 0.0
        %2002 = vmatprep.subr.mxu0 0.0
        %2003 = vmatpush1.xpose.msra.mxu0 0.0
        %2004 = vmatprep.subr.mxu0 0.0
        %2005 = vmatpush1.xpose.msra.mxu0 0.0
        %2006 = vmatprep.subr.mxu0 0.0
        %2007 = vmatpush1.xpose.msra.mxu0 0.0
        %2008 = vmatprep.subr.mxu0 0.0
        %2009 = vmatpush1.xpose.msra.mxu0 0.0
        %2010 = vmatprep.subr.mxu0 0.0
        %2011 = vmatpush1.xpose.msra.mxu0 0.0
        %2012 = vmatprep.subr.mxu0 0.0
        %2013 = vmatpush1.xpose.msra.mxu0 0.0
        %2014 = vmatprep.subr.mxu0 0.0
        %2015 = vmatpush1.xpose.msra.mxu0 0.0
        %2016 = vmatprep.subr.mxu0 0.0
        %2017 = vmatpush1.xpose.msra.mxu0 0.0
        %2018 = vmatprep.subr.mxu0 0.0
        %2019 = vmatpush1.xpose.msra.mxu0 0.0
        %2020 = vmatprep.subr.mxu0 0.0
        %2021 = vmatpush1.xpose.msra.mxu0 0.0
        %2022 = vmatprep.subr.mxu0 0.0
        %2023 = vmatpush1.xpose.msra.mxu0 0.0
        %2024 = vmatprep.subr.mxu0 0.0
        %2025 = vmatpush1.xpose.msra.mxu0 0.0
        %2026 = vmatprep.subr.mxu0 0.0
        %2027 = vmatpush1.xpose.msra.mxu0 0.0
        %2028 = vmatprep.subr.mxu0 0.0
        %2029 = vmatpush1.xpose.msra.mxu0 0.0
        %2030 = vmatprep.subr.mxu0 0.0
        %2031 = vmatpush1.xpose.msra.mxu0 0.0
        %2032 = vmatprep.subr.mxu0 0.0
        %2033 = vmatpush1.xpose.msra.mxu0 0.0
        %2034 = vmatprep.subr.mxu0 0.0
        %2035 = vmatpush1.xpose.msra.mxu0 0.0
        %2036 = vmatprep.subr.mxu0 0.0
        %2037 = vmatpush1.xpose.msra.mxu0 0.0
        %2038 = vmatprep.subr.mxu0 0.0
        %2039 = vmatpush1.xpose.msra.mxu0 0.0
        %2040 = vmatprep.subr.mxu0 0.0
        %2041 = vmatpush1.xpose.msra.mxu0 0.0
        %2042 = vmatprep.subr.mxu0 0.0
        %2043 = vmatpush1.xpose.msra.mxu0 0.0
        %2044 = vmatprep.subr.mxu0 0.0
        %2045 = vmatpush1.xpose.msra.mxu0 0.0
        %2046 = vmatprep.subr.mxu0 0.0
        %2047 = vmatpush1.xpose.msra.mxu0 0.0
        %2048 = vmatprep.subr.mxu0 0.0
        %2049 = vmatpush1.xpose.msra.mxu0 0.0
        %2050 = vmatprep.subr.mxu0 0.0
        %2051 = vmatpush1.xpose.msra.mxu0 0.0
        %2052 = vmatprep.mubr.f32.mxu0 0.0
        %2053 = vmatmul.mubr.f32.gmra.mrb[0].mxu0 %v1972
        %v2054 = vpop.f32.mrb[0].mxu0
        %v2055 = vadd.f32 %v612, %v2054
        %v2056 = vpop.f32.mrb[0].mxu0
        %2057 = vmatprep.mubr.f32.mxu0 0.0
        %2058 = vmatmul.mubr.f32.gmra.mrb[0].mxu0 %v1974
        %v2059 = vpop.f32.mrb[0].mxu0
        %v2060 = vadd.f32 %v613, %v2059
        %v2061 = vpop.f32.mrb[0].mxu0
        %2062 = vmatprep.mubr.f32.mxu0 0.0
        %2063 = vmatmul.mubr.f32.gmra.mrb[0].mxu0 %v1976
        %v2064 = vpop.f32.mrb[0].mxu0
        %v2065 = vadd.f32 %v614, %v2064
        %v2066 = vpop.f32.mrb[0].mxu0
        %2067 = vmatprep.mubr.f32.mxu0 0.0
        %2068 = vmatmul.mubr.f32.gmra.mrb[0].mxu0 %v1978
        %v2069 = vpop.f32.mrb[0].mxu0
        %v2070 = vadd.f32 %v615, %v2069
        %v2071 = vpop.f32.mrb[0].mxu0
        %2072 = vdwg.mxu0
        %2073 = vrot.lane.b32.xlu0 %v590, 120
        %v2074 = vpop.permute.xlu0 %2073
        %2075 = vrot.lane.b32.xlu0 %v595, 120
        %v2076 = vpop.permute.xlu0 %2075
        %2077 = vrot.lane.b32.xlu0 %v600, 120
        %v2078 = vpop.permute.xlu0 %2077
        %2079 = vrot.lane.b32.xlu0 %v605, 120
        %v2080 = vpop.permute.xlu0 %2079
        %2081 = vrot.lane.b32.xlu0 %v590, 88
        %v2082 = vpop.permute.xlu0 %2081
        %2083 = vrot.lane.b32.xlu0 %v595, 88
        %v2084 = vpop.permute.xlu0 %2083
        %2085 = vrot.lane.b32.xlu0 %v600, 88
        %v2086 = vpop.permute.xlu0 %2085
        %2087 = vrot.lane.b32.xlu0 %v605, 88
        %v2088 = vpop.permute.xlu0 %2087
        %v2089 = vsel %vm652, %v2074, 0
        %v2091 = vsel %vm652, %v2076, 0
        %v2093 = vsel %vm652, %v2078, 0
        %v2095 = vsel %vm652, %v2080, 0
        %v2097 = vsel %vm652, %v2082, 0
        %v2099 = vsel %vm652, %v2084, 0
        %v2101 = vsel %vm652, %v2086, 0
        %v2103 = vsel %vm652, %v2088, 0
        %2105 = vmatprep.subr.mxu0 0.0
        %2106 = vmatpush1.xpose.msra.mxu0 %v2097
        %2107 = vmatprep.subr.mxu0 0.0
        %2108 = vmatpush1.xpose.msra.mxu0 %v2099
        %2109 = vmatprep.subr.mxu0 0.0
        %2110 = vmatpush1.xpose.msra.mxu0 %v2101
        %2111 = vmatprep.subr.mxu0 0.0
        %2112 = vmatpush1.xpose.msra.mxu0 %v2103
        %2113 = vmatprep.subr.mxu0 0.0
        %2114 = vmatpush1.xpose.msra.mxu0 0.0
        %2115 = vmatprep.subr.mxu0 0.0
        %2116 = vmatpush1.xpose.msra.mxu0 0.0
        %2117 = vmatprep.subr.mxu0 0.0
        %2118 = vmatpush1.xpose.msra.mxu0 0.0
        %2119 = vmatprep.subr.mxu0 0.0
        %2120 = vmatpush1.xpose.msra.mxu0 0.0
        %2121 = vmatprep.subr.mxu0 0.0
        %2122 = vmatpush1.xpose.msra.mxu0 0.0
        %2123 = vmatprep.subr.mxu0 0.0
        %2124 = vmatpush1.xpose.msra.mxu0 0.0
        %2125 = vmatprep.subr.mxu0 0.0
        %2126 = vmatpush1.xpose.msra.mxu0 0.0
        %2127 = vmatprep.subr.mxu0 0.0
        %2128 = vmatpush1.xpose.msra.mxu0 0.0
        %2129 = vmatprep.subr.mxu0 0.0
        %2130 = vmatpush1.xpose.msra.mxu0 0.0
        %2131 = vmatprep.subr.mxu0 0.0
        %2132 = vmatpush1.xpose.msra.mxu0 0.0
        %2133 = vmatprep.subr.mxu0 0.0
        %2134 = vmatpush1.xpose.msra.mxu0 0.0
        %2135 = vmatprep.subr.mxu0 0.0
        %2136 = vmatpush1.xpose.msra.mxu0 0.0
        %2137 = vmatprep.subr.mxu0 0.0
        %2138 = vmatpush1.xpose.msra.mxu0 0.0
        %2139 = vmatprep.subr.mxu0 0.0
        %2140 = vmatpush1.xpose.msra.mxu0 0.0
        %2141 = vmatprep.subr.mxu0 0.0
        %2142 = vmatpush1.xpose.msra.mxu0 0.0
        %2143 = vmatprep.subr.mxu0 0.0
        %2144 = vmatpush1.xpose.msra.mxu0 0.0
        %2145 = vmatprep.subr.mxu0 0.0
        %2146 = vmatpush1.xpose.msra.mxu0 0.0
        %2147 = vmatprep.subr.mxu0 0.0
        %2148 = vmatpush1.xpose.msra.mxu0 0.0
        %2149 = vmatprep.subr.mxu0 0.0
        %2150 = vmatpush1.xpose.msra.mxu0 0.0
        %2151 = vmatprep.subr.mxu0 0.0
        %2152 = vmatpush1.xpose.msra.mxu0 0.0
        %2153 = vmatprep.subr.mxu0 0.0
        %2154 = vmatpush1.xpose.msra.mxu0 0.0
        %2155 = vmatprep.subr.mxu0 0.0
        %2156 = vmatpush1.xpose.msra.mxu0 0.0
        %2157 = vmatprep.subr.mxu0 0.0
        %2158 = vmatpush1.xpose.msra.mxu0 0.0
        %2159 = vmatprep.subr.mxu0 0.0
        %2160 = vmatpush1.xpose.msra.mxu0 0.0
        %2161 = vmatprep.subr.mxu0 0.0
        %2162 = vmatpush1.xpose.msra.mxu0 0.0
        %2163 = vmatprep.subr.mxu0 0.0
        %2164 = vmatpush1.xpose.msra.mxu0 0.0
        %2165 = vmatprep.subr.mxu0 0.0
        %2166 = vmatpush1.xpose.msra.mxu0 0.0
        %2167 = vmatprep.subr.mxu0 0.0
        %2168 = vmatpush1.xpose.msra.mxu0 0.0
        %2169 = vmatprep.mubr.f32.mxu0 0.0
        %2170 = vmatmul.mubr.f32.gmra.mrb[0].mxu0 %v2089
        %v2171 = vpop.f32.mrb[0].mxu0
        %v2172 = vadd.f32 %v612, %v2171
        %v2173 = vpop.f32.mrb[0].mxu0
        %2174 = vmatprep.mubr.f32.mxu0 0.0
        %2175 = vmatmul.mubr.f32.gmra.mrb[0].mxu0 %v2091
        %v2176 = vpop.f32.mrb[0].mxu0
        %v2177 = vadd.f32 %v613, %v2176
        %v2178 = vpop.f32.mrb[0].mxu0
        %2179 = vmatprep.mubr.f32.mxu0 0.0
        %2180 = vmatmul.mubr.f32.gmra.mrb[0].mxu0 %v2093
        %v2181 = vpop.f32.mrb[0].mxu0
        %v2182 = vadd.f32 %v614, %v2181
        %v2183 = vpop.f32.mrb[0].mxu0
        %2184 = vmatprep.mubr.f32.mxu0 0.0
        %2185 = vmatmul.mubr.f32.gmra.mrb[0].mxu0 %v2095
        %v2186 = vpop.f32.mrb[0].mxu0
        %v2187 = vadd.f32 %v615, %v2186
        %v2188 = vpop.f32.mrb[0].mxu0
        %2189 = vdwg.mxu0
        %v2190 = vadd.f32 %v1821, %v624
        %v2191 = vadd.f32 %v1826, %v625
        %v2192 = vadd.f32 %v1831, %v626
        %v2193 = vadd.f32 %v1836, %v627
        %v2194 = vadd.f32 %v1938, %v628
        %v2195 = vadd.f32 %v1943, %v629
        %v2196 = vadd.f32 %v1948, %v630
        %v2197 = vadd.f32 %v1953, %v631
        %v2198 = vadd.f32 %v2055, %v632
        %v2199 = vadd.f32 %v2060, %v633
        %v2200 = vadd.f32 %v2065, %v634
        %v2201 = vadd.f32 %v2070, %v635
        %v2202 = vadd.f32 %v2172, %v636
        %v2203 = vadd.f32 %v2177, %v637
        %v2204 = vadd.f32 %v2182, %v638
        %v2205 = vadd.f32 %v2187, %v639
        %v2206 = vsel %vm414, %v2190, -inf
        %2207 = vmax.xlane.f32.xlu0 %v2206
        %v2208 = vpop.xlane.xlu0 %2207
        %v2209 = vsel %vm414, %v2191, -inf
        %2210 = vmax.xlane.f32.xlu0 %v2209
        %v2211 = vpop.xlane.xlu0 %2210
        %v2212 = vsel %vm414, %v2192, -inf
        %2213 = vmax.xlane.f32.xlu0 %v2212
        %v2214 = vpop.xlane.xlu0 %2213
        %v2215 = vsel %vm414, %v2193, -inf
        %2216 = vmax.xlane.f32.xlu0 %v2215
        %v2217 = vpop.xlane.xlu0 %2216
        %v2218 = vsel %vm414, %v2194, -inf
        %2219 = vmax.xlane.f32.xlu0 %v2218
        %v2220 = vpop.xlane.xlu0 %2219
        %v2221 = vsel %vm414, %v2195, -inf
        %2222 = vmax.xlane.f32.xlu0 %v2221
        %v2223 = vpop.xlane.xlu0 %2222
        %v2224 = vsel %vm414, %v2196, -inf
        %2225 = vmax.xlane.f32.xlu0 %v2224
        %v2226 = vpop.xlane.xlu0 %2225
        %v2227 = vsel %vm414, %v2197, -inf
        %2228 = vmax.xlane.f32.xlu0 %v2227
        %v2229 = vpop.xlane.xlu0 %2228
        %v2230 = vsel %vm414, %v2198, -inf
        %2231 = vmax.xlane.f32.xlu0 %v2230
        %v2232 = vpop.xlane.xlu0 %2231
        %v2233 = vsel %vm414, %v2199, -inf
        %2234 = vmax.xlane.f32.xlu0 %v2233
        %v2235 = vpop.xlane.xlu0 %2234
        %v2236 = vsel %vm414, %v2200, -inf
        %2237 = vmax.xlane.f32.xlu0 %v2236
        %v2238 = vpop.xlane.xlu0 %2237
        %v2239 = vsel %vm414, %v2201, -inf
        %2240 = vmax.xlane.f32.xlu0 %v2239
        %v2241 = vpop.xlane.xlu0 %2240
        %v2242 = vsel %vm414, %v2202, -inf
        %2243 = vmax.xlane.f32.xlu0 %v2242
        %v2244 = vpop.xlane.xlu0 %2243
        %v2245 = vsel %vm414, %v2203, -inf
        %2246 = vmax.xlane.f32.xlu0 %v2245
        %v2247 = vpop.xlane.xlu0 %2246
        %v2248 = vsel %vm414, %v2204, -inf
        %2249 = vmax.xlane.f32.xlu0 %v2248
        %v2250 = vpop.xlane.xlu0 %2249
        %v2251 = vsel %vm414, %v2205, -inf
        %2252 = vmax.xlane.f32.xlu0 %v2251
        %v2253 = vpop.xlane.xlu0 %2252
        %v2254 = vsub.f32 %v2190, %v2208
        %v2255 = vsub.f32 %v2191, %v2211
        %v2256 = vsub.f32 %v2192, %v2214
        %v2257 = vsub.f32 %v2193, %v2217
        %v2258 = vsub.f32 %v2194, %v2220
        %v2259 = vsub.f32 %v2195, %v2223
        %v2260 = vsub.f32 %v2196, %v2226
        %v2261 = vsub.f32 %v2197, %v2229
        %v2262 = vsub.f32 %v2198, %v2232
        %v2263 = vsub.f32 %v2199, %v2235
        %v2264 = vsub.f32 %v2200, %v2238
        %v2265 = vsub.f32 %v2201, %v2241
        %v2266 = vsub.f32 %v2202, %v2244
        %v2267 = vsub.f32 %v2203, %v2247
        %v2268 = vsub.f32 %v2204, %v2250
        %v2269 = vsub.f32 %v2205, %v2253
        %v2270 = vmul.f32 %v2254, 1.442695
        %v2271 = vpow.pop %v2270
        %v2272 = vmul.f32 %v2255, 1.442695
        %v2273 = vpow.pop %v2272
        %v2274 = vmul.f32 %v2256, 1.442695
        %v2275 = vpow.pop %v2274
        %v2276 = vmul.f32 %v2257, 1.442695
        %v2277 = vpow.pop %v2276
        %v2278 = vmul.f32 %v2258, 1.442695
        %v2279 = vpow.pop %v2278
        %v2280 = vmul.f32 %v2259, 1.442695
        %v2281 = vpow.pop %v2280
        %v2282 = vmul.f32 %v2260, 1.442695
        %v2283 = vpow.pop %v2282
        %v2284 = vmul.f32 %v2261, 1.442695
        %v2285 = vpow.pop %v2284
        %v2286 = vmul.f32 %v2262, 1.442695
        %v2287 = vpow.pop %v2286
        %v2288 = vmul.f32 %v2263, 1.442695
        %v2289 = vpow.pop %v2288
        %v2290 = vmul.f32 %v2264, 1.442695
        %v2291 = vpow.pop %v2290
        %v2292 = vmul.f32 %v2265, 1.442695
        %v2293 = vpow.pop %v2292
        %v2294 = vmul.f32 %v2266, 1.442695
        %v2295 = vpow.pop %v2294
        %v2296 = vmul.f32 %v2267, 1.442695
        %v2297 = vpow.pop %v2296
        %v2298 = vmul.f32 %v2268, 1.442695
        %v2299 = vpow.pop %v2298
        %v2300 = vmul.f32 %v2269, 1.442695
        %v2301 = vpow.pop %v2300
        %v2302 = vsel %vm414, %v2271, 0.0
        %2303 = vadd.xlane.f32.xlu0 %v2302
        %v2304 = vpop.xlane.xlu0 %2303
        %v2305 = vsel %vm414, %v2273, 0.0
        %2306 = vadd.xlane.f32.xlu0 %v2305
        %v2307 = vpop.xlane.xlu0 %2306
        %v2308 = vsel %vm414, %v2275, 0.0
        %2309 = vadd.xlane.f32.xlu0 %v2308
        %v2310 = vpop.xlane.xlu0 %2309
        %v2311 = vsel %vm414, %v2277, 0.0
        %2312 = vadd.xlane.f32.xlu0 %v2311
        %v2313 = vpop.xlane.xlu0 %2312
        %v2314 = vsel %vm414, %v2279, 0.0
        %2315 = vadd.xlane.f32.xlu0 %v2314
        %v2316 = vpop.xlane.xlu0 %2315
        %v2317 = vsel %vm414, %v2281, 0.0
        %2318 = vadd.xlane.f32.xlu0 %v2317
        %v2319 = vpop.xlane.xlu0 %2318
        %v2320 = vsel %vm414, %v2283, 0.0
        %2321 = vadd.xlane.f32.xlu0 %v2320
        %v2322 = vpop.xlane.xlu0 %2321
        %v2323 = vsel %vm414, %v2285, 0.0
        %2324 = vadd.xlane.f32.xlu0 %v2323
        %v2325 = vpop.xlane.xlu0 %2324
        %v2326 = vsel %vm414, %v2287, 0.0
        %2327 = vadd.xlane.f32.xlu0 %v2326
        %v2328 = vpop.xlane.xlu0 %2327
        %v2329 = vsel %vm414, %v2289, 0.0
        %2330 = vadd.xlane.f32.xlu0 %v2329
        %v2331 = vpop.xlane.xlu0 %2330
        %v2332 = vsel %vm414, %v2291, 0.0
        %2333 = vadd.xlane.f32.xlu0 %v2332
        %v2334 = vpop.xlane.xlu0 %2333
        %v2335 = vsel %vm414, %v2293, 0.0
        %2336 = vadd.xlane.f32.xlu0 %v2335
        %v2337 = vpop.xlane.xlu0 %2336
        %v2338 = vsel %vm414, %v2295, 0.0
        %2339 = vadd.xlane.f32.xlu0 %v2338
        %v2340 = vpop.xlane.xlu0 %2339
        %v2341 = vsel %vm414, %v2297, 0.0
        %2342 = vadd.xlane.f32.xlu0 %v2341
        %v2343 = vpop.xlane.xlu0 %2342
        %v2344 = vsel %vm414, %v2299, 0.0
        %2345 = vadd.xlane.f32.xlu0 %v2344
        %v2346 = vpop.xlane.xlu0 %2345
        %v2347 = vsel %vm414, %v2301, 0.0
        %2348 = vadd.xlane.f32.xlu0 %v2347
        %v2349 = vpop.xlane.xlu0 %2348
        %v2350 = vrcp.pop %v2304
        %v2351 = vrcp.pop %v2307
        %v2352 = vrcp.pop %v2310
        %v2353 = vrcp.pop %v2313
        %v2354 = vrcp.pop %v2316
        %v2355 = vrcp.pop %v2319
        %v2356 = vrcp.pop %v2322
        %v2357 = vrcp.pop %v2325
        %v2358 = vrcp.pop %v2328
        %v2359 = vrcp.pop %v2331
        %v2360 = vrcp.pop %v2334
        %v2361 = vrcp.pop %v2337
        %v2362 = vrcp.pop %v2340
        %v2363 = vrcp.pop %v2343
        %v2364 = vrcp.pop %v2346
        %v2365 = vrcp.pop %v2349
        %2366 = vrot.lane.b32.xlu0 %v530, 56
        %v2367 = vpop.permute.xlu0 %2366
        %2368 = vrot.lane.b32.xlu0 %v535, 56
        %v2369 = vpop.permute.xlu0 %2368
        %2370 = vrot.lane.b32.xlu0 %v540, 56
        %v2371 = vpop.permute.xlu0 %2370
        %2372 = vrot.lane.b32.xlu0 %v545, 56
        %v2373 = vpop.permute.xlu0 %2372
        %v2379 = vsel %vm414, %v2271, 0
        %v2382 = vsel %vm414, %v2273, 0
        %v2385 = vsel %vm414, %v2275, 0
        %v2388 = vsel %vm414, %v2277, 0
        %2390 = vmatprep.subr.mxu0 0.0
        %2391 = vmatpush1.msra.mxu0 %v2367
        %2392 = vmatprep.subr.mxu0 0.0
        %2393 = vmatpush1.msra.mxu0 %v2369
        %2394 = vmatprep.subr.mxu0 0.0
        %2395 = vmatpush1.msra.mxu0 %v2371
        %2396 = vmatprep.subr.mxu0 0.0
        %2397 = vmatpush1.msra.mxu0 %v2373
        %2398 = vmatprep.subr.mxu0 0.0
        %2399 = vmatpush1.msra.mxu0 0.0
        %2400 = vmatprep.subr.mxu0 0.0
        %2401 = vmatpush1.msra.mxu0 0.0
        %2402 = vmatprep.subr.mxu0 0.0
        %2403 = vmatpush1.msra.mxu0 0.0
        %2404 = vmatprep.subr.mxu0 0.0
        %2405 = vmatpush1.msra.mxu0 0.0
        %2406 = vmatprep.subr.mxu0 0.0
        %2407 = vmatpush1.msra.mxu0 0.0
        %2408 = vmatprep.subr.mxu0 0.0
        %2409 = vmatpush1.msra.mxu0 0.0
        %2410 = vmatprep.subr.mxu0 0.0
        %2411 = vmatpush1.msra.mxu0 0.0
        %2412 = vmatprep.subr.mxu0 0.0
        %2413 = vmatpush1.msra.mxu0 0.0
        %2414 = vmatprep.subr.mxu0 0.0
        %2415 = vmatpush1.msra.mxu0 0.0
        %2416 = vmatprep.subr.mxu0 0.0
        %2417 = vmatpush1.msra.mxu0 0.0
        %2418 = vmatprep.subr.mxu0 0.0
        %2419 = vmatpush1.msra.mxu0 0.0
        %2420 = vmatprep.subr.mxu0 0.0
        %2421 = vmatpush1.msra.mxu0 0.0
        %2422 = vmatprep.subr.mxu0 0.0
        %2423 = vmatpush1.msra.mxu0 0.0
        %2424 = vmatprep.subr.mxu0 0.0
        %2425 = vmatpush1.msra.mxu0 0.0
        %2426 = vmatprep.subr.mxu0 0.0
        %2427 = vmatpush1.msra.mxu0 0.0
        %2428 = vmatprep.subr.mxu0 0.0
        %2429 = vmatpush1.msra.mxu0 0.0
        %2430 = vmatprep.subr.mxu0 0.0
        %2431 = vmatpush1.msra.mxu0 0.0
        %2432 = vmatprep.subr.mxu0 0.0
        %2433 = vmatpush1.msra.mxu0 0.0
        %2434 = vmatprep.subr.mxu0 0.0
        %2435 = vmatpush1.msra.mxu0 0.0
        %2436 = vmatprep.subr.mxu0 0.0
        %2437 = vmatpush1.msra.mxu0 0.0
        %2438 = vmatprep.subr.mxu0 0.0
        %2439 = vmatpush1.msra.mxu0 0.0
        %2440 = vmatprep.subr.mxu0 0.0
        %2441 = vmatpush1.msra.mxu0 0.0
        %2442 = vmatprep.subr.mxu0 0.0
        %2443 = vmatpush1.msra.mxu0 0.0
        %2444 = vmatprep.subr.mxu0 0.0
        %2445 = vmatpush1.msra.mxu0 0.0
        %2446 = vmatprep.subr.mxu0 0.0
        %2447 = vmatpush1.msra.mxu0 0.0
        %2448 = vmatprep.subr.mxu0 0.0
        %2449 = vmatpush1.msra.mxu0 0.0
        %2450 = vmatprep.subr.mxu0 0.0
        %2451 = vmatpush1.msra.mxu0 0.0
        %2452 = vmatprep.subr.mxu0 0.0
        %2453 = vmatpush1.msra.mxu0 0.0
        %2454 = vmatprep.mubr.f32.mxu0 0.0
        %2455 = vmatmul.mubr.f32.gmra.mrb[0].mxu0 %v2379
        %v2456 = vpop.f32.mrb[0].mxu0
        %v2457 = vadd.f32 0.0, %v2456
        %v2458 = vpop.f32.mrb[0].mxu0
        %2459 = vmatprep.mubr.f32.mxu0 0.0
        %2460 = vmatmul.mubr.f32.gmra.mrb[0].mxu0 %v2382
        %v2461 = vpop.f32.mrb[0].mxu0
        %v2462 = vadd.f32 0.0, %v2461
        %v2463 = vpop.f32.mrb[0].mxu0
        %2464 = vmatprep.mubr.f32.mxu0 0.0
        %2465 = vmatmul.mubr.f32.gmra.mrb[0].mxu0 %v2385
        %v2466 = vpop.f32.mrb[0].mxu0
        %v2467 = vadd.f32 0.0, %v2466
        %v2468 = vpop.f32.mrb[0].mxu0
        %2469 = vmatprep.mubr.f32.mxu0 0.0
        %2470 = vmatmul.mubr.f32.gmra.mrb[0].mxu0 %v2388
        %v2471 = vpop.f32.mrb[0].mxu0
        %v2472 = vadd.f32 0.0, %v2471
        %v2473 = vpop.f32.mrb[0].mxu0
        %2474 = vdwg.mxu0
        %2475 = vrot.lane.b32.xlu0 %v550, 56
        %v2476 = vpop.permute.xlu0 %2475
        %2477 = vrot.lane.b32.xlu0 %v555, 56
        %v2478 = vpop.permute.xlu0 %2477
        %2479 = vrot.lane.b32.xlu0 %v560, 56
        %v2480 = vpop.permute.xlu0 %2479
        %2481 = vrot.lane.b32.xlu0 %v565, 56
        %v2482 = vpop.permute.xlu0 %2481
        %v2488 = vsel %vm414, %v2279, 0
        %v2491 = vsel %vm414, %v2281, 0
        %v2494 = vsel %vm414, %v2283, 0
        %v2497 = vsel %vm414, %v2285, 0
        %2499 = vmatprep.subr.mxu0 0.0
        %2500 = vmatpush1.msra.mxu0 %v2476
        %2501 = vmatprep.subr.mxu0 0.0
        %2502 = vmatpush1.msra.mxu0 %v2478
        %2503 = vmatprep.subr.mxu0 0.0
        %2504 = vmatpush1.msra.mxu0 %v2480
        %2505 = vmatprep.subr.mxu0 0.0
        %2506 = vmatpush1.msra.mxu0 %v2482
        %2507 = vmatprep.subr.mxu0 0.0
        %2508 = vmatpush1.msra.mxu0 0.0
        %2509 = vmatprep.subr.mxu0 0.0
        %2510 = vmatpush1.msra.mxu0 0.0
        %2511 = vmatprep.subr.mxu0 0.0
        %2512 = vmatpush1.msra.mxu0 0.0
        %2513 = vmatprep.subr.mxu0 0.0
        %2514 = vmatpush1.msra.mxu0 0.0
        %2515 = vmatprep.subr.mxu0 0.0
        %2516 = vmatpush1.msra.mxu0 0.0
        %2517 = vmatprep.subr.mxu0 0.0
        %2518 = vmatpush1.msra.mxu0 0.0
        %2519 = vmatprep.subr.mxu0 0.0
        %2520 = vmatpush1.msra.mxu0 0.0
        %2521 = vmatprep.subr.mxu0 0.0
        %2522 = vmatpush1.msra.mxu0 0.0
        %2523 = vmatprep.subr.mxu0 0.0
        %2524 = vmatpush1.msra.mxu0 0.0
        %2525 = vmatprep.subr.mxu0 0.0
        %2526 = vmatpush1.msra.mxu0 0.0
        %2527 = vmatprep.subr.mxu0 0.0
        %2528 = vmatpush1.msra.mxu0 0.0
        %2529 = vmatprep.subr.mxu0 0.0
        %2530 = vmatpush1.msra.mxu0 0.0
        %2531 = vmatprep.subr.mxu0 0.0
        %2532 = vmatpush1.msra.mxu0 0.0
        %2533 = vmatprep.subr.mxu0 0.0
        %2534 = vmatpush1.msra.mxu0 0.0
        %2535 = vmatprep.subr.mxu0 0.0
        %2536 = vmatpush1.msra.mxu0 0.0
        %2537 = vmatprep.subr.mxu0 0.0
        %2538 = vmatpush1.msra.mxu0 0.0
        %2539 = vmatprep.subr.mxu0 0.0
        %2540 = vmatpush1.msra.mxu0 0.0
        %2541 = vmatprep.subr.mxu0 0.0
        %2542 = vmatpush1.msra.mxu0 0.0
        %2543 = vmatprep.subr.mxu0 0.0
        %2544 = vmatpush1.msra.mxu0 0.0
        %2545 = vmatprep.subr.mxu0 0.0
        %2546 = vmatpush1.msra.mxu0 0.0
        %2547 = vmatprep.subr.mxu0 0.0
        %2548 = vmatpush1.msra.mxu0 0.0
        %2549 = vmatprep.subr.mxu0 0.0
        %2550 = vmatpush1.msra.mxu0 0.0
        %2551 = vmatprep.subr.mxu0 0.0
        %2552 = vmatpush1.msra.mxu0 0.0
        %2553 = vmatprep.subr.mxu0 0.0
        %2554 = vmatpush1.msra.mxu0 0.0
        %2555 = vmatprep.subr.mxu0 0.0
        %2556 = vmatpush1.msra.mxu0 0.0
        %2557 = vmatprep.subr.mxu0 0.0
        %2558 = vmatpush1.msra.mxu0 0.0
        %2559 = vmatprep.subr.mxu0 0.0
        %2560 = vmatpush1.msra.mxu0 0.0
        %2561 = vmatprep.subr.mxu0 0.0
        %2562 = vmatpush1.msra.mxu0 0.0
        %2563 = vmatprep.mubr.f32.mxu0 0.0
        %2564 = vmatmul.mubr.f32.gmra.mrb[0].mxu0 %v2488
        %v2565 = vpop.f32.mrb[0].mxu0
        %v2566 = vadd.f32 0.0, %v2565
        %v2567 = vpop.f32.mrb[0].mxu0
        %2568 = vmatprep.mubr.f32.mxu0 0.0
        %2569 = vmatmul.mubr.f32.gmra.mrb[0].mxu0 %v2491
        %v2570 = vpop.f32.mrb[0].mxu0
        %v2571 = vadd.f32 0.0, %v2570
        %v2572 = vpop.f32.mrb[0].mxu0
        %2573 = vmatprep.mubr.f32.mxu0 0.0
        %2574 = vmatmul.mubr.f32.gmra.mrb[0].mxu0 %v2494
        %v2575 = vpop.f32.mrb[0].mxu0
        %v2576 = vadd.f32 0.0, %v2575
        %v2577 = vpop.f32.mrb[0].mxu0
        %2578 = vmatprep.mubr.f32.mxu0 0.0
        %2579 = vmatmul.mubr.f32.gmra.mrb[0].mxu0 %v2497
        %v2580 = vpop.f32.mrb[0].mxu0
        %v2581 = vadd.f32 0.0, %v2580
        %v2582 = vpop.f32.mrb[0].mxu0
        %2583 = vdwg.mxu0
        %2584 = vrot.lane.b32.xlu0 %v570, 56
        %v2585 = vpop.permute.xlu0 %2584
        %2586 = vrot.lane.b32.xlu0 %v575, 56
        %v2587 = vpop.permute.xlu0 %2586
        %2588 = vrot.lane.b32.xlu0 %v580, 56
        %v2589 = vpop.permute.xlu0 %2588
        %2590 = vrot.lane.b32.xlu0 %v585, 56
        %v2591 = vpop.permute.xlu0 %2590
        %v2597 = vsel %vm414, %v2287, 0
        %v2600 = vsel %vm414, %v2289, 0
        %v2603 = vsel %vm414, %v2291, 0
        %v2606 = vsel %vm414, %v2293, 0
        %2608 = vmatprep.subr.mxu0 0.0
        %2609 = vmatpush1.msra.mxu0 %v2585
        %2610 = vmatprep.subr.mxu0 0.0
        %2611 = vmatpush1.msra.mxu0 %v2587
        %2612 = vmatprep.subr.mxu0 0.0
        %2613 = vmatpush1.msra.mxu0 %v2589
        %2614 = vmatprep.subr.mxu0 0.0
        %2615 = vmatpush1.msra.mxu0 %v2591
        %2616 = vmatprep.subr.mxu0 0.0
        %2617 = vmatpush1.msra.mxu0 0.0
        %2618 = vmatprep.subr.mxu0 0.0
        %2619 = vmatpush1.msra.mxu0 0.0
        %2620 = vmatprep.subr.mxu0 0.0
        %2621 = vmatpush1.msra.mxu0 0.0
        %2622 = vmatprep.subr.mxu0 0.0
        %2623 = vmatpush1.msra.mxu0 0.0
        %2624 = vmatprep.subr.mxu0 0.0
        %2625 = vmatpush1.msra.mxu0 0.0
        %2626 = vmatprep.subr.mxu0 0.0
        %2627 = vmatpush1.msra.mxu0 0.0
        %2628 = vmatprep.subr.mxu0 0.0
        %2629 = vmatpush1.msra.mxu0 0.0
        %2630 = vmatprep.subr.mxu0 0.0
        %2631 = vmatpush1.msra.mxu0 0.0
        %2632 = vmatprep.subr.mxu0 0.0
        %2633 = vmatpush1.msra.mxu0 0.0
        %2634 = vmatprep.subr.mxu0 0.0
        %2635 = vmatpush1.msra.mxu0 0.0
        %2636 = vmatprep.subr.mxu0 0.0
        %2637 = vmatpush1.msra.mxu0 0.0
        %2638 = vmatprep.subr.mxu0 0.0
        %2639 = vmatpush1.msra.mxu0 0.0
        %2640 = vmatprep.subr.mxu0 0.0
        %2641 = vmatpush1.msra.mxu0 0.0
        %2642 = vmatprep.subr.mxu0 0.0
        %2643 = vmatpush1.msra.mxu0 0.0
        %2644 = vmatprep.subr.mxu0 0.0
        %2645 = vmatpush1.msra.mxu0 0.0
        %2646 = vmatprep.subr.mxu0 0.0
        %2647 = vmatpush1.msra.mxu0 0.0
        %2648 = vmatprep.subr.mxu0 0.0
        %2649 = vmatpush1.msra.mxu0 0.0
        %2650 = vmatprep.subr.mxu0 0.0
        %2651 = vmatpush1.msra.mxu0 0.0
        %2652 = vmatprep.subr.mxu0 0.0
        %2653 = vmatpush1.msra.mxu0 0.0
        %2654 = vmatprep.subr.mxu0 0.0
        %2655 = vmatpush1.msra.mxu0 0.0
        %2656 = vmatprep.subr.mxu0 0.0
        %2657 = vmatpush1.msra.mxu0 0.0
        %2658 = vmatprep.subr.mxu0 0.0
        %2659 = vmatpush1.msra.mxu0 0.0
        %2660 = vmatprep.subr.mxu0 0.0
        %2661 = vmatpush1.msra.mxu0 0.0
        %2662 = vmatprep.subr.mxu0 0.0
        %2663 = vmatpush1.msra.mxu0 0.0
        %2664 = vmatprep.subr.mxu0 0.0
        %2665 = vmatpush1.msra.mxu0 0.0
        %2666 = vmatprep.subr.mxu0 0.0
        %2667 = vmatpush1.msra.mxu0 0.0
        %2668 = vmatprep.subr.mxu0 0.0
        %2669 = vmatpush1.msra.mxu0 0.0
        %2670 = vmatprep.subr.mxu0 0.0
        %2671 = vmatpush1.msra.mxu0 0.0
        %2672 = vmatprep.mubr.f32.mxu0 0.0
        %2673 = vmatmul.mubr.f32.gmra.mrb[0].mxu0 %v2597
        %v2674 = vpop.f32.mrb[0].mxu0
        %v2675 = vadd.f32 0.0, %v2674
        %v2676 = vpop.f32.mrb[0].mxu0
        %2677 = vmatprep.mubr.f32.mxu0 0.0
        %2678 = vmatmul.mubr.f32.gmra.mrb[0].mxu0 %v2600
        %v2679 = vpop.f32.mrb[0].mxu0
        %v2680 = vadd.f32 0.0, %v2679
        %v2681 = vpop.f32.mrb[0].mxu0
        %2682 = vmatprep.mubr.f32.mxu0 0.0
        %2683 = vmatmul.mubr.f32.gmra.mrb[0].mxu0 %v2603
        %v2684 = vpop.f32.mrb[0].mxu0
        %v2685 = vadd.f32 0.0, %v2684
        %v2686 = vpop.f32.mrb[0].mxu0
        %2687 = vmatprep.mubr.f32.mxu0 0.0
        %2688 = vmatmul.mubr.f32.gmra.mrb[0].mxu0 %v2606
        %v2689 = vpop.f32.mrb[0].mxu0
        %v2690 = vadd.f32 0.0, %v2689
        %v2691 = vpop.f32.mrb[0].mxu0
        %2692 = vdwg.mxu0
        %2693 = vrot.lane.b32.xlu0 %v590, 56
        %v2694 = vpop.permute.xlu0 %2693
        %2695 = vrot.lane.b32.xlu0 %v595, 56
        %v2696 = vpop.permute.xlu0 %2695
        %2697 = vrot.lane.b32.xlu0 %v600, 56
        %v2698 = vpop.permute.xlu0 %2697
        %2699 = vrot.lane.b32.xlu0 %v605, 56
        %v2700 = vpop.permute.xlu0 %2699
        %v2706 = vsel %vm414, %v2295, 0
        %v2709 = vsel %vm414, %v2297, 0
        %v2712 = vsel %vm414, %v2299, 0
        %v2715 = vsel %vm414, %v2301, 0
        %2717 = vmatprep.subr.mxu0 0.0
        %2718 = vmatpush1.msra.mxu0 %v2694
        %2719 = vmatprep.subr.mxu0 0.0
        %2720 = vmatpush1.msra.mxu0 %v2696
        %2721 = vmatprep.subr.mxu0 0.0
        %2722 = vmatpush1.msra.mxu0 %v2698
        %2723 = vmatprep.subr.mxu0 0.0
        %2724 = vmatpush1.msra.mxu0 %v2700
        %2725 = vmatprep.subr.mxu0 0.0
        %2726 = vmatpush1.msra.mxu0 0.0
        %2727 = vmatprep.subr.mxu0 0.0
        %2728 = vmatpush1.msra.mxu0 0.0
        %2729 = vmatprep.subr.mxu0 0.0
        %2730 = vmatpush1.msra.mxu0 0.0
        %2731 = vmatprep.subr.mxu0 0.0
        %2732 = vmatpush1.msra.mxu0 0.0
        %2733 = vmatprep.subr.mxu0 0.0
        %2734 = vmatpush1.msra.mxu0 0.0
        %2735 = vmatprep.subr.mxu0 0.0
        %2736 = vmatpush1.msra.mxu0 0.0
        %2737 = vmatprep.subr.mxu0 0.0
        %2738 = vmatpush1.msra.mxu0 0.0
        %2739 = vmatprep.subr.mxu0 0.0
        %2740 = vmatpush1.msra.mxu0 0.0
        %2741 = vmatprep.subr.mxu0 0.0
        %2742 = vmatpush1.msra.mxu0 0.0
        %2743 = vmatprep.subr.mxu0 0.0
        %2744 = vmatpush1.msra.mxu0 0.0
        %2745 = vmatprep.subr.mxu0 0.0
        %2746 = vmatpush1.msra.mxu0 0.0
        %2747 = vmatprep.subr.mxu0 0.0
        %2748 = vmatpush1.msra.mxu0 0.0
        %2749 = vmatprep.subr.mxu0 0.0
        %2750 = vmatpush1.msra.mxu0 0.0
        %2751 = vmatprep.subr.mxu0 0.0
        %2752 = vmatpush1.msra.mxu0 0.0
        %2753 = vmatprep.subr.mxu0 0.0
        %2754 = vmatpush1.msra.mxu0 0.0
        %2755 = vmatprep.subr.mxu0 0.0
        %2756 = vmatpush1.msra.mxu0 0.0
        %2757 = vmatprep.subr.mxu0 0.0
        %2758 = vmatpush1.msra.mxu0 0.0
        %2759 = vmatprep.subr.mxu0 0.0
        %2760 = vmatpush1.msra.mxu0 0.0
        %2761 = vmatprep.subr.mxu0 0.0
        %2762 = vmatpush1.msra.mxu0 0.0
        %2763 = vmatprep.subr.mxu0 0.0
        %2764 = vmatpush1.msra.mxu0 0.0
        %2765 = vmatprep.subr.mxu0 0.0
        %2766 = vmatpush1.msra.mxu0 0.0
        %2767 = vmatprep.subr.mxu0 0.0
        %2768 = vmatpush1.msra.mxu0 0.0
        %2769 = vmatprep.subr.mxu0 0.0
        %2770 = vmatpush1.msra.mxu0 0.0
        %2771 = vmatprep.subr.mxu0 0.0
        %2772 = vmatpush1.msra.mxu0 0.0
        %2773 = vmatprep.subr.mxu0 0.0
        %2774 = vmatpush1.msra.mxu0 0.0
        %2775 = vmatprep.subr.mxu0 0.0
        %2776 = vmatpush1.msra.mxu0 0.0
        %2777 = vmatprep.subr.mxu0 0.0
        %2778 = vmatpush1.msra.mxu0 0.0
        %2779 = vmatprep.subr.mxu0 0.0
        %2780 = vmatpush1.msra.mxu0 0.0
        %2781 = vmatprep.mubr.f32.mxu0 0.0
        %2782 = vmatmul.mubr.f32.gmra.mrb[0].mxu0 %v2706
        %v2783 = vpop.f32.mrb[0].mxu0
        %v2784 = vadd.f32 0.0, %v2783
        %v2785 = vpop.f32.mrb[0].mxu0
        %2786 = vmatprep.mubr.f32.mxu0 0.0
        %2787 = vmatmul.mubr.f32.gmra.mrb[0].mxu0 %v2709
        %v2788 = vpop.f32.mrb[0].mxu0
        %v2789 = vadd.f32 0.0, %v2788
        %v2790 = vpop.f32.mrb[0].mxu0
        %2791 = vmatprep.mubr.f32.mxu0 0.0
        %2792 = vmatmul.mubr.f32.gmra.mrb[0].mxu0 %v2712
        %v2793 = vpop.f32.mrb[0].mxu0
        %v2794 = vadd.f32 0.0, %v2793
        %v2795 = vpop.f32.mrb[0].mxu0
        %2796 = vmatprep.mubr.f32.mxu0 0.0
        %2797 = vmatmul.mubr.f32.gmra.mrb[0].mxu0 %v2715
        %v2798 = vpop.f32.mrb[0].mxu0
        %v2799 = vadd.f32 0.0, %v2798
        %v2800 = vpop.f32.mrb[0].mxu0
        %2801 = vdwg.mxu0
        %v2802 = vmul.f32 %v2457, %v2350
        %v2803 = vmul.f32 %v2462, %v2351
        %v2804 = vmul.f32 %v2467, %v2352
        %v2805 = vmul.f32 %v2472, %v2353
        %v2806 = vmul.f32 %v2566, %v2354
        %v2807 = vmul.f32 %v2571, %v2355
        %v2808 = vmul.f32 %v2576, %v2356
        %v2809 = vmul.f32 %v2581, %v2357
        %v2810 = vmul.f32 %v2675, %v2358
        %v2811 = vmul.f32 %v2680, %v2359
        %v2812 = vmul.f32 %v2685, %v2360
        %v2813 = vmul.f32 %v2690, %v2361
        %v2814 = vmul.f32 %v2784, %v2362
        %v2815 = vmul.f32 %v2789, %v2363
        %v2816 = vmul.f32 %v2794, %v2364
        %v2817 = vmul.f32 %v2799, %v2365
        %v2818 = vld [vmem:[#allocation10 + $0x8] sm:$0xff]
        %v2820 = vsel %vm652, %v2802, 0
        %v2823 = vsel %vm652, %v2803, 0
        %v2826 = vsel %vm652, %v2804, 0
        %v2829 = vsel %vm652, %v2805, 0
        %v2832 = vsel %vm652, %v2806, 0
        %v2835 = vsel %vm652, %v2807, 0
        %v2838 = vsel %vm652, %v2808, 0
        %v2841 = vsel %vm652, %v2809, 0
        %v2844 = vsel %vm652, %v2810, 0
        %v2847 = vsel %vm652, %v2811, 0
        %v2850 = vsel %vm652, %v2812, 0
        %v2853 = vsel %vm652, %v2813, 0
        %v2856 = vsel %vm652, %v2814, 0
        %v2859 = vsel %vm652, %v2815, 0
        %v2862 = vsel %vm652, %v2816, 0
        %v2865 = vsel %vm652, %v2817, 0
        %2867 = vmatprep.subr.mxu0 0.0
        %2868 = vmatpush1.msra.mxu0 %v2818
        %2869 = vmatprep.subr.mxu0 0.0
        %2870 = vmatpush1.msra.mxu0 0.0
        %2871 = vmatprep.subr.mxu0 0.0
        %2872 = vmatpush1.msra.mxu0 0.0
        %2873 = vmatprep.subr.mxu0 0.0
        %2874 = vmatpush1.msra.mxu0 0.0
        %2875 = vmatprep.subr.mxu0 0.0
        %2876 = vmatpush1.msra.mxu0 0.0
        %2877 = vmatprep.subr.mxu0 0.0
        %2878 = vmatpush1.msra.mxu0 0.0
        %2879 = vmatprep.subr.mxu0 0.0
        %2880 = vmatpush1.msra.mxu0 0.0
        %2881 = vmatprep.subr.mxu0 0.0
        %2882 = vmatpush1.msra.mxu0 0.0
        %2883 = vmatprep.subr.mxu0 0.0
        %2884 = vmatpush1.msra.mxu0 0.0
        %2885 = vmatprep.subr.mxu0 0.0
        %2886 = vmatpush1.msra.mxu0 0.0
        %2887 = vmatprep.subr.mxu0 0.0
        %2888 = vmatpush1.msra.mxu0 0.0
        %2889 = vmatprep.subr.mxu0 0.0
        %2890 = vmatpush1.msra.mxu0 0.0
        %2891 = vmatprep.subr.mxu0 0.0
        %2892 = vmatpush1.msra.mxu0 0.0
        %2893 = vmatprep.subr.mxu0 0.0
        %2894 = vmatpush1.msra.mxu0 0.0
        %2895 = vmatprep.subr.mxu0 0.0
        %2896 = vmatpush1.msra.mxu0 0.0
        %2897 = vmatprep.subr.mxu0 0.0
        %2898 = vmatpush1.msra.mxu0 0.0
        %2899 = vmatprep.subr.mxu0 0.0
        %2900 = vmatpush1.msra.mxu0 0.0
        %2901 = vmatprep.subr.mxu0 0.0
        %2902 = vmatpush1.msra.mxu0 0.0
        %2903 = vmatprep.subr.mxu0 0.0
        %2904 = vmatpush1.msra.mxu0 0.0
        %2905 = vmatprep.subr.mxu0 0.0
        %2906 = vmatpush1.msra.mxu0 0.0
        %2907 = vmatprep.subr.mxu0 0.0
        %2908 = vmatpush1.msra.mxu0 0.0
        %2909 = vmatprep.subr.mxu0 0.0
        %2910 = vmatpush1.msra.mxu0 0.0
        %2911 = vmatprep.subr.mxu0 0.0
        %2912 = vmatpush1.msra.mxu0 0.0
        %2913 = vmatprep.subr.mxu0 0.0
        %2914 = vmatpush1.msra.mxu0 0.0
        %2915 = vmatprep.subr.mxu0 0.0
        %2916 = vmatpush1.msra.mxu0 0.0
        %2917 = vmatprep.subr.mxu0 0.0
        %2918 = vmatpush1.msra.mxu0 0.0
        %2919 = vmatprep.subr.mxu0 0.0
        %2920 = vmatpush1.msra.mxu0 0.0
        %2921 = vmatprep.subr.mxu0 0.0
        %2922 = vmatpush1.msra.mxu0 0.0
        %2923 = vmatprep.subr.mxu0 0.0
        %2924 = vmatpush1.msra.mxu0 0.0
        %2925 = vmatprep.subr.mxu0 0.0
        %2926 = vmatpush1.msra.mxu0 0.0
        %2927 = vmatprep.subr.mxu0 0.0
        %2928 = vmatpush1.msra.mxu0 0.0
        %2929 = vmatprep.subr.mxu0 0.0
        %2930 = vmatpush1.msra.mxu0 0.0
        %2931 = vmatprep.mubr.f32.mxu0 0.0
        %2932 = vmatmul.mubr.f32.gmra.mrb[0].mxu0 %v2820
        %v2933 = vpop.f32.mrb[0].mxu0
        %v2934 = vadd.f32 0.0, %v2933
        %v2935 = vpop.f32.mrb[0].mxu0
        %2936 = vmatprep.mubr.f32.mxu0 0.0
        %2937 = vmatmul.mubr.f32.gmra.mrb[0].mxu0 %v2823
        %v2938 = vpop.f32.mrb[0].mxu0
        %v2939 = vadd.f32 0.0, %v2938
        %v2940 = vpop.f32.mrb[0].mxu0
        %2941 = vmatprep.mubr.f32.mxu0 0.0
        %2942 = vmatmul.mubr.f32.gmra.mrb[0].mxu0 %v2826
        %v2943 = vpop.f32.mrb[0].mxu0
        %v2944 = vadd.f32 0.0, %v2943
        %v2945 = vpop.f32.mrb[0].mxu0
        %2946 = vmatprep.mubr.f32.mxu0 0.0
        %2947 = vmatmul.mubr.f32.gmra.mrb[0].mxu0 %v2829
        %v2948 = vpop.f32.mrb[0].mxu0
        %v2949 = vadd.f32 0.0, %v2948
        %v2950 = vpop.f32.mrb[0].mxu0
        %2951 = vmatprep.mubr.f32.mxu0 0.0
        %2952 = vmatmul.mubr.f32.gmra.mrb[0].mxu0 %v2832
        %v2953 = vpop.f32.mrb[0].mxu0
        %v2954 = vadd.f32 0.0, %v2953
        %v2955 = vpop.f32.mrb[0].mxu0
        %2956 = vmatprep.mubr.f32.mxu0 0.0
        %2957 = vmatmul.mubr.f32.gmra.mrb[0].mxu0 %v2835
        %v2958 = vpop.f32.mrb[0].mxu0
        %v2959 = vadd.f32 0.0, %v2958
        %v2960 = vpop.f32.mrb[0].mxu0
        %2961 = vmatprep.mubr.f32.mxu0 0.0
        %2962 = vmatmul.mubr.f32.gmra.mrb[0].mxu0 %v2838
        %v2963 = vpop.f32.mrb[0].mxu0
        %v2964 = vadd.f32 0.0, %v2963
        %v2965 = vpop.f32.mrb[0].mxu0
        %2966 = vmatprep.mubr.f32.mxu0 0.0
        %2967 = vmatmul.mubr.f32.gmra.mrb[0].mxu0 %v2841
        %v2968 = vpop.f32.mrb[0].mxu0
        %v2969 = vadd.f32 0.0, %v2968
        %v2970 = vpop.f32.mrb[0].mxu0
        %2971 = vmatprep.mubr.f32.mxu0 0.0
        %2972 = vmatmul.mubr.f32.gmra.mrb[0].mxu0 %v2844
        %v2973 = vpop.f32.mrb[0].mxu0
        %v2974 = vadd.f32 0.0, %v2973
        %v2975 = vpop.f32.mrb[0].mxu0
        %2976 = vmatprep.mubr.f32.mxu0 0.0
        %2977 = vmatmul.mubr.f32.gmra.mrb[0].mxu0 %v2847
        %v2978 = vpop.f32.mrb[0].mxu0
        %v2979 = vadd.f32 0.0, %v2978
        %v2980 = vpop.f32.mrb[0].mxu0
        %2981 = vmatprep.mubr.f32.mxu0 0.0
        %2982 = vmatmul.mubr.f32.gmra.mrb[0].mxu0 %v2850
        %v2983 = vpop.f32.mrb[0].mxu0
        %v2984 = vadd.f32 0.0, %v2983
        %v2985 = vpop.f32.mrb[0].mxu0
        %2986 = vmatprep.mubr.f32.mxu0 0.0
        %2987 = vmatmul.mubr.f32.gmra.mrb[0].mxu0 %v2853
        %v2988 = vpop.f32.mrb[0].mxu0
        %v2989 = vadd.f32 0.0, %v2988
        %v2990 = vpop.f32.mrb[0].mxu0
        %2991 = vmatprep.mubr.f32.mxu0 0.0
        %2992 = vmatmul.mubr.f32.gmra.mrb[0].mxu0 %v2856
        %v2993 = vpop.f32.mrb[0].mxu0
        %v2994 = vadd.f32 0.0, %v2993
        %v2995 = vpop.f32.mrb[0].mxu0
        %2996 = vmatprep.mubr.f32.mxu0 0.0
        %2997 = vmatmul.mubr.f32.gmra.mrb[0].mxu0 %v2859
        %v2998 = vpop.f32.mrb[0].mxu0
        %v2999 = vadd.f32 0.0, %v2998
        %v3000 = vpop.f32.mrb[0].mxu0
        %3001 = vmatprep.mubr.f32.mxu0 0.0
        %3002 = vmatmul.mubr.f32.gmra.mrb[0].mxu0 %v2862
        %v3003 = vpop.f32.mrb[0].mxu0
        %v3004 = vadd.f32 0.0, %v3003
        %v3005 = vpop.f32.mrb[0].mxu0
        %3006 = vmatprep.mubr.f32.mxu0 0.0
        %3007 = vmatmul.mubr.f32.gmra.mrb[0].mxu0 %v2865
        %v3008 = vpop.f32.mrb[0].mxu0
        %v3009 = vadd.f32 0.0, %v3008
        %v3010 = vpop.f32.mrb[0].mxu0
        %3011 = vdwg.mxu0
        %v3013 = vsel %vm652, %v1705, 0
        %v3016 = vsel %vm652, %v1706, 0
        %v3019 = vsel %vm652, %v1707, 0
        %v3022 = vsel %vm652, %v1708, 0
        %v3025 = vsel %vm652, %v1709, 0
        %v3028 = vsel %vm652, %v1710, 0
        %v3031 = vsel %vm652, %v1711, 0
        %v3034 = vsel %vm652, %v1712, 0
        %v3037 = vsel %vm652, %v1713, 0
        %v3040 = vsel %vm652, %v1714, 0
        %v3043 = vsel %vm652, %v1715, 0
        %v3046 = vsel %vm652, %v1716, 0
        %v3049 = vsel %vm652, %v1717, 0
        %v3052 = vsel %vm652, %v1718, 0
        %v3055 = vsel %vm652, %v1719, 0
        %v3058 = vsel %vm652, %v1720, 0
        %3060 = vmatprep.subr.mxu0 0.0
        %3061 = vmatpush1.msra.mxu0 %v1721
        %3062 = vmatprep.subr.mxu0 0.0
        %3063 = vmatpush1.msra.mxu0 0.0
        %3064 = vmatprep.subr.mxu0 0.0
        %3065 = vmatpush1.msra.mxu0 0.0
        %3066 = vmatprep.subr.mxu0 0.0
        %3067 = vmatpush1.msra.mxu0 0.0
        %3068 = vmatprep.subr.mxu0 0.0
        %3069 = vmatpush1.msra.mxu0 0.0
        %3070 = vmatprep.subr.mxu0 0.0
        %3071 = vmatpush1.msra.mxu0 0.0
        %3072 = vmatprep.subr.mxu0 0.0
        %3073 = vmatpush1.msra.mxu0 0.0
        %3074 = vmatprep.subr.mxu0 0.0
        %3075 = vmatpush1.msra.mxu0 0.0
        %3076 = vmatprep.subr.mxu0 0.0
        %3077 = vmatpush1.msra.mxu0 0.0
        %3078 = vmatprep.subr.mxu0 0.0
        %3079 = vmatpush1.msra.mxu0 0.0
        %3080 = vmatprep.subr.mxu0 0.0
        %3081 = vmatpush1.msra.mxu0 0.0
        %3082 = vmatprep.subr.mxu0 0.0
        %3083 = vmatpush1.msra.mxu0 0.0
        %3084 = vmatprep.subr.mxu0 0.0
        %3085 = vmatpush1.msra.mxu0 0.0
        %3086 = vmatprep.subr.mxu0 0.0
        %3087 = vmatpush1.msra.mxu0 0.0
        %3088 = vmatprep.subr.mxu0 0.0
        %3089 = vmatpush1.msra.mxu0 0.0
        %3090 = vmatprep.subr.mxu0 0.0
        %3091 = vmatpush1.msra.mxu0 0.0
        %3092 = vmatprep.subr.mxu0 0.0
        %3093 = vmatpush1.msra.mxu0 0.0
        %3094 = vmatprep.subr.mxu0 0.0
        %3095 = vmatpush1.msra.mxu0 0.0
        %3096 = vmatprep.subr.mxu0 0.0
        %3097 = vmatpush1.msra.mxu0 0.0
        %3098 = vmatprep.subr.mxu0 0.0
        %3099 = vmatpush1.msra.mxu0 0.0
        %3100 = vmatprep.subr.mxu0 0.0
        %3101 = vmatpush1.msra.mxu0 0.0
        %3102 = vmatprep.subr.mxu0 0.0
        %3103 = vmatpush1.msra.mxu0 0.0
        %3104 = vmatprep.subr.mxu0 0.0
        %3105 = vmatpush1.msra.mxu0 0.0
        %3106 = vmatprep.subr.mxu0 0.0
        %3107 = vmatpush1.msra.mxu0 0.0
        %3108 = vmatprep.subr.mxu0 0.0
        %3109 = vmatpush1.msra.mxu0 0.0
        %3110 = vmatprep.subr.mxu0 0.0
        %3111 = vmatpush1.msra.mxu0 0.0
        %3112 = vmatprep.subr.mxu0 0.0
        %3113 = vmatpush1.msra.mxu0 0.0
        %3114 = vmatprep.subr.mxu0 0.0
        %3115 = vmatpush1.msra.mxu0 0.0
        %3116 = vmatprep.subr.mxu0 0.0
        %3117 = vmatpush1.msra.mxu0 0.0
        %3118 = vmatprep.subr.mxu0 0.0
        %3119 = vmatpush1.msra.mxu0 0.0
        %3120 = vmatprep.subr.mxu0 0.0
        %3121 = vmatpush1.msra.mxu0 0.0
        %3122 = vmatprep.subr.mxu0 0.0
        %3123 = vmatpush1.msra.mxu0 0.0
        %3124 = vmatprep.mubr.f32.mxu0 0.0
        %3125 = vmatmul.mubr.f32.gmra.mrb[0].mxu0 %v3013
        %v3126 = vpop.f32.mrb[0].mxu0
        %v3127 = vadd.f32 %v2934, %v3126
        %v3128 = vpop.f32.mrb[0].mxu0
        %3129 = vmatprep.mubr.f32.mxu0 0.0
        %3130 = vmatmul.mubr.f32.gmra.mrb[0].mxu0 %v3016
        %v3131 = vpop.f32.mrb[0].mxu0
        %v3132 = vadd.f32 %v2939, %v3131
        %v3133 = vpop.f32.mrb[0].mxu0
        %3134 = vmatprep.mubr.f32.mxu0 0.0
        %3135 = vmatmul.mubr.f32.gmra.mrb[0].mxu0 %v3019
        %v3136 = vpop.f32.mrb[0].mxu0
        %v3137 = vadd.f32 %v2944, %v3136
        %v3138 = vpop.f32.mrb[0].mxu0
        %3139 = vmatprep.mubr.f32.mxu0 0.0
        %3140 = vmatmul.mubr.f32.gmra.mrb[0].mxu0 %v3022
        %v3141 = vpop.f32.mrb[0].mxu0
        %v3142 = vadd.f32 %v2949, %v3141
        %v3143 = vpop.f32.mrb[0].mxu0
        %3144 = vmatprep.mubr.f32.mxu0 0.0
        %3145 = vmatmul.mubr.f32.gmra.mrb[0].mxu0 %v3025
        %v3146 = vpop.f32.mrb[0].mxu0
        %v3147 = vadd.f32 %v2954, %v3146
        %v3148 = vpop.f32.mrb[0].mxu0
        %3149 = vmatprep.mubr.f32.mxu0 0.0
        %3150 = vmatmul.mubr.f32.gmra.mrb[0].mxu0 %v3028
        %v3151 = vpop.f32.mrb[0].mxu0
        %v3152 = vadd.f32 %v2959, %v3151
        %v3153 = vpop.f32.mrb[0].mxu0
        %3154 = vmatprep.mubr.f32.mxu0 0.0
        %3155 = vmatmul.mubr.f32.gmra.mrb[0].mxu0 %v3031
        %v3156 = vpop.f32.mrb[0].mxu0
        %v3157 = vadd.f32 %v2964, %v3156
        %v3158 = vpop.f32.mrb[0].mxu0
        %3159 = vmatprep.mubr.f32.mxu0 0.0
        %3160 = vmatmul.mubr.f32.gmra.mrb[0].mxu0 %v3034
        %v3161 = vpop.f32.mrb[0].mxu0
        %v3162 = vadd.f32 %v2969, %v3161
        %v3163 = vpop.f32.mrb[0].mxu0
        %3164 = vmatprep.mubr.f32.mxu0 0.0
        %3165 = vmatmul.mubr.f32.gmra.mrb[0].mxu0 %v3037
        %v3166 = vpop.f32.mrb[0].mxu0
        %v3167 = vadd.f32 %v2974, %v3166
        %v3168 = vpop.f32.mrb[0].mxu0
        %3169 = vmatprep.mubr.f32.mxu0 0.0
        %3170 = vmatmul.mubr.f32.gmra.mrb[0].mxu0 %v3040
        %v3171 = vpop.f32.mrb[0].mxu0
        %v3172 = vadd.f32 %v2979, %v3171
        %v3173 = vpop.f32.mrb[0].mxu0
        %3174 = vmatprep.mubr.f32.mxu0 0.0
        %3175 = vmatmul.mubr.f32.gmra.mrb[0].mxu0 %v3043
        %v3176 = vpop.f32.mrb[0].mxu0
        %v3177 = vadd.f32 %v2984, %v3176
        %v3178 = vpop.f32.mrb[0].mxu0
        %3179 = vmatprep.mubr.f32.mxu0 0.0
        %3180 = vmatmul.mubr.f32.gmra.mrb[0].mxu0 %v3046
        %v3181 = vpop.f32.mrb[0].mxu0
        %v3182 = vadd.f32 %v2989, %v3181
        %v3183 = vpop.f32.mrb[0].mxu0
        %3184 = vmatprep.mubr.f32.mxu0 0.0
        %3185 = vmatmul.mubr.f32.gmra.mrb[0].mxu0 %v3049
        %v3186 = vpop.f32.mrb[0].mxu0
        %v3187 = vadd.f32 %v2994, %v3186
        %v3188 = vpop.f32.mrb[0].mxu0
        %3189 = vmatprep.mubr.f32.mxu0 0.0
        %3190 = vmatmul.mubr.f32.gmra.mrb[0].mxu0 %v3052
        %v3191 = vpop.f32.mrb[0].mxu0
        %v3192 = vadd.f32 %v2999, %v3191
        %v3193 = vpop.f32.mrb[0].mxu0
        %3194 = vmatprep.mubr.f32.mxu0 0.0
        %3195 = vmatmul.mubr.f32.gmra.mrb[0].mxu0 %v3055
        %v3196 = vpop.f32.mrb[0].mxu0
        %v3197 = vadd.f32 %v3004, %v3196
        %v3198 = vpop.f32.mrb[0].mxu0
        %3199 = vmatprep.mubr.f32.mxu0 0.0
        %3200 = vmatmul.mubr.f32.gmra.mrb[0].mxu0 %v3058
        %v3201 = vpop.f32.mrb[0].mxu0
        %v3202 = vadd.f32 %v3009, %v3201
        %v3203 = vpop.f32.mrb[0].mxu0
        %3204 = vdwg.mxu0
        %3205 = vrot.lane.b32.xlu0 %v530, 112
        %v3206 = vpop.permute.xlu0 %3205
        %3207 = vrot.lane.b32.xlu0 %v535, 112
        %v3208 = vpop.permute.xlu0 %3207
        %3209 = vrot.lane.b32.xlu0 %v540, 112
        %v3210 = vpop.permute.xlu0 %3209
        %3211 = vrot.lane.b32.xlu0 %v545, 112
        %v3212 = vpop.permute.xlu0 %3211
        %3213 = vrot.lane.b32.xlu0 %v530, 80
        %v3214 = vpop.permute.xlu0 %3213
        %3215 = vrot.lane.b32.xlu0 %v535, 80
        %v3216 = vpop.permute.xlu0 %3215
        %3217 = vrot.lane.b32.xlu0 %v540, 80
        %v3218 = vpop.permute.xlu0 %3217
        %3219 = vrot.lane.b32.xlu0 %v545, 80
        %v3220 = vpop.permute.xlu0 %3219
        %v3221 = vsel %vm652, %v3206, 0
        %v3223 = vsel %vm652, %v3208, 0
        %v3225 = vsel %vm652, %v3210, 0
        %v3227 = vsel %vm652, %v3212, 0
        %v3229 = vsel %vm652, %v3214, 0
        %v3231 = vsel %vm652, %v3216, 0
        %v3233 = vsel %vm652, %v3218, 0
        %v3235 = vsel %vm652, %v3220, 0
        %3237 = vmatprep.subr.mxu0 0.0
        %3238 = vmatpush1.xpose.msra.mxu0 %v3229
        %3239 = vmatprep.subr.mxu0 0.0
        %3240 = vmatpush1.xpose.msra.mxu0 %v3231
        %3241 = vmatprep.subr.mxu0 0.0
        %3242 = vmatpush1.xpose.msra.mxu0 %v3233
        %3243 = vmatprep.subr.mxu0 0.0
        %3244 = vmatpush1.xpose.msra.mxu0 %v3235
        %3245 = vmatprep.subr.mxu0 0.0
        %3246 = vmatpush1.xpose.msra.mxu0 0.0
        %3247 = vmatprep.subr.mxu0 0.0
        %3248 = vmatpush1.xpose.msra.mxu0 0.0
        %3249 = vmatprep.subr.mxu0 0.0
        %3250 = vmatpush1.xpose.msra.mxu0 0.0
        %3251 = vmatprep.subr.mxu0 0.0
        %3252 = vmatpush1.xpose.msra.mxu0 0.0
        %3253 = vmatprep.subr.mxu0 0.0
        %3254 = vmatpush1.xpose.msra.mxu0 0.0
        %3255 = vmatprep.subr.mxu0 0.0
        %3256 = vmatpush1.xpose.msra.mxu0 0.0
        %3257 = vmatprep.subr.mxu0 0.0
        %3258 = vmatpush1.xpose.msra.mxu0 0.0
        %3259 = vmatprep.subr.mxu0 0.0
        %3260 = vmatpush1.xpose.msra.mxu0 0.0
        %3261 = vmatprep.subr.mxu0 0.0
        %3262 = vmatpush1.xpose.msra.mxu0 0.0
        %3263 = vmatprep.subr.mxu0 0.0
        %3264 = vmatpush1.xpose.msra.mxu0 0.0
        %3265 = vmatprep.subr.mxu0 0.0
        %3266 = vmatpush1.xpose.msra.mxu0 0.0
        %3267 = vmatprep.subr.mxu0 0.0
        %3268 = vmatpush1.xpose.msra.mxu0 0.0
        %3269 = vmatprep.subr.mxu0 0.0
        %3270 = vmatpush1.xpose.msra.mxu0 0.0
        %3271 = vmatprep.subr.mxu0 0.0
        %3272 = vmatpush1.xpose.msra.mxu0 0.0
        %3273 = vmatprep.subr.mxu0 0.0
        %3274 = vmatpush1.xpose.msra.mxu0 0.0
        %3275 = vmatprep.subr.mxu0 0.0
        %3276 = vmatpush1.xpose.msra.mxu0 0.0
        %3277 = vmatprep.subr.mxu0 0.0
        %3278 = vmatpush1.xpose.msra.mxu0 0.0
        %3279 = vmatprep.subr.mxu0 0.0
        %3280 = vmatpush1.xpose.msra.mxu0 0.0
        %3281 = vmatprep.subr.mxu0 0.0
        %3282 = vmatpush1.xpose.msra.mxu0 0.0
        %3283 = vmatprep.subr.mxu0 0.0
        %3284 = vmatpush1.xpose.msra.mxu0 0.0
        %3285 = vmatprep.subr.mxu0 0.0
        %3286 = vmatpush1.xpose.msra.mxu0 0.0
        %3287 = vmatprep.subr.mxu0 0.0
        %3288 = vmatpush1.xpose.msra.mxu0 0.0
        %3289 = vmatprep.subr.mxu0 0.0
        %3290 = vmatpush1.xpose.msra.mxu0 0.0
        %3291 = vmatprep.subr.mxu0 0.0
        %3292 = vmatpush1.xpose.msra.mxu0 0.0
        %3293 = vmatprep.subr.mxu0 0.0
        %3294 = vmatpush1.xpose.msra.mxu0 0.0
        %3295 = vmatprep.subr.mxu0 0.0
        %3296 = vmatpush1.xpose.msra.mxu0 0.0
        %3297 = vmatprep.subr.mxu0 0.0
        %3298 = vmatpush1.xpose.msra.mxu0 0.0
        %3299 = vmatprep.subr.mxu0 0.0
        %3300 = vmatpush1.xpose.msra.mxu0 0.0
        %3301 = vmatprep.mubr.f32.mxu0 0.0
        %3302 = vmatmul.mubr.f32.gmra.mrb[0].mxu0 %v3221
        %v3303 = vpop.f32.mrb[0].mxu0
        %v3304 = vadd.f32 %v616, %v3303
        %v3305 = vpop.f32.mrb[0].mxu0
        %3306 = vmatprep.mubr.f32.mxu0 0.0
        %3307 = vmatmul.mubr.f32.gmra.mrb[0].mxu0 %v3223
        %v3308 = vpop.f32.mrb[0].mxu0
        %v3309 = vadd.f32 %v617, %v3308
        %v3310 = vpop.f32.mrb[0].mxu0
        %3311 = vmatprep.mubr.f32.mxu0 0.0
        %3312 = vmatmul.mubr.f32.gmra.mrb[0].mxu0 %v3225
        %v3313 = vpop.f32.mrb[0].mxu0
        %v3314 = vadd.f32 %v618, %v3313
        %v3315 = vpop.f32.mrb[0].mxu0
        %3316 = vmatprep.mubr.f32.mxu0 0.0
        %3317 = vmatmul.mubr.f32.gmra.mrb[0].mxu0 %v3227
        %v3318 = vpop.f32.mrb[0].mxu0
        %v3319 = vadd.f32 %v619, %v3318
        %v3320 = vpop.f32.mrb[0].mxu0
        %3321 = vdwg.mxu0
        %3322 = vrot.lane.b32.xlu0 %v550, 112
        %v3323 = vpop.permute.xlu0 %3322
        %3324 = vrot.lane.b32.xlu0 %v555, 112
        %v3325 = vpop.permute.xlu0 %3324
        %3326 = vrot.lane.b32.xlu0 %v560, 112
        %v3327 = vpop.permute.xlu0 %3326
        %3328 = vrot.lane.b32.xlu0 %v565, 112
        %v3329 = vpop.permute.xlu0 %3328
        %3330 = vrot.lane.b32.xlu0 %v550, 80
        %v3331 = vpop.permute.xlu0 %3330
        %3332 = vrot.lane.b32.xlu0 %v555, 80
        %v3333 = vpop.permute.xlu0 %3332
        %3334 = vrot.lane.b32.xlu0 %v560, 80
        %v3335 = vpop.permute.xlu0 %3334
        %3336 = vrot.lane.b32.xlu0 %v565, 80
        %v3337 = vpop.permute.xlu0 %3336
        %v3338 = vsel %vm652, %v3323, 0
        %v3340 = vsel %vm652, %v3325, 0
        %v3342 = vsel %vm652, %v3327, 0
        %v3344 = vsel %vm652, %v3329, 0
        %v3346 = vsel %vm652, %v3331, 0
        %v3348 = vsel %vm652, %v3333, 0
        %v3350 = vsel %vm652, %v3335, 0
        %v3352 = vsel %vm652, %v3337, 0
        %3354 = vmatprep.subr.mxu0 0.0
        %3355 = vmatpush1.xpose.msra.mxu0 %v3346
        %3356 = vmatprep.subr.mxu0 0.0
        %3357 = vmatpush1.xpose.msra.mxu0 %v3348
        %3358 = vmatprep.subr.mxu0 0.0
        %3359 = vmatpush1.xpose.msra.mxu0 %v3350
        %3360 = vmatprep.subr.mxu0 0.0
        %3361 = vmatpush1.xpose.msra.mxu0 %v3352
        %3362 = vmatprep.subr.mxu0 0.0
        %3363 = vmatpush1.xpose.msra.mxu0 0.0
        %3364 = vmatprep.subr.mxu0 0.0
        %3365 = vmatpush1.xpose.msra.mxu0 0.0
        %3366 = vmatprep.subr.mxu0 0.0
        %3367 = vmatpush1.xpose.msra.mxu0 0.0
        %3368 = vmatprep.subr.mxu0 0.0
        %3369 = vmatpush1.xpose.msra.mxu0 0.0
        %3370 = vmatprep.subr.mxu0 0.0
        %3371 = vmatpush1.xpose.msra.mxu0 0.0
        %3372 = vmatprep.subr.mxu0 0.0
        %3373 = vmatpush1.xpose.msra.mxu0 0.0
        %3374 = vmatprep.subr.mxu0 0.0
        %3375 = vmatpush1.xpose.msra.mxu0 0.0
        %3376 = vmatprep.subr.mxu0 0.0
        %3377 = vmatpush1.xpose.msra.mxu0 0.0
        %3378 = vmatprep.subr.mxu0 0.0
        %3379 = vmatpush1.xpose.msra.mxu0 0.0
        %3380 = vmatprep.subr.mxu0 0.0
        %3381 = vmatpush1.xpose.msra.mxu0 0.0
        %3382 = vmatprep.subr.mxu0 0.0
        %3383 = vmatpush1.xpose.msra.mxu0 0.0
        %3384 = vmatprep.subr.mxu0 0.0
        %3385 = vmatpush1.xpose.msra.mxu0 0.0
        %3386 = vmatprep.subr.mxu0 0.0
        %3387 = vmatpush1.xpose.msra.mxu0 0.0
        %3388 = vmatprep.subr.mxu0 0.0
        %3389 = vmatpush1.xpose.msra.mxu0 0.0
        %3390 = vmatprep.subr.mxu0 0.0
        %3391 = vmatpush1.xpose.msra.mxu0 0.0
        %3392 = vmatprep.subr.mxu0 0.0
        %3393 = vmatpush1.xpose.msra.mxu0 0.0
        %3394 = vmatprep.subr.mxu0 0.0
        %3395 = vmatpush1.xpose.msra.mxu0 0.0
        %3396 = vmatprep.subr.mxu0 0.0
        %3397 = vmatpush1.xpose.msra.mxu0 0.0
        %3398 = vmatprep.subr.mxu0 0.0
        %3399 = vmatpush1.xpose.msra.mxu0 0.0
        %3400 = vmatprep.subr.mxu0 0.0
        %3401 = vmatpush1.xpose.msra.mxu0 0.0
        %3402 = vmatprep.subr.mxu0 0.0
        %3403 = vmatpush1.xpose.msra.mxu0 0.0
        %3404 = vmatprep.subr.mxu0 0.0
        %3405 = vmatpush1.xpose.msra.mxu0 0.0
        %3406 = vmatprep.subr.mxu0 0.0
        %3407 = vmatpush1.xpose.msra.mxu0 0.0
        %3408 = vmatprep.subr.mxu0 0.0
        %3409 = vmatpush1.xpose.msra.mxu0 0.0
        %3410 = vmatprep.subr.mxu0 0.0
        %3411 = vmatpush1.xpose.msra.mxu0 0.0
        %3412 = vmatprep.subr.mxu0 0.0
        %3413 = vmatpush1.xpose.msra.mxu0 0.0
        %3414 = vmatprep.subr.mxu0 0.0
        %3415 = vmatpush1.xpose.msra.mxu0 0.0
        %3416 = vmatprep.subr.mxu0 0.0
        %3417 = vmatpush1.xpose.msra.mxu0 0.0
        %3418 = vmatprep.mubr.f32.mxu0 0.0
        %3419 = vmatmul.mubr.f32.gmra.mrb[0].mxu0 %v3338
        %v3420 = vpop.f32.mrb[0].mxu0
        %v3421 = vadd.f32 %v616, %v3420
        %v3422 = vpop.f32.mrb[0].mxu0
        %3423 = vmatprep.mubr.f32.mxu0 0.0
        %3424 = vmatmul.mubr.f32.gmra.mrb[0].mxu0 %v3340
        %v3425 = vpop.f32.mrb[0].mxu0
        %v3426 = vadd.f32 %v617, %v3425
        %v3427 = vpop.f32.mrb[0].mxu0
        %3428 = vmatprep.mubr.f32.mxu0 0.0
        %3429 = vmatmul.mubr.f32.gmra.mrb[0].mxu0 %v3342
        %v3430 = vpop.f32.mrb[0].mxu0
        %v3431 = vadd.f32 %v618, %v3430
        %v3432 = vpop.f32.mrb[0].mxu0
        %3433 = vmatprep.mubr.f32.mxu0 0.0
        %3434 = vmatmul.mubr.f32.gmra.mrb[0].mxu0 %v3344
        %v3435 = vpop.f32.mrb[0].mxu0
        %v3436 = vadd.f32 %v619, %v3435
        %v3437 = vpop.f32.mrb[0].mxu0
        %3438 = vdwg.mxu0
        %3439 = vrot.lane.b32.xlu0 %v570, 112
        %v3440 = vpop.permute.xlu0 %3439
        %3441 = vrot.lane.b32.xlu0 %v575, 112
        %v3442 = vpop.permute.xlu0 %3441
        %3443 = vrot.lane.b32.xlu0 %v580, 112
        %v3444 = vpop.permute.xlu0 %3443
        %3445 = vrot.lane.b32.xlu0 %v585, 112
        %v3446 = vpop.permute.xlu0 %3445
        %3447 = vrot.lane.b32.xlu0 %v570, 80
        %v3448 = vpop.permute.xlu0 %3447
        %3449 = vrot.lane.b32.xlu0 %v575, 80
        %v3450 = vpop.permute.xlu0 %3449
        %3451 = vrot.lane.b32.xlu0 %v580, 80
        %v3452 = vpop.permute.xlu0 %3451
        %3453 = vrot.lane.b32.xlu0 %v585, 80
        %v3454 = vpop.permute.xlu0 %3453
        %v3455 = vsel %vm652, %v3440, 0
        %v3457 = vsel %vm652, %v3442, 0
        %v3459 = vsel %vm652, %v3444, 0
        %v3461 = vsel %vm652, %v3446, 0
        %v3463 = vsel %vm652, %v3448, 0
        %v3465 = vsel %vm652, %v3450, 0
        %v3467 = vsel %vm652, %v3452, 0
        %v3469 = vsel %vm652, %v3454, 0
        %3471 = vmatprep.subr.mxu0 0.0
        %3472 = vmatpush1.xpose.msra.mxu0 %v3463
        %3473 = vmatprep.subr.mxu0 0.0
        %3474 = vmatpush1.xpose.msra.mxu0 %v3465
        %3475 = vmatprep.subr.mxu0 0.0
        %3476 = vmatpush1.xpose.msra.mxu0 %v3467
        %3477 = vmatprep.subr.mxu0 0.0
        %3478 = vmatpush1.xpose.msra.mxu0 %v3469
        %3479 = vmatprep.subr.mxu0 0.0
        %3480 = vmatpush1.xpose.msra.mxu0 0.0
        %3481 = vmatprep.subr.mxu0 0.0
        %3482 = vmatpush1.xpose.msra.mxu0 0.0
        %3483 = vmatprep.subr.mxu0 0.0
        %3484 = vmatpush1.xpose.msra.mxu0 0.0
        %3485 = vmatprep.subr.mxu0 0.0
        %3486 = vmatpush1.xpose.msra.mxu0 0.0
        %3487 = vmatprep.subr.mxu0 0.0
        %3488 = vmatpush1.xpose.msra.mxu0 0.0
        %3489 = vmatprep.subr.mxu0 0.0
        %3490 = vmatpush1.xpose.msra.mxu0 0.0
        %3491 = vmatprep.subr.mxu0 0.0
        %3492 = vmatpush1.xpose.msra.mxu0 0.0
        %3493 = vmatprep.subr.mxu0 0.0
        %3494 = vmatpush1.xpose.msra.mxu0 0.0
        %3495 = vmatprep.subr.mxu0 0.0
        %3496 = vmatpush1.xpose.msra.mxu0 0.0
        %3497 = vmatprep.subr.mxu0 0.0
        %3498 = vmatpush1.xpose.msra.mxu0 0.0
        %3499 = vmatprep.subr.mxu0 0.0
        %3500 = vmatpush1.xpose.msra.mxu0 0.0
        %3501 = vmatprep.subr.mxu0 0.0
        %3502 = vmatpush1.xpose.msra.mxu0 0.0
        %3503 = vmatprep.subr.mxu0 0.0
        %3504 = vmatpush1.xpose.msra.mxu0 0.0
        %3505 = vmatprep.subr.mxu0 0.0
        %3506 = vmatpush1.xpose.msra.mxu0 0.0
        %3507 = vmatprep.subr.mxu0 0.0
        %3508 = vmatpush1.xpose.msra.mxu0 0.0
        %3509 = vmatprep.subr.mxu0 0.0
        %3510 = vmatpush1.xpose.msra.mxu0 0.0
        %3511 = vmatprep.subr.mxu0 0.0
        %3512 = vmatpush1.xpose.msra.mxu0 0.0
        %3513 = vmatprep.subr.mxu0 0.0
        %3514 = vmatpush1.xpose.msra.mxu0 0.0
        %3515 = vmatprep.subr.mxu0 0.0
        %3516 = vmatpush1.xpose.msra.mxu0 0.0
        %3517 = vmatprep.subr.mxu0 0.0
        %3518 = vmatpush1.xpose.msra.mxu0 0.0
        %3519 = vmatprep.subr.mxu0 0.0
        %3520 = vmatpush1.xpose.msra.mxu0 0.0
        %3521 = vmatprep.subr.mxu0 0.0
        %3522 = vmatpush1.xpose.msra.mxu0 0.0
        %3523 = vmatprep.subr.mxu0 0.0
        %3524 = vmatpush1.xpose.msra.mxu0 0.0
        %3525 = vmatprep.subr.mxu0 0.0
        %3526 = vmatpush1.xpose.msra.mxu0 0.0
        %3527 = vmatprep.subr.mxu0 0.0
        %3528 = vmatpush1.xpose.msra.mxu0 0.0
        %3529 = vmatprep.subr.mxu0 0.0
        %3530 = vmatpush1.xpose.msra.mxu0 0.0
        %3531 = vmatprep.subr.mxu0 0.0
        %3532 = vmatpush1.xpose.msra.mxu0 0.0
        %3533 = vmatprep.subr.mxu0 0.0
        %3534 = vmatpush1.xpose.msra.mxu0 0.0
        %3535 = vmatprep.mubr.f32.mxu0 0.0
        %3536 = vmatmul.mubr.f32.gmra.mrb[0].mxu0 %v3455
        %v3537 = vpop.f32.mrb[0].mxu0
        %v3538 = vadd.f32 %v616, %v3537
        %v3539 = vpop.f32.mrb[0].mxu0
        %3540 = vmatprep.mubr.f32.mxu0 0.0
        %3541 = vmatmul.mubr.f32.gmra.mrb[0].mxu0 %v3457
        %v3542 = vpop.f32.mrb[0].mxu0
        %v3543 = vadd.f32 %v617, %v3542
        %v3544 = vpop.f32.mrb[0].mxu0
        %3545 = vmatprep.mubr.f32.mxu0 0.0
        %3546 = vmatmul.mubr.f32.gmra.mrb[0].mxu0 %v3459
        %v3547 = vpop.f32.mrb[0].mxu0
        %v3548 = vadd.f32 %v618, %v3547
        %v3549 = vpop.f32.mrb[0].mxu0
        %3550 = vmatprep.mubr.f32.mxu0 0.0
        %3551 = vmatmul.mubr.f32.gmra.mrb[0].mxu0 %v3461
        %v3552 = vpop.f32.mrb[0].mxu0
        %v3553 = vadd.f32 %v619, %v3552
        %v3554 = vpop.f32.mrb[0].mxu0
        %3555 = vdwg.mxu0
        %3556 = vrot.lane.b32.xlu0 %v590, 112
        %v3557 = vpop.permute.xlu0 %3556
        %3558 = vrot.lane.b32.xlu0 %v595, 112
        %v3559 = vpop.permute.xlu0 %3558
        %3560 = vrot.lane.b32.xlu0 %v600, 112
        %v3561 = vpop.permute.xlu0 %3560
        %3562 = vrot.lane.b32.xlu0 %v605, 112
        %v3563 = vpop.permute.xlu0 %3562
        %3564 = vrot.lane.b32.xlu0 %v590, 80
        %v3565 = vpop.permute.xlu0 %3564
        %3566 = vrot.lane.b32.xlu0 %v595, 80
        %v3567 = vpop.permute.xlu0 %3566
        %3568 = vrot.lane.b32.xlu0 %v600, 80
        %v3569 = vpop.permute.xlu0 %3568
        %3570 = vrot.lane.b32.xlu0 %v605, 80
        %v3571 = vpop.permute.xlu0 %3570
        %v3572 = vsel %vm652, %v3557, 0
        %v3574 = vsel %vm652, %v3559, 0
        %v3576 = vsel %vm652, %v3561, 0
        %v3578 = vsel %vm652, %v3563, 0
        %v3580 = vsel %vm652, %v3565, 0
        %v3582 = vsel %vm652, %v3567, 0
        %v3584 = vsel %vm652, %v3569, 0
        %v3586 = vsel %vm652, %v3571, 0
        %3588 = vmatprep.subr.mxu0 0.0
        %3589 = vmatpush1.xpose.msra.mxu0 %v3580
        %3590 = vmatprep.subr.mxu0 0.0
        %3591 = vmatpush1.xpose.msra.mxu0 %v3582
        %3592 = vmatprep.subr.mxu0 0.0
        %3593 = vmatpush1.xpose.msra.mxu0 %v3584
        %3594 = vmatprep.subr.mxu0 0.0
        %3595 = vmatpush1.xpose.msra.mxu0 %v3586
        %3596 = vmatprep.subr.mxu0 0.0
        %3597 = vmatpush1.xpose.msra.mxu0 0.0
        %3598 = vmatprep.subr.mxu0 0.0
        %3599 = vmatpush1.xpose.msra.mxu0 0.0
        %3600 = vmatprep.subr.mxu0 0.0
        %3601 = vmatpush1.xpose.msra.mxu0 0.0
        %3602 = vmatprep.subr.mxu0 0.0
        %3603 = vmatpush1.xpose.msra.mxu0 0.0
        %3604 = vmatprep.subr.mxu0 0.0
        %3605 = vmatpush1.xpose.msra.mxu0 0.0
        %3606 = vmatprep.subr.mxu0 0.0
        %3607 = vmatpush1.xpose.msra.mxu0 0.0
        %3608 = vmatprep.subr.mxu0 0.0
        %3609 = vmatpush1.xpose.msra.mxu0 0.0
        %3610 = vmatprep.subr.mxu0 0.0
        %3611 = vmatpush1.xpose.msra.mxu0 0.0
        %3612 = vmatprep.subr.mxu0 0.0
        %3613 = vmatpush1.xpose.msra.mxu0 0.0
        %3614 = vmatprep.subr.mxu0 0.0
        %3615 = vmatpush1.xpose.msra.mxu0 0.0
        %3616 = vmatprep.subr.mxu0 0.0
        %3617 = vmatpush1.xpose.msra.mxu0 0.0
        %3618 = vmatprep.subr.mxu0 0.0
        %3619 = vmatpush1.xpose.msra.mxu0 0.0
        %3620 = vmatprep.subr.mxu0 0.0
        %3621 = vmatpush1.xpose.msra.mxu0 0.0
        %3622 = vmatprep.subr.mxu0 0.0
        %3623 = vmatpush1.xpose.msra.mxu0 0.0
        %3624 = vmatprep.subr.mxu0 0.0
        %3625 = vmatpush1.xpose.msra.mxu0 0.0
        %3626 = vmatprep.subr.mxu0 0.0
        %3627 = vmatpush1.xpose.msra.mxu0 0.0
        %3628 = vmatprep.subr.mxu0 0.0
        %3629 = vmatpush1.xpose.msra.mxu0 0.0
        %3630 = vmatprep.subr.mxu0 0.0
        %3631 = vmatpush1.xpose.msra.mxu0 0.0
        %3632 = vmatprep.subr.mxu0 0.0
        %3633 = vmatpush1.xpose.msra.mxu0 0.0
        %3634 = vmatprep.subr.mxu0 0.0
        %3635 = vmatpush1.xpose.msra.mxu0 0.0
        %3636 = vmatprep.subr.mxu0 0.0
        %3637 = vmatpush1.xpose.msra.mxu0 0.0
        %3638 = vmatprep.subr.mxu0 0.0
        %3639 = vmatpush1.xpose.msra.mxu0 0.0
        %3640 = vmatprep.subr.mxu0 0.0
        %3641 = vmatpush1.xpose.msra.mxu0 0.0
        %3642 = vmatprep.subr.mxu0 0.0
        %3643 = vmatpush1.xpose.msra.mxu0 0.0
        %3644 = vmatprep.subr.mxu0 0.0
        %3645 = vmatpush1.xpose.msra.mxu0 0.0
        %3646 = vmatprep.subr.mxu0 0.0
        %3647 = vmatpush1.xpose.msra.mxu0 0.0
        %3648 = vmatprep.subr.mxu0 0.0
        %3649 = vmatpush1.xpose.msra.mxu0 0.0
        %3650 = vmatprep.subr.mxu0 0.0
        %3651 = vmatpush1.xpose.msra.mxu0 0.0
        %3652 = vmatprep.mubr.f32.mxu0 0.0
        %3653 = vmatmul.mubr.f32.gmra.mrb[0].mxu0 %v3572
        %v3654 = vpop.f32.mrb[0].mxu0
        %v3655 = vadd.f32 %v616, %v3654
        %v3656 = vpop.f32.mrb[0].mxu0
        %3657 = vmatprep.mubr.f32.mxu0 0.0
        %3658 = vmatmul.mubr.f32.gmra.mrb[0].mxu0 %v3574
        %v3659 = vpop.f32.mrb[0].mxu0
        %v3660 = vadd.f32 %v617, %v3659
        %v3661 = vpop.f32.mrb[0].mxu0
        %3662 = vmatprep.mubr.f32.mxu0 0.0
        %3663 = vmatmul.mubr.f32.gmra.mrb[0].mxu0 %v3576
        %v3664 = vpop.f32.mrb[0].mxu0
        %v3665 = vadd.f32 %v618, %v3664
        %v3666 = vpop.f32.mrb[0].mxu0
        %3667 = vmatprep.mubr.f32.mxu0 0.0
        %3668 = vmatmul.mubr.f32.gmra.mrb[0].mxu0 %v3578
        %v3669 = vpop.f32.mrb[0].mxu0
        %v3670 = vadd.f32 %v619, %v3669
        %v3671 = vpop.f32.mrb[0].mxu0
        %3672 = vdwg.mxu0
        %v3673 = vadd.f32 %v3304, %v624
        %v3674 = vadd.f32 %v3309, %v625
        %v3675 = vadd.f32 %v3314, %v626
        %v3676 = vadd.f32 %v3319, %v627
        %v3677 = vadd.f32 %v3421, %v628
        %v3678 = vadd.f32 %v3426, %v629
        %v3679 = vadd.f32 %v3431, %v630
        %v3680 = vadd.f32 %v3436, %v631
        %v3681 = vadd.f32 %v3538, %v632
        %v3682 = vadd.f32 %v3543, %v633
        %v3683 = vadd.f32 %v3548, %v634
        %v3684 = vadd.f32 %v3553, %v635
        %v3685 = vadd.f32 %v3655, %v636
        %v3686 = vadd.f32 %v3660, %v637
        %v3687 = vadd.f32 %v3665, %v638
        %v3688 = vadd.f32 %v3670, %v639
        %v3689 = vsel %vm414, %v3673, -inf
        %3690 = vmax.xlane.f32.xlu0 %v3689
        %v3691 = vpop.xlane.xlu0 %3690
        %v3692 = vsel %vm414, %v3674, -inf
        %3693 = vmax.xlane.f32.xlu0 %v3692
        %v3694 = vpop.xlane.xlu0 %3693
        %v3695 = vsel %vm414, %v3675, -inf
        %3696 = vmax.xlane.f32.xlu0 %v3695
        %v3697 = vpop.xlane.xlu0 %3696
        %v3698 = vsel %vm414, %v3676, -inf
        %3699 = vmax.xlane.f32.xlu0 %v3698
        %v3700 = vpop.xlane.xlu0 %3699
        %v3701 = vsel %vm414, %v3677, -inf
        %3702 = vmax.xlane.f32.xlu0 %v3701
        %v3703 = vpop.xlane.xlu0 %3702
        %v3704 = vsel %vm414, %v3678, -inf
        %3705 = vmax.xlane.f32.xlu0 %v3704
        %v3706 = vpop.xlane.xlu0 %3705
        %v3707 = vsel %vm414, %v3679, -inf
        %3708 = vmax.xlane.f32.xlu0 %v3707
        %v3709 = vpop.xlane.xlu0 %3708
        %v3710 = vsel %vm414, %v3680, -inf
        %3711 = vmax.xlane.f32.xlu0 %v3710
        %v3712 = vpop.xlane.xlu0 %3711
        %v3713 = vsel %vm414, %v3681, -inf
        %3714 = vmax.xlane.f32.xlu0 %v3713
        %v3715 = vpop.xlane.xlu0 %3714
        %v3716 = vsel %vm414, %v3682, -inf
        %3717 = vmax.xlane.f32.xlu0 %v3716
        %v3718 = vpop.xlane.xlu0 %3717
        %v3719 = vsel %vm414, %v3683, -inf
        %3720 = vmax.xlane.f32.xlu0 %v3719
        %v3721 = vpop.xlane.xlu0 %3720
        %v3722 = vsel %vm414, %v3684, -inf
        %3723 = vmax.xlane.f32.xlu0 %v3722
        %v3724 = vpop.xlane.xlu0 %3723
        %v3725 = vsel %vm414, %v3685, -inf
        %3726 = vmax.xlane.f32.xlu0 %v3725
        %v3727 = vpop.xlane.xlu0 %3726
        %v3728 = vsel %vm414, %v3686, -inf
        %3729 = vmax.xlane.f32.xlu0 %v3728
        %v3730 = vpop.xlane.xlu0 %3729
        %v3731 = vsel %vm414, %v3687, -inf
        %3732 = vmax.xlane.f32.xlu0 %v3731
        %v3733 = vpop.xlane.xlu0 %3732
        %v3734 = vsel %vm414, %v3688, -inf
        %3735 = vmax.xlane.f32.xlu0 %v3734
        %v3736 = vpop.xlane.xlu0 %3735
        %v3737 = vsub.f32 %v3673, %v3691
        %v3738 = vsub.f32 %v3674, %v3694
        %v3739 = vsub.f32 %v3675, %v3697
        %v3740 = vsub.f32 %v3676, %v3700
        %v3741 = vsub.f32 %v3677, %v3703
        %v3742 = vsub.f32 %v3678, %v3706
        %v3743 = vsub.f32 %v3679, %v3709
        %v3744 = vsub.f32 %v3680, %v3712
        %v3745 = vsub.f32 %v3681, %v3715
        %v3746 = vsub.f32 %v3682, %v3718
        %v3747 = vsub.f32 %v3683, %v3721
        %v3748 = vsub.f32 %v3684, %v3724
        %v3749 = vsub.f32 %v3685, %v3727
        %v3750 = vsub.f32 %v3686, %v3730
        %v3751 = vsub.f32 %v3687, %v3733
        %v3752 = vsub.f32 %v3688, %v3736
        %v3753 = vmul.f32 %v3737, 1.442695
        %v3754 = vpow.pop %v3753
        %v3755 = vmul.f32 %v3738, 1.442695
        %v3756 = vpow.pop %v3755
        %v3757 = vmul.f32 %v3739, 1.442695
        %v3758 = vpow.pop %v3757
        %v3759 = vmul.f32 %v3740, 1.442695
        %v3760 = vpow.pop %v3759
        %v3761 = vmul.f32 %v3741, 1.442695
        %v3762 = vpow.pop %v3761
        %v3763 = vmul.f32 %v3742, 1.442695
        %v3764 = vpow.pop %v3763
        %v3765 = vmul.f32 %v3743, 1.442695
        %v3766 = vpow.pop %v3765
        %v3767 = vmul.f32 %v3744, 1.442695
        %v3768 = vpow.pop %v3767
        %v3769 = vmul.f32 %v3745, 1.442695
        %v3770 = vpow.pop %v3769
        %v3771 = vmul.f32 %v3746, 1.442695
        %v3772 = vpow.pop %v3771
        %v3773 = vmul.f32 %v3747, 1.442695
        %v3774 = vpow.pop %v3773
        %v3775 = vmul.f32 %v3748, 1.442695
        %v3776 = vpow.pop %v3775
        %v3777 = vmul.f32 %v3749, 1.442695
        %v3778 = vpow.pop %v3777
        %v3779 = vmul.f32 %v3750, 1.442695
        %v3780 = vpow.pop %v3779
        %v3781 = vmul.f32 %v3751, 1.442695
        %v3782 = vpow.pop %v3781
        %v3783 = vmul.f32 %v3752, 1.442695
        %v3784 = vpow.pop %v3783
        %v3785 = vsel %vm414, %v3754, 0.0
        %3786 = vadd.xlane.f32.xlu0 %v3785
        %v3787 = vpop.xlane.xlu0 %3786
        %v3788 = vsel %vm414, %v3756, 0.0
        %3789 = vadd.xlane.f32.xlu0 %v3788
        %v3790 = vpop.xlane.xlu0 %3789
        %v3791 = vsel %vm414, %v3758, 0.0
        %3792 = vadd.xlane.f32.xlu0 %v3791
        %v3793 = vpop.xlane.xlu0 %3792
        %v3794 = vsel %vm414, %v3760, 0.0
        %3795 = vadd.xlane.f32.xlu0 %v3794
        %v3796 = vpop.xlane.xlu0 %3795
        %v3797 = vsel %vm414, %v3762, 0.0
        %3798 = vadd.xlane.f32.xlu0 %v3797
        %v3799 = vpop.xlane.xlu0 %3798
        %v3800 = vsel %vm414, %v3764, 0.0
        %3801 = vadd.xlane.f32.xlu0 %v3800
        %v3802 = vpop.xlane.xlu0 %3801
        %v3803 = vsel %vm414, %v3766, 0.0
        %3804 = vadd.xlane.f32.xlu0 %v3803
        %v3805 = vpop.xlane.xlu0 %3804
        %v3806 = vsel %vm414, %v3768, 0.0
        %3807 = vadd.xlane.f32.xlu0 %v3806
        %v3808 = vpop.xlane.xlu0 %3807
        %v3809 = vsel %vm414, %v3770, 0.0
        %3810 = vadd.xlane.f32.xlu0 %v3809
        %v3811 = vpop.xlane.xlu0 %3810
        %v3812 = vsel %vm414, %v3772, 0.0
        %3813 = vadd.xlane.f32.xlu0 %v3812
        %v3814 = vpop.xlane.xlu0 %3813
        %v3815 = vsel %vm414, %v3774, 0.0
        %3816 = vadd.xlane.f32.xlu0 %v3815
        %v3817 = vpop.xlane.xlu0 %3816
        %v3818 = vsel %vm414, %v3776, 0.0
        %3819 = vadd.xlane.f32.xlu0 %v3818
        %v3820 = vpop.xlane.xlu0 %3819
        %v3821 = vsel %vm414, %v3778, 0.0
        %3822 = vadd.xlane.f32.xlu0 %v3821
        %v3823 = vpop.xlane.xlu0 %3822
        %v3824 = vsel %vm414, %v3780, 0.0
        %3825 = vadd.xlane.f32.xlu0 %v3824
        %v3826 = vpop.xlane.xlu0 %3825
        %v3827 = vsel %vm414, %v3782, 0.0
        %3828 = vadd.xlane.f32.xlu0 %v3827
        %v3829 = vpop.xlane.xlu0 %3828
        %v3830 = vsel %vm414, %v3784, 0.0
        %3831 = vadd.xlane.f32.xlu0 %v3830
        %v3832 = vpop.xlane.xlu0 %3831
        %v3833 = vrcp.pop %v3787
        %v3834 = vrcp.pop %v3790
        %v3835 = vrcp.pop %v3793
        %v3836 = vrcp.pop %v3796
        %v3837 = vrcp.pop %v3799
        %v3838 = vrcp.pop %v3802
        %v3839 = vrcp.pop %v3805
        %v3840 = vrcp.pop %v3808
        %v3841 = vrcp.pop %v3811
        %v3842 = vrcp.pop %v3814
        %v3843 = vrcp.pop %v3817
        %v3844 = vrcp.pop %v3820
        %v3845 = vrcp.pop %v3823
        %v3846 = vrcp.pop %v3826
        %v3847 = vrcp.pop %v3829
        %v3848 = vrcp.pop %v3832
        %3849 = vrot.lane.b32.xlu0 %v530, 48
        %v3850 = vpop.permute.xlu0 %3849
        %3851 = vrot.lane.b32.xlu0 %v535, 48
        %v3852 = vpop.permute.xlu0 %3851
        %3853 = vrot.lane.b32.xlu0 %v540, 48
        %v3854 = vpop.permute.xlu0 %3853
        %3855 = vrot.lane.b32.xlu0 %v545, 48
        %v3856 = vpop.permute.xlu0 %3855
        %v3862 = vsel %vm414, %v3754, 0
        %v3865 = vsel %vm414, %v3756, 0
        %v3868 = vsel %vm414, %v3758, 0
        %v3871 = vsel %vm414, %v3760, 0
        %3873 = vmatprep.subr.mxu0 0.0
        %3874 = vmatpush1.msra.mxu0 %v3850
        %3875 = vmatprep.subr.mxu0 0.0
        %3876 = vmatpush1.msra.mxu0 %v3852
        %3877 = vmatprep.subr.mxu0 0.0
        %3878 = vmatpush1.msra.mxu0 %v3854
        %3879 = vmatprep.subr.mxu0 0.0
        %3880 = vmatpush1.msra.mxu0 %v3856
        %3881 = vmatprep.subr.mxu0 0.0
        %3882 = vmatpush1.msra.mxu0 0.0
        %3883 = vmatprep.subr.mxu0 0.0
        %3884 = vmatpush1.msra.mxu0 0.0
        %3885 = vmatprep.subr.mxu0 0.0
        %3886 = vmatpush1.msra.mxu0 0.0
        %3887 = vmatprep.subr.mxu0 0.0
        %3888 = vmatpush1.msra.mxu0 0.0
        %3889 = vmatprep.subr.mxu0 0.0
        %3890 = vmatpush1.msra.mxu0 0.0
        %3891 = vmatprep.subr.mxu0 0.0
        %3892 = vmatpush1.msra.mxu0 0.0
        %3893 = vmatprep.subr.mxu0 0.0
        %3894 = vmatpush1.msra.mxu0 0.0
        %3895 = vmatprep.subr.mxu0 0.0
        %3896 = vmatpush1.msra.mxu0 0.0
        %3897 = vmatprep.subr.mxu0 0.0
        %3898 = vmatpush1.msra.mxu0 0.0
        %3899 = vmatprep.subr.mxu0 0.0
        %3900 = vmatpush1.msra.mxu0 0.0
        %3901 = vmatprep.subr.mxu0 0.0
        %3902 = vmatpush1.msra.mxu0 0.0
        %3903 = vmatprep.subr.mxu0 0.0
        %3904 = vmatpush1.msra.mxu0 0.0
        %3905 = vmatprep.subr.mxu0 0.0
        %3906 = vmatpush1.msra.mxu0 0.0
        %3907 = vmatprep.subr.mxu0 0.0
        %3908 = vmatpush1.msra.mxu0 0.0
        %3909 = vmatprep.subr.mxu0 0.0
        %3910 = vmatpush1.msra.mxu0 0.0
        %3911 = vmatprep.subr.mxu0 0.0
        %3912 = vmatpush1.msra.mxu0 0.0
        %3913 = vmatprep.subr.mxu0 0.0
        %3914 = vmatpush1.msra.mxu0 0.0
        %3915 = vmatprep.subr.mxu0 0.0
        %3916 = vmatpush1.msra.mxu0 0.0
        %3917 = vmatprep.subr.mxu0 0.0
        %3918 = vmatpush1.msra.mxu0 0.0
        %3919 = vmatprep.subr.mxu0 0.0
        %3920 = vmatpush1.msra.mxu0 0.0
        %3921 = vmatprep.subr.mxu0 0.0
        %3922 = vmatpush1.msra.mxu0 0.0
        %3923 = vmatprep.subr.mxu0 0.0
        %3924 = vmatpush1.msra.mxu0 0.0
        %3925 = vmatprep.subr.mxu0 0.0
        %3926 = vmatpush1.msra.mxu0 0.0
        %3927 = vmatprep.subr.mxu0 0.0
        %3928 = vmatpush1.msra.mxu0 0.0
        %3929 = vmatprep.subr.mxu0 0.0
        %3930 = vmatpush1.msra.mxu0 0.0
        %3931 = vmatprep.subr.mxu0 0.0
        %3932 = vmatpush1.msra.mxu0 0.0
        %3933 = vmatprep.subr.mxu0 0.0
        %3934 = vmatpush1.msra.mxu0 0.0
        %3935 = vmatprep.subr.mxu0 0.0
        %3936 = vmatpush1.msra.mxu0 0.0
        %3937 = vmatprep.mubr.f32.mxu0 0.0
        %3938 = vmatmul.mubr.f32.gmra.mrb[0].mxu0 %v3862
        %v3939 = vpop.f32.mrb[0].mxu0
        %v3940 = vadd.f32 0.0, %v3939
        %v3941 = vpop.f32.mrb[0].mxu0
        %3942 = vmatprep.mubr.f32.mxu0 0.0
        %3943 = vmatmul.mubr.f32.gmra.mrb[0].mxu0 %v3865
        %v3944 = vpop.f32.mrb[0].mxu0
        %v3945 = vadd.f32 0.0, %v3944
        %v3946 = vpop.f32.mrb[0].mxu0
        %3947 = vmatprep.mubr.f32.mxu0 0.0
        %3948 = vmatmul.mubr.f32.gmra.mrb[0].mxu0 %v3868
        %v3949 = vpop.f32.mrb[0].mxu0
        %v3950 = vadd.f32 0.0, %v3949
        %v3951 = vpop.f32.mrb[0].mxu0
        %3952 = vmatprep.mubr.f32.mxu0 0.0
        %3953 = vmatmul.mubr.f32.gmra.mrb[0].mxu0 %v3871
        %v3954 = vpop.f32.mrb[0].mxu0
        %v3955 = vadd.f32 0.0, %v3954
        %v3956 = vpop.f32.mrb[0].mxu0
        %3957 = vdwg.mxu0
        %3958 = vrot.lane.b32.xlu0 %v550, 48
        %v3959 = vpop.permute.xlu0 %3958
        %3960 = vrot.lane.b32.xlu0 %v555, 48
        %v3961 = vpop.permute.xlu0 %3960
        %3962 = vrot.lane.b32.xlu0 %v560, 48
        %v3963 = vpop.permute.xlu0 %3962
        %3964 = vrot.lane.b32.xlu0 %v565, 48
        %v3965 = vpop.permute.xlu0 %3964
        %v3971 = vsel %vm414, %v3762, 0
        %v3974 = vsel %vm414, %v3764, 0
        %v3977 = vsel %vm414, %v3766, 0
        %v3980 = vsel %vm414, %v3768, 0
        %3982 = vmatprep.subr.mxu0 0.0
        %3983 = vmatpush1.msra.mxu0 %v3959
        %3984 = vmatprep.subr.mxu0 0.0
        %3985 = vmatpush1.msra.mxu0 %v3961
        %3986 = vmatprep.subr.mxu0 0.0
        %3987 = vmatpush1.msra.mxu0 %v3963
        %3988 = vmatprep.subr.mxu0 0.0
        %3989 = vmatpush1.msra.mxu0 %v3965
        %3990 = vmatprep.subr.mxu0 0.0
        %3991 = vmatpush1.msra.mxu0 0.0
        %3992 = vmatprep.subr.mxu0 0.0
        %3993 = vmatpush1.msra.mxu0 0.0
        %3994 = vmatprep.subr.mxu0 0.0
        %3995 = vmatpush1.msra.mxu0 0.0
        %3996 = vmatprep.subr.mxu0 0.0
        %3997 = vmatpush1.msra.mxu0 0.0
        %3998 = vmatprep.subr.mxu0 0.0
        %3999 = vmatpush1.msra.mxu0 0.0
        %4000 = vmatprep.subr.mxu0 0.0
        %4001 = vmatpush1.msra.mxu0 0.0
        %4002 = vmatprep.subr.mxu0 0.0
        %4003 = vmatpush1.msra.mxu0 0.0
        %4004 = vmatprep.subr.mxu0 0.0
        %4005 = vmatpush1.msra.mxu0 0.0
        %4006 = vmatprep.subr.mxu0 0.0
        %4007 = vmatpush1.msra.mxu0 0.0
        %4008 = vmatprep.subr.mxu0 0.0
        %4009 = vmatpush1.msra.mxu0 0.0
        %4010 = vmatprep.subr.mxu0 0.0
        %4011 = vmatpush1.msra.mxu0 0.0
        %4012 = vmatprep.subr.mxu0 0.0
        %4013 = vmatpush1.msra.mxu0 0.0
        %4014 = vmatprep.subr.mxu0 0.0
        %4015 = vmatpush1.msra.mxu0 0.0
        %4016 = vmatprep.subr.mxu0 0.0
        %4017 = vmatpush1.msra.mxu0 0.0
        %4018 = vmatprep.subr.mxu0 0.0
        %4019 = vmatpush1.msra.mxu0 0.0
        %4020 = vmatprep.subr.mxu0 0.0
        %4021 = vmatpush1.msra.mxu0 0.0
        %4022 = vmatprep.subr.mxu0 0.0
        %4023 = vmatpush1.msra.mxu0 0.0
        %4024 = vmatprep.subr.mxu0 0.0
        %4025 = vmatpush1.msra.mxu0 0.0
        %4026 = vmatprep.subr.mxu0 0.0
        %4027 = vmatpush1.msra.mxu0 0.0
        %4028 = vmatprep.subr.mxu0 0.0
        %4029 = vmatpush1.msra.mxu0 0.0
        %4030 = vmatprep.subr.mxu0 0.0
        %4031 = vmatpush1.msra.mxu0 0.0
        %4032 = vmatprep.subr.mxu0 0.0
        %4033 = vmatpush1.msra.mxu0 0.0
        %4034 = vmatprep.subr.mxu0 0.0
        %4035 = vmatpush1.msra.mxu0 0.0
        %4036 = vmatprep.subr.mxu0 0.0
        %4037 = vmatpush1.msra.mxu0 0.0
        %4038 = vmatprep.subr.mxu0 0.0
        %4039 = vmatpush1.msra.mxu0 0.0
        %4040 = vmatprep.subr.mxu0 0.0
        %4041 = vmatpush1.msra.mxu0 0.0
        %4042 = vmatprep.subr.mxu0 0.0
        %4043 = vmatpush1.msra.mxu0 0.0
        %4044 = vmatprep.subr.mxu0 0.0
        %4045 = vmatpush1.msra.mxu0 0.0
        %4046 = vmatprep.mubr.f32.mxu0 0.0
        %4047 = vmatmul.mubr.f32.gmra.mrb[0].mxu0 %v3971
        %v4048 = vpop.f32.mrb[0].mxu0
        %v4049 = vadd.f32 0.0, %v4048
        %v4050 = vpop.f32.mrb[0].mxu0
        %4051 = vmatprep.mubr.f32.mxu0 0.0
        %4052 = vmatmul.mubr.f32.gmra.mrb[0].mxu0 %v3974
        %v4053 = vpop.f32.mrb[0].mxu0
        %v4054 = vadd.f32 0.0, %v4053
        %v4055 = vpop.f32.mrb[0].mxu0
        %4056 = vmatprep.mubr.f32.mxu0 0.0
        %4057 = vmatmul.mubr.f32.gmra.mrb[0].mxu0 %v3977
        %v4058 = vpop.f32.mrb[0].mxu0
        %v4059 = vadd.f32 0.0, %v4058
        %v4060 = vpop.f32.mrb[0].mxu0
        %4061 = vmatprep.mubr.f32.mxu0 0.0
        %4062 = vmatmul.mubr.f32.gmra.mrb[0].mxu0 %v3980
        %v4063 = vpop.f32.mrb[0].mxu0
        %v4064 = vadd.f32 0.0, %v4063
        %v4065 = vpop.f32.mrb[0].mxu0
        %4066 = vdwg.mxu0
        %4067 = vrot.lane.b32.xlu0 %v570, 48
        %v4068 = vpop.permute.xlu0 %4067
        %4069 = vrot.lane.b32.xlu0 %v575, 48
        %v4070 = vpop.permute.xlu0 %4069
        %4071 = vrot.lane.b32.xlu0 %v580, 48
        %v4072 = vpop.permute.xlu0 %4071
        %4073 = vrot.lane.b32.xlu0 %v585, 48
        %v4074 = vpop.permute.xlu0 %4073
        %v4080 = vsel %vm414, %v3770, 0
        %v4083 = vsel %vm414, %v3772, 0
        %v4086 = vsel %vm414, %v3774, 0
        %v4089 = vsel %vm414, %v3776, 0
        %4091 = vmatprep.subr.mxu0 0.0
        %4092 = vmatpush1.msra.mxu0 %v4068
        %4093 = vmatprep.subr.mxu0 0.0
        %4094 = vmatpush1.msra.mxu0 %v4070
        %4095 = vmatprep.subr.mxu0 0.0
        %4096 = vmatpush1.msra.mxu0 %v4072
        %4097 = vmatprep.subr.mxu0 0.0
        %4098 = vmatpush1.msra.mxu0 %v4074
        %4099 = vmatprep.subr.mxu0 0.0
        %4100 = vmatpush1.msra.mxu0 0.0
        %4101 = vmatprep.subr.mxu0 0.0
        %4102 = vmatpush1.msra.mxu0 0.0
        %4103 = vmatprep.subr.mxu0 0.0
        %4104 = vmatpush1.msra.mxu0 0.0
        %4105 = vmatprep.subr.mxu0 0.0
        %4106 = vmatpush1.msra.mxu0 0.0
        %4107 = vmatprep.subr.mxu0 0.0
        %4108 = vmatpush1.msra.mxu0 0.0
        %4109 = vmatprep.subr.mxu0 0.0
        %4110 = vmatpush1.msra.mxu0 0.0
        %4111 = vmatprep.subr.mxu0 0.0
        %4112 = vmatpush1.msra.mxu0 0.0
        %4113 = vmatprep.subr.mxu0 0.0
        %4114 = vmatpush1.msra.mxu0 0.0
        %4115 = vmatprep.subr.mxu0 0.0
        %4116 = vmatpush1.msra.mxu0 0.0
        %4117 = vmatprep.subr.mxu0 0.0
        %4118 = vmatpush1.msra.mxu0 0.0
        %4119 = vmatprep.subr.mxu0 0.0
        %4120 = vmatpush1.msra.mxu0 0.0
        %4121 = vmatprep.subr.mxu0 0.0
        %4122 = vmatpush1.msra.mxu0 0.0
        %4123 = vmatprep.subr.mxu0 0.0
        %4124 = vmatpush1.msra.mxu0 0.0
        %4125 = vmatprep.subr.mxu0 0.0
        %4126 = vmatpush1.msra.mxu0 0.0
        %4127 = vmatprep.subr.mxu0 0.0
        %4128 = vmatpush1.msra.mxu0 0.0
        %4129 = vmatprep.subr.mxu0 0.0
        %4130 = vmatpush1.msra.mxu0 0.0
        %4131 = vmatprep.subr.mxu0 0.0
        %4132 = vmatpush1.msra.mxu0 0.0
        %4133 = vmatprep.subr.mxu0 0.0
        %4134 = vmatpush1.msra.mxu0 0.0
        %4135 = vmatprep.subr.mxu0 0.0
        %4136 = vmatpush1.msra.mxu0 0.0
        %4137 = vmatprep.subr.mxu0 0.0
        %4138 = vmatpush1.msra.mxu0 0.0
        %4139 = vmatprep.subr.mxu0 0.0
        %4140 = vmatpush1.msra.mxu0 0.0
        %4141 = vmatprep.subr.mxu0 0.0
        %4142 = vmatpush1.msra.mxu0 0.0
        %4143 = vmatprep.subr.mxu0 0.0
        %4144 = vmatpush1.msra.mxu0 0.0
        %4145 = vmatprep.subr.mxu0 0.0
        %4146 = vmatpush1.msra.mxu0 0.0
        %4147 = vmatprep.subr.mxu0 0.0
        %4148 = vmatpush1.msra.mxu0 0.0
        %4149 = vmatprep.subr.mxu0 0.0
        %4150 = vmatpush1.msra.mxu0 0.0
        %4151 = vmatprep.subr.mxu0 0.0
        %4152 = vmatpush1.msra.mxu0 0.0
        %4153 = vmatprep.subr.mxu0 0.0
        %4154 = vmatpush1.msra.mxu0 0.0
        %4155 = vmatprep.mubr.f32.mxu0 0.0
        %4156 = vmatmul.mubr.f32.gmra.mrb[0].mxu0 %v4080
        %v4157 = vpop.f32.mrb[0].mxu0
        %v4158 = vadd.f32 0.0, %v4157
        %v4159 = vpop.f32.mrb[0].mxu0
        %4160 = vmatprep.mubr.f32.mxu0 0.0
        %4161 = vmatmul.mubr.f32.gmra.mrb[0].mxu0 %v4083
        %v4162 = vpop.f32.mrb[0].mxu0
        %v4163 = vadd.f32 0.0, %v4162
        %v4164 = vpop.f32.mrb[0].mxu0
        %4165 = vmatprep.mubr.f32.mxu0 0.0
        %4166 = vmatmul.mubr.f32.gmra.mrb[0].mxu0 %v4086
        %v4167 = vpop.f32.mrb[0].mxu0
        %v4168 = vadd.f32 0.0, %v4167
        %v4169 = vpop.f32.mrb[0].mxu0
        %4170 = vmatprep.mubr.f32.mxu0 0.0
        %4171 = vmatmul.mubr.f32.gmra.mrb[0].mxu0 %v4089
        %v4172 = vpop.f32.mrb[0].mxu0
        %v4173 = vadd.f32 0.0, %v4172
        %v4174 = vpop.f32.mrb[0].mxu0
        %4175 = vdwg.mxu0
        %4176 = vrot.lane.b32.xlu0 %v590, 48
        %v4177 = vpop.permute.xlu0 %4176
        %4178 = vrot.lane.b32.xlu0 %v595, 48
        %v4179 = vpop.permute.xlu0 %4178
        %4180 = vrot.lane.b32.xlu0 %v600, 48
        %v4181 = vpop.permute.xlu0 %4180
        %4182 = vrot.lane.b32.xlu0 %v605, 48
        %v4183 = vpop.permute.xlu0 %4182
        %v4189 = vsel %vm414, %v3778, 0
        %v4192 = vsel %vm414, %v3780, 0
        %v4195 = vsel %vm414, %v3782, 0
        %v4198 = vsel %vm414, %v3784, 0
        %4200 = vmatprep.subr.mxu0 0.0
        %4201 = vmatpush1.msra.mxu0 %v4177
        %4202 = vmatprep.subr.mxu0 0.0
        %4203 = vmatpush1.msra.mxu0 %v4179
        %4204 = vmatprep.subr.mxu0 0.0
        %4205 = vmatpush1.msra.mxu0 %v4181
        %4206 = vmatprep.subr.mxu0 0.0
        %4207 = vmatpush1.msra.mxu0 %v4183
        %4208 = vmatprep.subr.mxu0 0.0
        %4209 = vmatpush1.msra.mxu0 0.0
        %4210 = vmatprep.subr.mxu0 0.0
        %4211 = vmatpush1.msra.mxu0 0.0
        %4212 = vmatprep.subr.mxu0 0.0
        %4213 = vmatpush1.msra.mxu0 0.0
        %4214 = vmatprep.subr.mxu0 0.0
        %4215 = vmatpush1.msra.mxu0 0.0
        %4216 = vmatprep.subr.mxu0 0.0
        %4217 = vmatpush1.msra.mxu0 0.0
        %4218 = vmatprep.subr.mxu0 0.0
        %4219 = vmatpush1.msra.mxu0 0.0
        %4220 = vmatprep.subr.mxu0 0.0
        %4221 = vmatpush1.msra.mxu0 0.0
        %4222 = vmatprep.subr.mxu0 0.0
        %4223 = vmatpush1.msra.mxu0 0.0
        %4224 = vmatprep.subr.mxu0 0.0
        %4225 = vmatpush1.msra.mxu0 0.0
        %4226 = vmatprep.subr.mxu0 0.0
        %4227 = vmatpush1.msra.mxu0 0.0
        %4228 = vmatprep.subr.mxu0 0.0
        %4229 = vmatpush1.msra.mxu0 0.0
        %4230 = vmatprep.subr.mxu0 0.0
        %4231 = vmatpush1.msra.mxu0 0.0
        %4232 = vmatprep.subr.mxu0 0.0
        %4233 = vmatpush1.msra.mxu0 0.0
        %4234 = vmatprep.subr.mxu0 0.0
        %4235 = vmatpush1.msra.mxu0 0.0
        %4236 = vmatprep.subr.mxu0 0.0
        %4237 = vmatpush1.msra.mxu0 0.0
        %4238 = vmatprep.subr.mxu0 0.0
        %4239 = vmatpush1.msra.mxu0 0.0
        %4240 = vmatprep.subr.mxu0 0.0
        %4241 = vmatpush1.msra.mxu0 0.0
        %4242 = vmatprep.subr.mxu0 0.0
        %4243 = vmatpush1.msra.mxu0 0.0
        %4244 = vmatprep.subr.mxu0 0.0
        %4245 = vmatpush1.msra.mxu0 0.0
        %4246 = vmatprep.subr.mxu0 0.0
        %4247 = vmatpush1.msra.mxu0 0.0
        %4248 = vmatprep.subr.mxu0 0.0
        %4249 = vmatpush1.msra.mxu0 0.0
        %4250 = vmatprep.subr.mxu0 0.0
        %4251 = vmatpush1.msra.mxu0 0.0
        %4252 = vmatprep.subr.mxu0 0.0
        %4253 = vmatpush1.msra.mxu0 0.0
        %4254 = vmatprep.subr.mxu0 0.0
        %4255 = vmatpush1.msra.mxu0 0.0
        %4256 = vmatprep.subr.mxu0 0.0
        %4257 = vmatpush1.msra.mxu0 0.0
        %4258 = vmatprep.subr.mxu0 0.0
        %4259 = vmatpush1.msra.mxu0 0.0
        %4260 = vmatprep.subr.mxu0 0.0
        %4261 = vmatpush1.msra.mxu0 0.0
        %4262 = vmatprep.subr.mxu0 0.0
        %4263 = vmatpush1.msra.mxu0 0.0
        %4264 = vmatprep.mubr.f32.mxu0 0.0
        %4265 = vmatmul.mubr.f32.gmra.mrb[0].mxu0 %v4189
        %v4266 = vpop.f32.mrb[0].mxu0
        %v4267 = vadd.f32 0.0, %v4266
        %v4268 = vpop.f32.mrb[0].mxu0
        %4269 = vmatprep.mubr.f32.mxu0 0.0
        %4270 = vmatmul.mubr.f32.gmra.mrb[0].mxu0 %v4192
        %v4271 = vpop.f32.mrb[0].mxu0
        %v4272 = vadd.f32 0.0, %v4271
        %v4273 = vpop.f32.mrb[0].mxu0
        %4274 = vmatprep.mubr.f32.mxu0 0.0
        %4275 = vmatmul.mubr.f32.gmra.mrb[0].mxu0 %v4195
        %v4276 = vpop.f32.mrb[0].mxu0
        %v4277 = vadd.f32 0.0, %v4276
        %v4278 = vpop.f32.mrb[0].mxu0
        %4279 = vmatprep.mubr.f32.mxu0 0.0
        %4280 = vmatmul.mubr.f32.gmra.mrb[0].mxu0 %v4198
        %v4281 = vpop.f32.mrb[0].mxu0
        %v4282 = vadd.f32 0.0, %v4281
        %v4283 = vpop.f32.mrb[0].mxu0
        %4284 = vdwg.mxu0
        %v4285 = vmul.f32 %v3940, %v3833
        %v4286 = vmul.f32 %v3945, %v3834
        %v4287 = vmul.f32 %v3950, %v3835
        %v4288 = vmul.f32 %v3955, %v3836
        %v4289 = vmul.f32 %v4049, %v3837
        %v4290 = vmul.f32 %v4054, %v3838
        %v4291 = vmul.f32 %v4059, %v3839
        %v4292 = vmul.f32 %v4064, %v3840
        %v4293 = vmul.f32 %v4158, %v3841
        %v4294 = vmul.f32 %v4163, %v3842
        %v4295 = vmul.f32 %v4168, %v3843
        %v4296 = vmul.f32 %v4173, %v3844
        %v4297 = vmul.f32 %v4267, %v3845
        %v4298 = vmul.f32 %v4272, %v3846
        %v4299 = vmul.f32 %v4277, %v3847
        %v4300 = vmul.f32 %v4282, %v3848
        %v4301 = vld [vmem:[#allocation10 + $0x10] sm:$0xff]
        %v4303 = vsel %vm652, %v4285, 0
        %v4306 = vsel %vm652, %v4286, 0
        %v4309 = vsel %vm652, %v4287, 0
        %v4312 = vsel %vm652, %v4288, 0
        %v4315 = vsel %vm652, %v4289, 0
        %v4318 = vsel %vm652, %v4290, 0
        %v4321 = vsel %vm652, %v4291, 0
        %v4324 = vsel %vm652, %v4292, 0
        %v4327 = vsel %vm652, %v4293, 0
        %v4330 = vsel %vm652, %v4294, 0
        %v4333 = vsel %vm652, %v4295, 0
        %v4336 = vsel %vm652, %v4296, 0
        %v4339 = vsel %vm652, %v4297, 0
        %v4342 = vsel %vm652, %v4298, 0
        %v4345 = vsel %vm652, %v4299, 0
        %v4348 = vsel %vm652, %v4300, 0
        %4350 = vmatprep.subr.mxu0 0.0
        %4351 = vmatpush1.msra.mxu0 %v4301
        %4352 = vmatprep.subr.mxu0 0.0
        %4353 = vmatpush1.msra.mxu0 0.0
        %4354 = vmatprep.subr.mxu0 0.0
        %4355 = vmatpush1.msra.mxu0 0.0
        %4356 = vmatprep.subr.mxu0 0.0
        %4357 = vmatpush1.msra.mxu0 0.0
        %4358 = vmatprep.subr.mxu0 0.0
        %4359 = vmatpush1.msra.mxu0 0.0
        %4360 = vmatprep.subr.mxu0 0.0
        %4361 = vmatpush1.msra.mxu0 0.0
        %4362 = vmatprep.subr.mxu0 0.0
        %4363 = vmatpush1.msra.mxu0 0.0
        %4364 = vmatprep.subr.mxu0 0.0
        %4365 = vmatpush1.msra.mxu0 0.0
        %4366 = vmatprep.subr.mxu0 0.0
        %4367 = vmatpush1.msra.mxu0 0.0
        %4368 = vmatprep.subr.mxu0 0.0
        %4369 = vmatpush1.msra.mxu0 0.0
        %4370 = vmatprep.subr.mxu0 0.0
        %4371 = vmatpush1.msra.mxu0 0.0
        %4372 = vmatprep.subr.mxu0 0.0
        %4373 = vmatpush1.msra.mxu0 0.0
        %4374 = vmatprep.subr.mxu0 0.0
        %4375 = vmatpush1.msra.mxu0 0.0
        %4376 = vmatprep.subr.mxu0 0.0
        %4377 = vmatpush1.msra.mxu0 0.0
        %4378 = vmatprep.subr.mxu0 0.0
        %4379 = vmatpush1.msra.mxu0 0.0
        %4380 = vmatprep.subr.mxu0 0.0
        %4381 = vmatpush1.msra.mxu0 0.0
        %4382 = vmatprep.subr.mxu0 0.0
        %4383 = vmatpush1.msra.mxu0 0.0
        %4384 = vmatprep.subr.mxu0 0.0
        %4385 = vmatpush1.msra.mxu0 0.0
        %4386 = vmatprep.subr.mxu0 0.0
        %4387 = vmatpush1.msra.mxu0 0.0
        %4388 = vmatprep.subr.mxu0 0.0
        %4389 = vmatpush1.msra.mxu0 0.0
        %4390 = vmatprep.subr.mxu0 0.0
        %4391 = vmatpush1.msra.mxu0 0.0
        %4392 = vmatprep.subr.mxu0 0.0
        %4393 = vmatpush1.msra.mxu0 0.0
        %4394 = vmatprep.subr.mxu0 0.0
        %4395 = vmatpush1.msra.mxu0 0.0
        %4396 = vmatprep.subr.mxu0 0.0
        %4397 = vmatpush1.msra.mxu0 0.0
        %4398 = vmatprep.subr.mxu0 0.0
        %4399 = vmatpush1.msra.mxu0 0.0
        %4400 = vmatprep.subr.mxu0 0.0
        %4401 = vmatpush1.msra.mxu0 0.0
        %4402 = vmatprep.subr.mxu0 0.0
        %4403 = vmatpush1.msra.mxu0 0.0
        %4404 = vmatprep.subr.mxu0 0.0
        %4405 = vmatpush1.msra.mxu0 0.0
        %4406 = vmatprep.subr.mxu0 0.0
        %4407 = vmatpush1.msra.mxu0 0.0
        %4408 = vmatprep.subr.mxu0 0.0
        %4409 = vmatpush1.msra.mxu0 0.0
        %4410 = vmatprep.subr.mxu0 0.0
        %4411 = vmatpush1.msra.mxu0 0.0
        %4412 = vmatprep.subr.mxu0 0.0
        %4413 = vmatpush1.msra.mxu0 0.0
        %4414 = vmatprep.mubr.f32.mxu0 0.0
        %4415 = vmatmul.mubr.f32.gmra.mrb[0].mxu0 %v4303
        %v4416 = vpop.f32.mrb[0].mxu0
        %v4417 = vadd.f32 0.0, %v4416
        %v4418 = vpop.f32.mrb[0].mxu0
        %4419 = vmatprep.mubr.f32.mxu0 0.0
        %4420 = vmatmul.mubr.f32.gmra.mrb[0].mxu0 %v4306
        %v4421 = vpop.f32.mrb[0].mxu0
        %v4422 = vadd.f32 0.0, %v4421
        %v4423 = vpop.f32.mrb[0].mxu0
        %4424 = vmatprep.mubr.f32.mxu0 0.0
        %4425 = vmatmul.mubr.f32.gmra.mrb[0].mxu0 %v4309
        %v4426 = vpop.f32.mrb[0].mxu0
        %v4427 = vadd.f32 0.0, %v4426
        %v4428 = vpop.f32.mrb[0].mxu0
        %4429 = vmatprep.mubr.f32.mxu0 0.0
        %4430 = vmatmul.mubr.f32.gmra.mrb[0].mxu0 %v4312
        %v4431 = vpop.f32.mrb[0].mxu0
        %v4432 = vadd.f32 0.0, %v4431
        %v4433 = vpop.f32.mrb[0].mxu0
        %4434 = vmatprep.mubr.f32.mxu0 0.0
        %4435 = vmatmul.mubr.f32.gmra.mrb[0].mxu0 %v4315
        %v4436 = vpop.f32.mrb[0].mxu0
        %v4437 = vadd.f32 0.0, %v4436
        %v4438 = vpop.f32.mrb[0].mxu0
        %4439 = vmatprep.mubr.f32.mxu0 0.0
        %4440 = vmatmul.mubr.f32.gmra.mrb[0].mxu0 %v4318
        %v4441 = vpop.f32.mrb[0].mxu0
        %v4442 = vadd.f32 0.0, %v4441
        %v4443 = vpop.f32.mrb[0].mxu0
        %4444 = vmatprep.mubr.f32.mxu0 0.0
        %4445 = vmatmul.mubr.f32.gmra.mrb[0].mxu0 %v4321
        %v4446 = vpop.f32.mrb[0].mxu0
        %v4447 = vadd.f32 0.0, %v4446
        %v4448 = vpop.f32.mrb[0].mxu0
        %4449 = vmatprep.mubr.f32.mxu0 0.0
        %4450 = vmatmul.mubr.f32.gmra.mrb[0].mxu0 %v4324
        %v4451 = vpop.f32.mrb[0].mxu0
        %v4452 = vadd.f32 0.0, %v4451
        %v4453 = vpop.f32.mrb[0].mxu0
        %4454 = vmatprep.mubr.f32.mxu0 0.0
        %4455 = vmatmul.mubr.f32.gmra.mrb[0].mxu0 %v4327
        %v4456 = vpop.f32.mrb[0].mxu0
        %v4457 = vadd.f32 0.0, %v4456
        %v4458 = vpop.f32.mrb[0].mxu0
        %4459 = vmatprep.mubr.f32.mxu0 0.0
        %4460 = vmatmul.mubr.f32.gmra.mrb[0].mxu0 %v4330
        %v4461 = vpop.f32.mrb[0].mxu0
        %v4462 = vadd.f32 0.0, %v4461
        %v4463 = vpop.f32.mrb[0].mxu0
        %4464 = vmatprep.mubr.f32.mxu0 0.0
        %4465 = vmatmul.mubr.f32.gmra.mrb[0].mxu0 %v4333
        %v4466 = vpop.f32.mrb[0].mxu0
        %v4467 = vadd.f32 0.0, %v4466
        %v4468 = vpop.f32.mrb[0].mxu0
        %4469 = vmatprep.mubr.f32.mxu0 0.0
        %4470 = vmatmul.mubr.f32.gmra.mrb[0].mxu0 %v4336
        %v4471 = vpop.f32.mrb[0].mxu0
        %v4472 = vadd.f32 0.0, %v4471
        %v4473 = vpop.f32.mrb[0].mxu0
        %4474 = vmatprep.mubr.f32.mxu0 0.0
        %4475 = vmatmul.mubr.f32.gmra.mrb[0].mxu0 %v4339
        %v4476 = vpop.f32.mrb[0].mxu0
        %v4477 = vadd.f32 0.0, %v4476
        %v4478 = vpop.f32.mrb[0].mxu0
        %4479 = vmatprep.mubr.f32.mxu0 0.0
        %4480 = vmatmul.mubr.f32.gmra.mrb[0].mxu0 %v4342
        %v4481 = vpop.f32.mrb[0].mxu0
        %v4482 = vadd.f32 0.0, %v4481
        %v4483 = vpop.f32.mrb[0].mxu0
        %4484 = vmatprep.mubr.f32.mxu0 0.0
        %4485 = vmatmul.mubr.f32.gmra.mrb[0].mxu0 %v4345
        %v4486 = vpop.f32.mrb[0].mxu0
        %v4487 = vadd.f32 0.0, %v4486
        %v4488 = vpop.f32.mrb[0].mxu0
        %4489 = vmatprep.mubr.f32.mxu0 0.0
        %4490 = vmatmul.mubr.f32.gmra.mrb[0].mxu0 %v4348
        %v4491 = vpop.f32.mrb[0].mxu0
        %v4492 = vadd.f32 0.0, %v4491
        %v4493 = vpop.f32.mrb[0].mxu0
        %4494 = vdwg.mxu0
        %v4495 = vadd.f32 %v3127, %v4417
        %v4496 = vadd.f32 %v3132, %v4422
        %v4497 = vadd.f32 %v3137, %v4427
        %v4498 = vadd.f32 %v3142, %v4432
        %v4499 = vadd.f32 %v3147, %v4437
        %v4500 = vadd.f32 %v3152, %v4442
        %v4501 = vadd.f32 %v3157, %v4447
        %v4502 = vadd.f32 %v3162, %v4452
        %v4503 = vadd.f32 %v3167, %v4457
        %v4504 = vadd.f32 %v3172, %v4462
        %v4505 = vadd.f32 %v3177, %v4467
        %v4506 = vadd.f32 %v3182, %v4472
        %v4507 = vadd.f32 %v3187, %v4477
        %v4508 = vadd.f32 %v3192, %v4482
        %v4509 = vadd.f32 %v3197, %v4487
        %v4510 = vadd.f32 %v3202, %v4492
        %4511 = vrot.lane.b32.xlu0 %v530, 104
        %v4512 = vpop.permute.xlu0 %4511
        %4513 = vrot.lane.b32.xlu0 %v535, 104
        %v4514 = vpop.permute.xlu0 %4513
        %4515 = vrot.lane.b32.xlu0 %v540, 104
        %v4516 = vpop.permute.xlu0 %4515
        %4517 = vrot.lane.b32.xlu0 %v545, 104
        %v4518 = vpop.permute.xlu0 %4517
        %4519 = vrot.lane.b32.xlu0 %v530, 72
        %v4520 = vpop.permute.xlu0 %4519
        %4521 = vrot.lane.b32.xlu0 %v535, 72
        %v4522 = vpop.permute.xlu0 %4521
        %4523 = vrot.lane.b32.xlu0 %v540, 72
        %v4524 = vpop.permute.xlu0 %4523
        %4525 = vrot.lane.b32.xlu0 %v545, 72
        %v4526 = vpop.permute.xlu0 %4525
        %v4527 = vsel %vm652, %v4512, 0
        %v4529 = vsel %vm652, %v4514, 0
        %v4531 = vsel %vm652, %v4516, 0
        %v4533 = vsel %vm652, %v4518, 0
        %v4535 = vsel %vm652, %v4520, 0
        %v4537 = vsel %vm652, %v4522, 0
        %v4539 = vsel %vm652, %v4524, 0
        %v4541 = vsel %vm652, %v4526, 0
        %4543 = vmatprep.subr.mxu0 0.0
        %4544 = vmatpush1.xpose.msra.mxu0 %v4535
        %4545 = vmatprep.subr.mxu0 0.0
        %4546 = vmatpush1.xpose.msra.mxu0 %v4537
        %4547 = vmatprep.subr.mxu0 0.0
        %4548 = vmatpush1.xpose.msra.mxu0 %v4539
        %4549 = vmatprep.subr.mxu0 0.0
        %4550 = vmatpush1.xpose.msra.mxu0 %v4541
        %4551 = vmatprep.subr.mxu0 0.0
        %4552 = vmatpush1.xpose.msra.mxu0 0.0
        %4553 = vmatprep.subr.mxu0 0.0
        %4554 = vmatpush1.xpose.msra.mxu0 0.0
        %4555 = vmatprep.subr.mxu0 0.0
        %4556 = vmatpush1.xpose.msra.mxu0 0.0
        %4557 = vmatprep.subr.mxu0 0.0
        %4558 = vmatpush1.xpose.msra.mxu0 0.0
        %4559 = vmatprep.subr.mxu0 0.0
        %4560 = vmatpush1.xpose.msra.mxu0 0.0
        %4561 = vmatprep.subr.mxu0 0.0
        %4562 = vmatpush1.xpose.msra.mxu0 0.0
        %4563 = vmatprep.subr.mxu0 0.0
        %4564 = vmatpush1.xpose.msra.mxu0 0.0
        %4565 = vmatprep.subr.mxu0 0.0
        %4566 = vmatpush1.xpose.msra.mxu0 0.0
        %4567 = vmatprep.subr.mxu0 0.0
        %4568 = vmatpush1.xpose.msra.mxu0 0.0
        %4569 = vmatprep.subr.mxu0 0.0
        %4570 = vmatpush1.xpose.msra.mxu0 0.0
        %4571 = vmatprep.subr.mxu0 0.0
        %4572 = vmatpush1.xpose.msra.mxu0 0.0
        %4573 = vmatprep.subr.mxu0 0.0
        %4574 = vmatpush1.xpose.msra.mxu0 0.0
        %4575 = vmatprep.subr.mxu0 0.0
        %4576 = vmatpush1.xpose.msra.mxu0 0.0
        %4577 = vmatprep.subr.mxu0 0.0
        %4578 = vmatpush1.xpose.msra.mxu0 0.0
        %4579 = vmatprep.subr.mxu0 0.0
        %4580 = vmatpush1.xpose.msra.mxu0 0.0
        %4581 = vmatprep.subr.mxu0 0.0
        %4582 = vmatpush1.xpose.msra.mxu0 0.0
        %4583 = vmatprep.subr.mxu0 0.0
        %4584 = vmatpush1.xpose.msra.mxu0 0.0
        %4585 = vmatprep.subr.mxu0 0.0
        %4586 = vmatpush1.xpose.msra.mxu0 0.0
        %4587 = vmatprep.subr.mxu0 0.0
        %4588 = vmatpush1.xpose.msra.mxu0 0.0
        %4589 = vmatprep.subr.mxu0 0.0
        %4590 = vmatpush1.xpose.msra.mxu0 0.0
        %4591 = vmatprep.subr.mxu0 0.0
        %4592 = vmatpush1.xpose.msra.mxu0 0.0
        %4593 = vmatprep.subr.mxu0 0.0
        %4594 = vmatpush1.xpose.msra.mxu0 0.0
        %4595 = vmatprep.subr.mxu0 0.0
        %4596 = vmatpush1.xpose.msra.mxu0 0.0
        %4597 = vmatprep.subr.mxu0 0.0
        %4598 = vmatpush1.xpose.msra.mxu0 0.0
        %4599 = vmatprep.subr.mxu0 0.0
        %4600 = vmatpush1.xpose.msra.mxu0 0.0
        %4601 = vmatprep.subr.mxu0 0.0
        %4602 = vmatpush1.xpose.msra.mxu0 0.0
        %4603 = vmatprep.subr.mxu0 0.0
        %4604 = vmatpush1.xpose.msra.mxu0 0.0
        %4605 = vmatprep.subr.mxu0 0.0
        %4606 = vmatpush1.xpose.msra.mxu0 0.0
        %4607 = vmatprep.mubr.f32.mxu0 0.0
        %4608 = vmatmul.mubr.f32.gmra.mrb[0].mxu0 %v4527
        %v4609 = vpop.f32.mrb[0].mxu0
        %v4610 = vadd.f32 %v620, %v4609
        %v4611 = vpop.f32.mrb[0].mxu0
        %4612 = vmatprep.mubr.f32.mxu0 0.0
        %4613 = vmatmul.mubr.f32.gmra.mrb[0].mxu0 %v4529
        %v4614 = vpop.f32.mrb[0].mxu0
        %v4615 = vadd.f32 %v621, %v4614
        %v4616 = vpop.f32.mrb[0].mxu0
        %4617 = vmatprep.mubr.f32.mxu0 0.0
        %4618 = vmatmul.mubr.f32.gmra.mrb[0].mxu0 %v4531
        %v4619 = vpop.f32.mrb[0].mxu0
        %v4620 = vadd.f32 %v622, %v4619
        %v4621 = vpop.f32.mrb[0].mxu0
        %4622 = vmatprep.mubr.f32.mxu0 0.0
        %4623 = vmatmul.mubr.f32.gmra.mrb[0].mxu0 %v4533
        %v4624 = vpop.f32.mrb[0].mxu0
        %v4625 = vadd.f32 %v623, %v4624
        %v4626 = vpop.f32.mrb[0].mxu0
        %4627 = vdwg.mxu0
        %4628 = vrot.lane.b32.xlu0 %v550, 104
        %v4629 = vpop.permute.xlu0 %4628
        %4630 = vrot.lane.b32.xlu0 %v555, 104
        %v4631 = vpop.permute.xlu0 %4630
        %4632 = vrot.lane.b32.xlu0 %v560, 104
        %v4633 = vpop.permute.xlu0 %4632
        %4634 = vrot.lane.b32.xlu0 %v565, 104
        %v4635 = vpop.permute.xlu0 %4634
        %4636 = vrot.lane.b32.xlu0 %v550, 72
        %v4637 = vpop.permute.xlu0 %4636
        %4638 = vrot.lane.b32.xlu0 %v555, 72
        %v4639 = vpop.permute.xlu0 %4638
        %4640 = vrot.lane.b32.xlu0 %v560, 72
        %v4641 = vpop.permute.xlu0 %4640
        %4642 = vrot.lane.b32.xlu0 %v565, 72
        %v4643 = vpop.permute.xlu0 %4642
        %v4644 = vsel %vm652, %v4629, 0
        %v4646 = vsel %vm652, %v4631, 0
        %v4648 = vsel %vm652, %v4633, 0
        %v4650 = vsel %vm652, %v4635, 0
        %v4652 = vsel %vm652, %v4637, 0
        %v4654 = vsel %vm652, %v4639, 0
        %v4656 = vsel %vm652, %v4641, 0
        %v4658 = vsel %vm652, %v4643, 0
        %4660 = vmatprep.subr.mxu0 0.0
        %4661 = vmatpush1.xpose.msra.mxu0 %v4652
        %4662 = vmatprep.subr.mxu0 0.0
        %4663 = vmatpush1.xpose.msra.mxu0 %v4654
        %4664 = vmatprep.subr.mxu0 0.0
        %4665 = vmatpush1.xpose.msra.mxu0 %v4656
        %4666 = vmatprep.subr.mxu0 0.0
        %4667 = vmatpush1.xpose.msra.mxu0 %v4658
        %4668 = vmatprep.subr.mxu0 0.0
        %4669 = vmatpush1.xpose.msra.mxu0 0.0
        %4670 = vmatprep.subr.mxu0 0.0
        %4671 = vmatpush1.xpose.msra.mxu0 0.0
        %4672 = vmatprep.subr.mxu0 0.0
        %4673 = vmatpush1.xpose.msra.mxu0 0.0
        %4674 = vmatprep.subr.mxu0 0.0
        %4675 = vmatpush1.xpose.msra.mxu0 0.0
        %4676 = vmatprep.subr.mxu0 0.0
        %4677 = vmatpush1.xpose.msra.mxu0 0.0
        %4678 = vmatprep.subr.mxu0 0.0
        %4679 = vmatpush1.xpose.msra.mxu0 0.0
        %4680 = vmatprep.subr.mxu0 0.0
        %4681 = vmatpush1.xpose.msra.mxu0 0.0
        %4682 = vmatprep.subr.mxu0 0.0
        %4683 = vmatpush1.xpose.msra.mxu0 0.0
        %4684 = vmatprep.subr.mxu0 0.0
        %4685 = vmatpush1.xpose.msra.mxu0 0.0
        %4686 = vmatprep.subr.mxu0 0.0
        %4687 = vmatpush1.xpose.msra.mxu0 0.0
        %4688 = vmatprep.subr.mxu0 0.0
        %4689 = vmatpush1.xpose.msra.mxu0 0.0
        %4690 = vmatprep.subr.mxu0 0.0
        %4691 = vmatpush1.xpose.msra.mxu0 0.0
        %4692 = vmatprep.subr.mxu0 0.0
        %4693 = vmatpush1.xpose.msra.mxu0 0.0
        %4694 = vmatprep.subr.mxu0 0.0
        %4695 = vmatpush1.xpose.msra.mxu0 0.0
        %4696 = vmatprep.subr.mxu0 0.0
        %4697 = vmatpush1.xpose.msra.mxu0 0.0
        %4698 = vmatprep.subr.mxu0 0.0
        %4699 = vmatpush1.xpose.msra.mxu0 0.0
        %4700 = vmatprep.subr.mxu0 0.0
        %4701 = vmatpush1.xpose.msra.mxu0 0.0
        %4702 = vmatprep.subr.mxu0 0.0
        %4703 = vmatpush1.xpose.msra.mxu0 0.0
        %4704 = vmatprep.subr.mxu0 0.0
        %4705 = vmatpush1.xpose.msra.mxu0 0.0
        %4706 = vmatprep.subr.mxu0 0.0
        %4707 = vmatpush1.xpose.msra.mxu0 0.0
        %4708 = vmatprep.subr.mxu0 0.0
        %4709 = vmatpush1.xpose.msra.mxu0 0.0
        %4710 = vmatprep.subr.mxu0 0.0
        %4711 = vmatpush1.xpose.msra.mxu0 0.0
        %4712 = vmatprep.subr.mxu0 0.0
        %4713 = vmatpush1.xpose.msra.mxu0 0.0
        %4714 = vmatprep.subr.mxu0 0.0
        %4715 = vmatpush1.xpose.msra.mxu0 0.0
        %4716 = vmatprep.subr.mxu0 0.0
        %4717 = vmatpush1.xpose.msra.mxu0 0.0
        %4718 = vmatprep.subr.mxu0 0.0
        %4719 = vmatpush1.xpose.msra.mxu0 0.0
        %4720 = vmatprep.subr.mxu0 0.0
        %4721 = vmatpush1.xpose.msra.mxu0 0.0
        %4722 = vmatprep.subr.mxu0 0.0
        %4723 = vmatpush1.xpose.msra.mxu0 0.0
        %4724 = vmatprep.mubr.f32.mxu0 0.0
        %4725 = vmatmul.mubr.f32.gmra.mrb[0].mxu0 %v4644
        %v4726 = vpop.f32.mrb[0].mxu0
        %v4727 = vadd.f32 %v620, %v4726
        %v4728 = vpop.f32.mrb[0].mxu0
        %4729 = vmatprep.mubr.f32.mxu0 0.0
        %4730 = vmatmul.mubr.f32.gmra.mrb[0].mxu0 %v4646
        %v4731 = vpop.f32.mrb[0].mxu0
        %v4732 = vadd.f32 %v621, %v4731
        %v4733 = vpop.f32.mrb[0].mxu0
        %4734 = vmatprep.mubr.f32.mxu0 0.0
        %4735 = vmatmul.mubr.f32.gmra.mrb[0].mxu0 %v4648
        %v4736 = vpop.f32.mrb[0].mxu0
        %v4737 = vadd.f32 %v622, %v4736
        %v4738 = vpop.f32.mrb[0].mxu0
        %4739 = vmatprep.mubr.f32.mxu0 0.0
        %4740 = vmatmul.mubr.f32.gmra.mrb[0].mxu0 %v4650
        %v4741 = vpop.f32.mrb[0].mxu0
        %v4742 = vadd.f32 %v623, %v4741
        %v4743 = vpop.f32.mrb[0].mxu0
        %4744 = vdwg.mxu0
        %4745 = vrot.lane.b32.xlu0 %v570, 104
        %v4746 = vpop.permute.xlu0 %4745
        %4747 = vrot.lane.b32.xlu0 %v575, 104
        %v4748 = vpop.permute.xlu0 %4747
        %4749 = vrot.lane.b32.xlu0 %v580, 104
        %v4750 = vpop.permute.xlu0 %4749
        %4751 = vrot.lane.b32.xlu0 %v585, 104
        %v4752 = vpop.permute.xlu0 %4751
        %4753 = vrot.lane.b32.xlu0 %v570, 72
        %v4754 = vpop.permute.xlu0 %4753
        %4755 = vrot.lane.b32.xlu0 %v575, 72
        %v4756 = vpop.permute.xlu0 %4755
        %4757 = vrot.lane.b32.xlu0 %v580, 72
        %v4758 = vpop.permute.xlu0 %4757
        %4759 = vrot.lane.b32.xlu0 %v585, 72
        %v4760 = vpop.permute.xlu0 %4759
        %v4761 = vsel %vm652, %v4746, 0
        %v4763 = vsel %vm652, %v4748, 0
        %v4765 = vsel %vm652, %v4750, 0
        %v4767 = vsel %vm652, %v4752, 0
        %v4769 = vsel %vm652, %v4754, 0
        %v4771 = vsel %vm652, %v4756, 0
        %v4773 = vsel %vm652, %v4758, 0
        %v4775 = vsel %vm652, %v4760, 0
        %4777 = vmatprep.subr.mxu0 0.0
        %4778 = vmatpush1.xpose.msra.mxu0 %v4769
        %4779 = vmatprep.subr.mxu0 0.0
        %4780 = vmatpush1.xpose.msra.mxu0 %v4771
        %4781 = vmatprep.subr.mxu0 0.0
        %4782 = vmatpush1.xpose.msra.mxu0 %v4773
        %4783 = vmatprep.subr.mxu0 0.0
        %4784 = vmatpush1.xpose.msra.mxu0 %v4775
        %4785 = vmatprep.subr.mxu0 0.0
        %4786 = vmatpush1.xpose.msra.mxu0 0.0
        %4787 = vmatprep.subr.mxu0 0.0
        %4788 = vmatpush1.xpose.msra.mxu0 0.0
        %4789 = vmatprep.subr.mxu0 0.0
        %4790 = vmatpush1.xpose.msra.mxu0 0.0
        %4791 = vmatprep.subr.mxu0 0.0
        %4792 = vmatpush1.xpose.msra.mxu0 0.0
        %4793 = vmatprep.subr.mxu0 0.0
        %4794 = vmatpush1.xpose.msra.mxu0 0.0
        %4795 = vmatprep.subr.mxu0 0.0
        %4796 = vmatpush1.xpose.msra.mxu0 0.0
        %4797 = vmatprep.subr.mxu0 0.0
        %4798 = vmatpush1.xpose.msra.mxu0 0.0
        %4799 = vmatprep.subr.mxu0 0.0
        %4800 = vmatpush1.xpose.msra.mxu0 0.0
        %4801 = vmatprep.subr.mxu0 0.0
        %4802 = vmatpush1.xpose.msra.mxu0 0.0
        %4803 = vmatprep.subr.mxu0 0.0
        %4804 = vmatpush1.xpose.msra.mxu0 0.0
        %4805 = vmatprep.subr.mxu0 0.0
        %4806 = vmatpush1.xpose.msra.mxu0 0.0
        %4807 = vmatprep.subr.mxu0 0.0
        %4808 = vmatpush1.xpose.msra.mxu0 0.0
        %4809 = vmatprep.subr.mxu0 0.0
        %4810 = vmatpush1.xpose.msra.mxu0 0.0
        %4811 = vmatprep.subr.mxu0 0.0
        %4812 = vmatpush1.xpose.msra.mxu0 0.0
        %4813 = vmatprep.subr.mxu0 0.0
        %4814 = vmatpush1.xpose.msra.mxu0 0.0
        %4815 = vmatprep.subr.mxu0 0.0
        %4816 = vmatpush1.xpose.msra.mxu0 0.0
        %4817 = vmatprep.subr.mxu0 0.0
        %4818 = vmatpush1.xpose.msra.mxu0 0.0
        %4819 = vmatprep.subr.mxu0 0.0
        %4820 = vmatpush1.xpose.msra.mxu0 0.0
        %4821 = vmatprep.subr.mxu0 0.0
        %4822 = vmatpush1.xpose.msra.mxu0 0.0
        %4823 = vmatprep.subr.mxu0 0.0
        %4824 = vmatpush1.xpose.msra.mxu0 0.0
        %4825 = vmatprep.subr.mxu0 0.0
        %4826 = vmatpush1.xpose.msra.mxu0 0.0
        %4827 = vmatprep.subr.mxu0 0.0
        %4828 = vmatpush1.xpose.msra.mxu0 0.0
        %4829 = vmatprep.subr.mxu0 0.0
        %4830 = vmatpush1.xpose.msra.mxu0 0.0
        %4831 = vmatprep.subr.mxu0 0.0
        %4832 = vmatpush1.xpose.msra.mxu0 0.0
        %4833 = vmatprep.subr.mxu0 0.0
        %4834 = vmatpush1.xpose.msra.mxu0 0.0
        %4835 = vmatprep.subr.mxu0 0.0
        %4836 = vmatpush1.xpose.msra.mxu0 0.0
        %4837 = vmatprep.subr.mxu0 0.0
        %4838 = vmatpush1.xpose.msra.mxu0 0.0
        %4839 = vmatprep.subr.mxu0 0.0
        %4840 = vmatpush1.xpose.msra.mxu0 0.0
        %4841 = vmatprep.mubr.f32.mxu0 0.0
        %4842 = vmatmul.mubr.f32.gmra.mrb[0].mxu0 %v4761
        %v4843 = vpop.f32.mrb[0].mxu0
        %v4844 = vadd.f32 %v620, %v4843
        %v4845 = vpop.f32.mrb[0].mxu0
        %4846 = vmatprep.mubr.f32.mxu0 0.0
        %4847 = vmatmul.mubr.f32.gmra.mrb[0].mxu0 %v4763
        %v4848 = vpop.f32.mrb[0].mxu0
        %v4849 = vadd.f32 %v621, %v4848
        %v4850 = vpop.f32.mrb[0].mxu0
        %4851 = vmatprep.mubr.f32.mxu0 0.0
        %4852 = vmatmul.mubr.f32.gmra.mrb[0].mxu0 %v4765
        %v4853 = vpop.f32.mrb[0].mxu0
        %v4854 = vadd.f32 %v622, %v4853
        %v4855 = vpop.f32.mrb[0].mxu0
        %4856 = vmatprep.mubr.f32.mxu0 0.0
        %4857 = vmatmul.mubr.f32.gmra.mrb[0].mxu0 %v4767
        %v4858 = vpop.f32.mrb[0].mxu0
        %v4859 = vadd.f32 %v623, %v4858
        %v4860 = vpop.f32.mrb[0].mxu0
        %4861 = vdwg.mxu0
        %4862 = vrot.lane.b32.xlu0 %v590, 104
        %v4863 = vpop.permute.xlu0 %4862
        %4864 = vrot.lane.b32.xlu0 %v595, 104
        %v4865 = vpop.permute.xlu0 %4864
        %4866 = vrot.lane.b32.xlu0 %v600, 104
        %v4867 = vpop.permute.xlu0 %4866
        %4868 = vrot.lane.b32.xlu0 %v605, 104
        %v4869 = vpop.permute.xlu0 %4868
        %4870 = vrot.lane.b32.xlu0 %v590, 72
        %v4871 = vpop.permute.xlu0 %4870
        %4872 = vrot.lane.b32.xlu0 %v595, 72
        %v4873 = vpop.permute.xlu0 %4872
        %4874 = vrot.lane.b32.xlu0 %v600, 72
        %v4875 = vpop.permute.xlu0 %4874
        %4876 = vrot.lane.b32.xlu0 %v605, 72
        %v4877 = vpop.permute.xlu0 %4876
        %v4878 = vsel %vm652, %v4863, 0
        %v4880 = vsel %vm652, %v4865, 0
        %v4882 = vsel %vm652, %v4867, 0
        %v4884 = vsel %vm652, %v4869, 0
        %v4886 = vsel %vm652, %v4871, 0
        %v4888 = vsel %vm652, %v4873, 0
        %v4890 = vsel %vm652, %v4875, 0
        %v4892 = vsel %vm652, %v4877, 0
        %4894 = vmatprep.subr.mxu0 0.0
        %4895 = vmatpush1.xpose.msra.mxu0 %v4886
        %4896 = vmatprep.subr.mxu0 0.0
        %4897 = vmatpush1.xpose.msra.mxu0 %v4888
        %4898 = vmatprep.subr.mxu0 0.0
        %4899 = vmatpush1.xpose.msra.mxu0 %v4890
        %4900 = vmatprep.subr.mxu0 0.0
        %4901 = vmatpush1.xpose.msra.mxu0 %v4892
        %4902 = vmatprep.subr.mxu0 0.0
        %4903 = vmatpush1.xpose.msra.mxu0 0.0
        %4904 = vmatprep.subr.mxu0 0.0
        %4905 = vmatpush1.xpose.msra.mxu0 0.0
        %4906 = vmatprep.subr.mxu0 0.0
        %4907 = vmatpush1.xpose.msra.mxu0 0.0
        %4908 = vmatprep.subr.mxu0 0.0
        %4909 = vmatpush1.xpose.msra.mxu0 0.0
        %4910 = vmatprep.subr.mxu0 0.0
        %4911 = vmatpush1.xpose.msra.mxu0 0.0
        %4912 = vmatprep.subr.mxu0 0.0
        %4913 = vmatpush1.xpose.msra.mxu0 0.0
        %4914 = vmatprep.subr.mxu0 0.0
        %4915 = vmatpush1.xpose.msra.mxu0 0.0
        %4916 = vmatprep.subr.mxu0 0.0
        %4917 = vmatpush1.xpose.msra.mxu0 0.0
        %4918 = vmatprep.subr.mxu0 0.0
        %4919 = vmatpush1.xpose.msra.mxu0 0.0
        %4920 = vmatprep.subr.mxu0 0.0
        %4921 = vmatpush1.xpose.msra.mxu0 0.0
        %4922 = vmatprep.subr.mxu0 0.0
        %4923 = vmatpush1.xpose.msra.mxu0 0.0
        %4924 = vmatprep.subr.mxu0 0.0
        %4925 = vmatpush1.xpose.msra.mxu0 0.0
        %4926 = vmatprep.subr.mxu0 0.0
        %4927 = vmatpush1.xpose.msra.mxu0 0.0
        %4928 = vmatprep.subr.mxu0 0.0
        %4929 = vmatpush1.xpose.msra.mxu0 0.0
        %4930 = vmatprep.subr.mxu0 0.0
        %4931 = vmatpush1.xpose.msra.mxu0 0.0
        %4932 = vmatprep.subr.mxu0 0.0
        %4933 = vmatpush1.xpose.msra.mxu0 0.0
        %4934 = vmatprep.subr.mxu0 0.0
        %4935 = vmatpush1.xpose.msra.mxu0 0.0
        %4936 = vmatprep.subr.mxu0 0.0
        %4937 = vmatpush1.xpose.msra.mxu0 0.0
        %4938 = vmatprep.subr.mxu0 0.0
        %4939 = vmatpush1.xpose.msra.mxu0 0.0
        %4940 = vmatprep.subr.mxu0 0.0
        %4941 = vmatpush1.xpose.msra.mxu0 0.0
        %4942 = vmatprep.subr.mxu0 0.0
        %4943 = vmatpush1.xpose.msra.mxu0 0.0
        %4944 = vmatprep.subr.mxu0 0.0
        %4945 = vmatpush1.xpose.msra.mxu0 0.0
        %4946 = vmatprep.subr.mxu0 0.0
        %4947 = vmatpush1.xpose.msra.mxu0 0.0
        %4948 = vmatprep.subr.mxu0 0.0
        %4949 = vmatpush1.xpose.msra.mxu0 0.0
        %4950 = vmatprep.subr.mxu0 0.0
        %4951 = vmatpush1.xpose.msra.mxu0 0.0
        %4952 = vmatprep.subr.mxu0 0.0
        %4953 = vmatpush1.xpose.msra.mxu0 0.0
        %4954 = vmatprep.subr.mxu0 0.0
        %4955 = vmatpush1.xpose.msra.mxu0 0.0
        %4956 = vmatprep.subr.mxu0 0.0
        %4957 = vmatpush1.xpose.msra.mxu0 0.0
        %4958 = vmatprep.mubr.f32.mxu0 0.0
        %4959 = vmatmul.mubr.f32.gmra.mrb[0].mxu0 %v4878
        %v4960 = vpop.f32.mrb[0].mxu0
        %v4961 = vadd.f32 %v620, %v4960
        %v4962 = vpop.f32.mrb[0].mxu0
        %4963 = vmatprep.mubr.f32.mxu0 0.0
        %4964 = vmatmul.mubr.f32.gmra.mrb[0].mxu0 %v4880
        %v4965 = vpop.f32.mrb[0].mxu0
        %v4966 = vadd.f32 %v621, %v4965
        %v4967 = vpop.f32.mrb[0].mxu0
        %4968 = vmatprep.mubr.f32.mxu0 0.0
        %4969 = vmatmul.mubr.f32.gmra.mrb[0].mxu0 %v4882
        %v4970 = vpop.f32.mrb[0].mxu0
        %v4971 = vadd.f32 %v622, %v4970
        %v4972 = vpop.f32.mrb[0].mxu0
        %4973 = vmatprep.mubr.f32.mxu0 0.0
        %4974 = vmatmul.mubr.f32.gmra.mrb[0].mxu0 %v4884
        %v4975 = vpop.f32.mrb[0].mxu0
        %v4976 = vadd.f32 %v623, %v4975
        %v4977 = vpop.f32.mrb[0].mxu0
        %4978 = vdwg.mxu0
        %v4979 = vadd.f32 %v4610, %v624
        %v4980 = vadd.f32 %v4615, %v625
        %v4981 = vadd.f32 %v4620, %v626
        %v4982 = vadd.f32 %v4625, %v627
        %v4983 = vadd.f32 %v4727, %v628
        %v4984 = vadd.f32 %v4732, %v629
        %v4985 = vadd.f32 %v4737, %v630
        %v4986 = vadd.f32 %v4742, %v631
        %v4987 = vadd.f32 %v4844, %v632
        %v4988 = vadd.f32 %v4849, %v633
        %v4989 = vadd.f32 %v4854, %v634
        %v4990 = vadd.f32 %v4859, %v635
        %v4991 = vadd.f32 %v4961, %v636
        %v4992 = vadd.f32 %v4966, %v637
        %v4993 = vadd.f32 %v4971, %v638
        %v4994 = vadd.f32 %v4976, %v639
        %v4995 = vsel %vm414, %v4979, -inf
        %4996 = vmax.xlane.f32.xlu0 %v4995
        %v4997 = vpop.xlane.xlu0 %4996
        %v4998 = vsel %vm414, %v4980, -inf
        %4999 = vmax.xlane.f32.xlu0 %v4998
        %v5000 = vpop.xlane.xlu0 %4999
        %v5001 = vsel %vm414, %v4981, -inf
        %5002 = vmax.xlane.f32.xlu0 %v5001
        %v5003 = vpop.xlane.xlu0 %5002
        %v5004 = vsel %vm414, %v4982, -inf
        %5005 = vmax.xlane.f32.xlu0 %v5004
        %v5006 = vpop.xlane.xlu0 %5005
        %v5007 = vsel %vm414, %v4983, -inf
        %5008 = vmax.xlane.f32.xlu0 %v5007
        %v5009 = vpop.xlane.xlu0 %5008
        %v5010 = vsel %vm414, %v4984, -inf
        %5011 = vmax.xlane.f32.xlu0 %v5010
        %v5012 = vpop.xlane.xlu0 %5011
        %v5013 = vsel %vm414, %v4985, -inf
        %5014 = vmax.xlane.f32.xlu0 %v5013
        %v5015 = vpop.xlane.xlu0 %5014
        %v5016 = vsel %vm414, %v4986, -inf
        %5017 = vmax.xlane.f32.xlu0 %v5016
        %v5018 = vpop.xlane.xlu0 %5017
        %v5019 = vsel %vm414, %v4987, -inf
        %5020 = vmax.xlane.f32.xlu0 %v5019
        %v5021 = vpop.xlane.xlu0 %5020
        %v5022 = vsel %vm414, %v4988, -inf
        %5023 = vmax.xlane.f32.xlu0 %v5022
        %v5024 = vpop.xlane.xlu0 %5023
        %v5025 = vsel %vm414, %v4989, -inf
        %5026 = vmax.xlane.f32.xlu0 %v5025
        %v5027 = vpop.xlane.xlu0 %5026
        %v5028 = vsel %vm414, %v4990, -inf
        %5029 = vmax.xlane.f32.xlu0 %v5028
        %v5030 = vpop.xlane.xlu0 %5029
        %v5031 = vsel %vm414, %v4991, -inf
        %5032 = vmax.xlane.f32.xlu0 %v5031
        %v5033 = vpop.xlane.xlu0 %5032
        %v5034 = vsel %vm414, %v4992, -inf
        %5035 = vmax.xlane.f32.xlu0 %v5034
        %v5036 = vpop.xlane.xlu0 %5035
        %v5037 = vsel %vm414, %v4993, -inf
        %5038 = vmax.xlane.f32.xlu0 %v5037
        %v5039 = vpop.xlane.xlu0 %5038
        %v5040 = vsel %vm414, %v4994, -inf
        %5041 = vmax.xlane.f32.xlu0 %v5040
        %v5042 = vpop.xlane.xlu0 %5041
        %v5043 = vsub.f32 %v4979, %v4997
        %v5044 = vsub.f32 %v4980, %v5000
        %v5045 = vsub.f32 %v4981, %v5003
        %v5046 = vsub.f32 %v4982, %v5006
        %v5047 = vsub.f32 %v4983, %v5009
        %v5048 = vsub.f32 %v4984, %v5012
        %v5049 = vsub.f32 %v4985, %v5015
        %v5050 = vsub.f32 %v4986, %v5018
        %v5051 = vsub.f32 %v4987, %v5021
        %v5052 = vsub.f32 %v4988, %v5024
        %v5053 = vsub.f32 %v4989, %v5027
        %v5054 = vsub.f32 %v4990, %v5030
        %v5055 = vsub.f32 %v4991, %v5033
        %v5056 = vsub.f32 %v4992, %v5036
        %v5057 = vsub.f32 %v4993, %v5039
        %v5058 = vsub.f32 %v4994, %v5042
        %v5059 = vmul.f32 %v5043, 1.442695
        %v5060 = vpow.pop %v5059
        %v5061 = vmul.f32 %v5044, 1.442695
        %v5062 = vpow.pop %v5061
        %v5063 = vmul.f32 %v5045, 1.442695
        %v5064 = vpow.pop %v5063
        %v5065 = vmul.f32 %v5046, 1.442695
        %v5066 = vpow.pop %v5065
        %v5067 = vmul.f32 %v5047, 1.442695
        %v5068 = vpow.pop %v5067
        %v5069 = vmul.f32 %v5048, 1.442695
        %v5070 = vpow.pop %v5069
        %v5071 = vmul.f32 %v5049, 1.442695
        %v5072 = vpow.pop %v5071
        %v5073 = vmul.f32 %v5050, 1.442695
        %v5074 = vpow.pop %v5073
        %v5075 = vmul.f32 %v5051, 1.442695
        %v5076 = vpow.pop %v5075
        %v5077 = vmul.f32 %v5052, 1.442695
        %v5078 = vpow.pop %v5077
        %v5079 = vmul.f32 %v5053, 1.442695
        %v5080 = vpow.pop %v5079
        %v5081 = vmul.f32 %v5054, 1.442695
        %v5082 = vpow.pop %v5081
        %v5083 = vmul.f32 %v5055, 1.442695
        %v5084 = vpow.pop %v5083
        %v5085 = vmul.f32 %v5056, 1.442695
        %v5086 = vpow.pop %v5085
        %v5087 = vmul.f32 %v5057, 1.442695
        %v5088 = vpow.pop %v5087
        %v5089 = vmul.f32 %v5058, 1.442695
        %v5090 = vpow.pop %v5089
        %v5091 = vsel %vm414, %v5060, 0.0
        %5092 = vadd.xlane.f32.xlu0 %v5091
        %v5093 = vpop.xlane.xlu0 %5092
        %v5094 = vsel %vm414, %v5062, 0.0
        %5095 = vadd.xlane.f32.xlu0 %v5094
        %v5096 = vpop.xlane.xlu0 %5095
        %v5097 = vsel %vm414, %v5064, 0.0
        %5098 = vadd.xlane.f32.xlu0 %v5097
        %v5099 = vpop.xlane.xlu0 %5098
        %v5100 = vsel %vm414, %v5066, 0.0
        %5101 = vadd.xlane.f32.xlu0 %v5100
        %v5102 = vpop.xlane.xlu0 %5101
        %v5103 = vsel %vm414, %v5068, 0.0
        %5104 = vadd.xlane.f32.xlu0 %v5103
        %v5105 = vpop.xlane.xlu0 %5104
        %v5106 = vsel %vm414, %v5070, 0.0
        %5107 = vadd.xlane.f32.xlu0 %v5106
        %v5108 = vpop.xlane.xlu0 %5107
        %v5109 = vsel %vm414, %v5072, 0.0
        %5110 = vadd.xlane.f32.xlu0 %v5109
        %v5111 = vpop.xlane.xlu0 %5110
        %v5112 = vsel %vm414, %v5074, 0.0
        %5113 = vadd.xlane.f32.xlu0 %v5112
        %v5114 = vpop.xlane.xlu0 %5113
        %v5115 = vsel %vm414, %v5076, 0.0
        %5116 = vadd.xlane.f32.xlu0 %v5115
        %v5117 = vpop.xlane.xlu0 %5116
        %v5118 = vsel %vm414, %v5078, 0.0
        %5119 = vadd.xlane.f32.xlu0 %v5118
        %v5120 = vpop.xlane.xlu0 %5119
        %v5121 = vsel %vm414, %v5080, 0.0
        %5122 = vadd.xlane.f32.xlu0 %v5121
        %v5123 = vpop.xlane.xlu0 %5122
        %v5124 = vsel %vm414, %v5082, 0.0
        %5125 = vadd.xlane.f32.xlu0 %v5124
        %v5126 = vpop.xlane.xlu0 %5125
        %v5127 = vsel %vm414, %v5084, 0.0
        %5128 = vadd.xlane.f32.xlu0 %v5127
        %v5129 = vpop.xlane.xlu0 %5128
        %v5130 = vsel %vm414, %v5086, 0.0
        %5131 = vadd.xlane.f32.xlu0 %v5130
        %v5132 = vpop.xlane.xlu0 %5131
        %v5133 = vsel %vm414, %v5088, 0.0
        %5134 = vadd.xlane.f32.xlu0 %v5133
        %v5135 = vpop.xlane.xlu0 %5134
        %v5136 = vsel %vm414, %v5090, 0.0
        %5137 = vadd.xlane.f32.xlu0 %v5136
        %v5138 = vpop.xlane.xlu0 %5137
        %v5139 = vrcp.pop %v5093
        %v5140 = vrcp.pop %v5096
        %v5141 = vrcp.pop %v5099
        %v5142 = vrcp.pop %v5102
        %v5143 = vrcp.pop %v5105
        %v5144 = vrcp.pop %v5108
        %v5145 = vrcp.pop %v5111
        %v5146 = vrcp.pop %v5114
        %v5147 = vrcp.pop %v5117
        %v5148 = vrcp.pop %v5120
        %v5149 = vrcp.pop %v5123
        %v5150 = vrcp.pop %v5126
        %v5151 = vrcp.pop %v5129
        %v5152 = vrcp.pop %v5132
        %v5153 = vrcp.pop %v5135
        %v5154 = vrcp.pop %v5138
        %5155 = vrot.lane.b32.xlu0 %v530, 40
        %v5156 = vpop.permute.xlu0 %5155
        %5157 = vrot.lane.b32.xlu0 %v535, 40
        %v5158 = vpop.permute.xlu0 %5157
        %5159 = vrot.lane.b32.xlu0 %v540, 40
        %v5160 = vpop.permute.xlu0 %5159
        %5161 = vrot.lane.b32.xlu0 %v545, 40
        %v5162 = vpop.permute.xlu0 %5161
        %v5168 = vsel %vm414, %v5060, 0
        %v5171 = vsel %vm414, %v5062, 0
        %v5174 = vsel %vm414, %v5064, 0
        %v5177 = vsel %vm414, %v5066, 0
        %5179 = vmatprep.subr.mxu0 0.0
        %5180 = vmatpush1.msra.mxu0 %v5156
        %5181 = vmatprep.subr.mxu0 0.0
        %5182 = vmatpush1.msra.mxu0 %v5158
        %5183 = vmatprep.subr.mxu0 0.0
        %5184 = vmatpush1.msra.mxu0 %v5160
        %5185 = vmatprep.subr.mxu0 0.0
        %5186 = vmatpush1.msra.mxu0 %v5162
        %5187 = vmatprep.subr.mxu0 0.0
        %5188 = vmatpush1.msra.mxu0 0.0
        %5189 = vmatprep.subr.mxu0 0.0
        %5190 = vmatpush1.msra.mxu0 0.0
        %5191 = vmatprep.subr.mxu0 0.0
        %5192 = vmatpush1.msra.mxu0 0.0
        %5193 = vmatprep.subr.mxu0 0.0
        %5194 = vmatpush1.msra.mxu0 0.0
        %5195 = vmatprep.subr.mxu0 0.0
        %5196 = vmatpush1.msra.mxu0 0.0
        %5197 = vmatprep.subr.mxu0 0.0
        %5198 = vmatpush1.msra.mxu0 0.0
        %5199 = vmatprep.subr.mxu0 0.0
        %5200 = vmatpush1.msra.mxu0 0.0
        %5201 = vmatprep.subr.mxu0 0.0
        %5202 = vmatpush1.msra.mxu0 0.0
        %5203 = vmatprep.subr.mxu0 0.0
        %5204 = vmatpush1.msra.mxu0 0.0
        %5205 = vmatprep.subr.mxu0 0.0
        %5206 = vmatpush1.msra.mxu0 0.0
        %5207 = vmatprep.subr.mxu0 0.0
        %5208 = vmatpush1.msra.mxu0 0.0
        %5209 = vmatprep.subr.mxu0 0.0
        %5210 = vmatpush1.msra.mxu0 0.0
        %5211 = vmatprep.subr.mxu0 0.0
        %5212 = vmatpush1.msra.mxu0 0.0
        %5213 = vmatprep.subr.mxu0 0.0
        %5214 = vmatpush1.msra.mxu0 0.0
        %5215 = vmatprep.subr.mxu0 0.0
        %5216 = vmatpush1.msra.mxu0 0.0
        %5217 = vmatprep.subr.mxu0 0.0
        %5218 = vmatpush1.msra.mxu0 0.0
        %5219 = vmatprep.subr.mxu0 0.0
        %5220 = vmatpush1.msra.mxu0 0.0
        %5221 = vmatprep.subr.mxu0 0.0
        %5222 = vmatpush1.msra.mxu0 0.0
        %5223 = vmatprep.subr.mxu0 0.0
        %5224 = vmatpush1.msra.mxu0 0.0
        %5225 = vmatprep.subr.mxu0 0.0
        %5226 = vmatpush1.msra.mxu0 0.0
        %5227 = vmatprep.subr.mxu0 0.0
        %5228 = vmatpush1.msra.mxu0 0.0
        %5229 = vmatprep.subr.mxu0 0.0
        %5230 = vmatpush1.msra.mxu0 0.0
        %5231 = vmatprep.subr.mxu0 0.0
        %5232 = vmatpush1.msra.mxu0 0.0
        %5233 = vmatprep.subr.mxu0 0.0
        %5234 = vmatpush1.msra.mxu0 0.0
        %5235 = vmatprep.subr.mxu0 0.0
        %5236 = vmatpush1.msra.mxu0 0.0
        %5237 = vmatprep.subr.mxu0 0.0
        %5238 = vmatpush1.msra.mxu0 0.0
        %5239 = vmatprep.subr.mxu0 0.0
        %5240 = vmatpush1.msra.mxu0 0.0
        %5241 = vmatprep.subr.mxu0 0.0
        %5242 = vmatpush1.msra.mxu0 0.0
        %5243 = vmatprep.mubr.f32.mxu0 0.0
        %5244 = vmatmul.mubr.f32.gmra.mrb[0].mxu0 %v5168
        %v5245 = vpop.f32.mrb[0].mxu0
        %v5246 = vadd.f32 0.0, %v5245
        %v5247 = vpop.f32.mrb[0].mxu0
        %5248 = vmatprep.mubr.f32.mxu0 0.0
        %5249 = vmatmul.mubr.f32.gmra.mrb[0].mxu0 %v5171
        %v5250 = vpop.f32.mrb[0].mxu0
        %v5251 = vadd.f32 0.0, %v5250
        %v5252 = vpop.f32.mrb[0].mxu0
        %5253 = vmatprep.mubr.f32.mxu0 0.0
        %5254 = vmatmul.mubr.f32.gmra.mrb[0].mxu0 %v5174
        %v5255 = vpop.f32.mrb[0].mxu0
        %v5256 = vadd.f32 0.0, %v5255
        %v5257 = vpop.f32.mrb[0].mxu0
        %5258 = vmatprep.mubr.f32.mxu0 0.0
        %5259 = vmatmul.mubr.f32.gmra.mrb[0].mxu0 %v5177
        %v5260 = vpop.f32.mrb[0].mxu0
        %v5261 = vadd.f32 0.0, %v5260
        %v5262 = vpop.f32.mrb[0].mxu0
        %5263 = vdwg.mxu0
        %5264 = vrot.lane.b32.xlu0 %v550, 40
        %v5265 = vpop.permute.xlu0 %5264
        %5266 = vrot.lane.b32.xlu0 %v555, 40
        %v5267 = vpop.permute.xlu0 %5266
        %5268 = vrot.lane.b32.xlu0 %v560, 40
        %v5269 = vpop.permute.xlu0 %5268
        %5270 = vrot.lane.b32.xlu0 %v565, 40
        %v5271 = vpop.permute.xlu0 %5270
        %v5277 = vsel %vm414, %v5068, 0
        %v5280 = vsel %vm414, %v5070, 0
        %v5283 = vsel %vm414, %v5072, 0
        %v5286 = vsel %vm414, %v5074, 0
        %5288 = vmatprep.subr.mxu0 0.0
        %5289 = vmatpush1.msra.mxu0 %v5265
        %5290 = vmatprep.subr.mxu0 0.0
        %5291 = vmatpush1.msra.mxu0 %v5267
        %5292 = vmatprep.subr.mxu0 0.0
        %5293 = vmatpush1.msra.mxu0 %v5269
        %5294 = vmatprep.subr.mxu0 0.0
        %5295 = vmatpush1.msra.mxu0 %v5271
        %5296 = vmatprep.subr.mxu0 0.0
        %5297 = vmatpush1.msra.mxu0 0.0
        %5298 = vmatprep.subr.mxu0 0.0
        %5299 = vmatpush1.msra.mxu0 0.0
        %5300 = vmatprep.subr.mxu0 0.0
        %5301 = vmatpush1.msra.mxu0 0.0
        %5302 = vmatprep.subr.mxu0 0.0
        %5303 = vmatpush1.msra.mxu0 0.0
        %5304 = vmatprep.subr.mxu0 0.0
        %5305 = vmatpush1.msra.mxu0 0.0
        %5306 = vmatprep.subr.mxu0 0.0
        %5307 = vmatpush1.msra.mxu0 0.0
        %5308 = vmatprep.subr.mxu0 0.0
        %5309 = vmatpush1.msra.mxu0 0.0
        %5310 = vmatprep.subr.mxu0 0.0
        %5311 = vmatpush1.msra.mxu0 0.0
        %5312 = vmatprep.subr.mxu0 0.0
        %5313 = vmatpush1.msra.mxu0 0.0
        %5314 = vmatprep.subr.mxu0 0.0
        %5315 = vmatpush1.msra.mxu0 0.0
        %5316 = vmatprep.subr.mxu0 0.0
        %5317 = vmatpush1.msra.mxu0 0.0
        %5318 = vmatprep.subr.mxu0 0.0
        %5319 = vmatpush1.msra.mxu0 0.0
        %5320 = vmatprep.subr.mxu0 0.0
        %5321 = vmatpush1.msra.mxu0 0.0
        %5322 = vmatprep.subr.mxu0 0.0
        %5323 = vmatpush1.msra.mxu0 0.0
        %5324 = vmatprep.subr.mxu0 0.0
        %5325 = vmatpush1.msra.mxu0 0.0
        %5326 = vmatprep.subr.mxu0 0.0
        %5327 = vmatpush1.msra.mxu0 0.0
        %5328 = vmatprep.subr.mxu0 0.0
        %5329 = vmatpush1.msra.mxu0 0.0
        %5330 = vmatprep.subr.mxu0 0.0
        %5331 = vmatpush1.msra.mxu0 0.0
        %5332 = vmatprep.subr.mxu0 0.0
        %5333 = vmatpush1.msra.mxu0 0.0
        %5334 = vmatprep.subr.mxu0 0.0
        %5335 = vmatpush1.msra.mxu0 0.0
        %5336 = vmatprep.subr.mxu0 0.0
        %5337 = vmatpush1.msra.mxu0 0.0
        %5338 = vmatprep.subr.mxu0 0.0
        %5339 = vmatpush1.msra.mxu0 0.0
        %5340 = vmatprep.subr.mxu0 0.0
        %5341 = vmatpush1.msra.mxu0 0.0
        %5342 = vmatprep.subr.mxu0 0.0
        %5343 = vmatpush1.msra.mxu0 0.0
        %5344 = vmatprep.subr.mxu0 0.0
        %5345 = vmatpush1.msra.mxu0 0.0
        %5346 = vmatprep.subr.mxu0 0.0
        %5347 = vmatpush1.msra.mxu0 0.0
        %5348 = vmatprep.subr.mxu0 0.0
        %5349 = vmatpush1.msra.mxu0 0.0
        %5350 = vmatprep.subr.mxu0 0.0
        %5351 = vmatpush1.msra.mxu0 0.0
        %5352 = vmatprep.mubr.f32.mxu0 0.0
        %5353 = vmatmul.mubr.f32.gmra.mrb[0].mxu0 %v5277
        %v5354 = vpop.f32.mrb[0].mxu0
        %v5355 = vadd.f32 0.0, %v5354
        %v5356 = vpop.f32.mrb[0].mxu0
        %5357 = vmatprep.mubr.f32.mxu0 0.0
        %5358 = vmatmul.mubr.f32.gmra.mrb[0].mxu0 %v5280
        %v5359 = vpop.f32.mrb[0].mxu0
        %v5360 = vadd.f32 0.0, %v5359
        %v5361 = vpop.f32.mrb[0].mxu0
        %5362 = vmatprep.mubr.f32.mxu0 0.0
        %5363 = vmatmul.mubr.f32.gmra.mrb[0].mxu0 %v5283
        %v5364 = vpop.f32.mrb[0].mxu0
        %v5365 = vadd.f32 0.0, %v5364
        %v5366 = vpop.f32.mrb[0].mxu0
        %5367 = vmatprep.mubr.f32.mxu0 0.0
        %5368 = vmatmul.mubr.f32.gmra.mrb[0].mxu0 %v5286
        %v5369 = vpop.f32.mrb[0].mxu0
        %v5370 = vadd.f32 0.0, %v5369
        %v5371 = vpop.f32.mrb[0].mxu0
        %5372 = vdwg.mxu0
        %5373 = vrot.lane.b32.xlu0 %v570, 40
        %v5374 = vpop.permute.xlu0 %5373
        %5375 = vrot.lane.b32.xlu0 %v575, 40
        %v5376 = vpop.permute.xlu0 %5375
        %5377 = vrot.lane.b32.xlu0 %v580, 40
        %v5378 = vpop.permute.xlu0 %5377
        %5379 = vrot.lane.b32.xlu0 %v585, 40
        %v5380 = vpop.permute.xlu0 %5379
        %v5386 = vsel %vm414, %v5076, 0
        %v5389 = vsel %vm414, %v5078, 0
        %v5392 = vsel %vm414, %v5080, 0
        %v5395 = vsel %vm414, %v5082, 0
        %5397 = vmatprep.subr.mxu0 0.0
        %5398 = vmatpush1.msra.mxu0 %v5374
        %5399 = vmatprep.subr.mxu0 0.0
        %5400 = vmatpush1.msra.mxu0 %v5376
        %5401 = vmatprep.subr.mxu0 0.0
        %5402 = vmatpush1.msra.mxu0 %v5378
        %5403 = vmatprep.subr.mxu0 0.0
        %5404 = vmatpush1.msra.mxu0 %v5380
        %5405 = vmatprep.subr.mxu0 0.0
        %5406 = vmatpush1.msra.mxu0 0.0
        %5407 = vmatprep.subr.mxu0 0.0
        %5408 = vmatpush1.msra.mxu0 0.0
        %5409 = vmatprep.subr.mxu0 0.0
        %5410 = vmatpush1.msra.mxu0 0.0
        %5411 = vmatprep.subr.mxu0 0.0
        %5412 = vmatpush1.msra.mxu0 0.0
        %5413 = vmatprep.subr.mxu0 0.0
        %5414 = vmatpush1.msra.mxu0 0.0
        %5415 = vmatprep.subr.mxu0 0.0
        %5416 = vmatpush1.msra.mxu0 0.0
        %5417 = vmatprep.subr.mxu0 0.0
        %5418 = vmatpush1.msra.mxu0 0.0
        %5419 = vmatprep.subr.mxu0 0.0
        %5420 = vmatpush1.msra.mxu0 0.0
        %5421 = vmatprep.subr.mxu0 0.0
        %5422 = vmatpush1.msra.mxu0 0.0
        %5423 = vmatprep.subr.mxu0 0.0
        %5424 = vmatpush1.msra.mxu0 0.0
        %5425 = vmatprep.subr.mxu0 0.0
        %5426 = vmatpush1.msra.mxu0 0.0
        %5427 = vmatprep.subr.mxu0 0.0
        %5428 = vmatpush1.msra.mxu0 0.0
        %5429 = vmatprep.subr.mxu0 0.0
        %5430 = vmatpush1.msra.mxu0 0.0
        %5431 = vmatprep.subr.mxu0 0.0
        %5432 = vmatpush1.msra.mxu0 0.0
        %5433 = vmatprep.subr.mxu0 0.0
        %5434 = vmatpush1.msra.mxu0 0.0
        %5435 = vmatprep.subr.mxu0 0.0
        %5436 = vmatpush1.msra.mxu0 0.0
        %5437 = vmatprep.subr.mxu0 0.0
        %5438 = vmatpush1.msra.mxu0 0.0
        %5439 = vmatprep.subr.mxu0 0.0
        %5440 = vmatpush1.msra.mxu0 0.0
        %5441 = vmatprep.subr.mxu0 0.0
        %5442 = vmatpush1.msra.mxu0 0.0
        %5443 = vmatprep.subr.mxu0 0.0
        %5444 = vmatpush1.msra.mxu0 0.0
        %5445 = vmatprep.subr.mxu0 0.0
        %5446 = vmatpush1.msra.mxu0 0.0
        %5447 = vmatprep.subr.mxu0 0.0
        %5448 = vmatpush1.msra.mxu0 0.0
        %5449 = vmatprep.subr.mxu0 0.0
        %5450 = vmatpush1.msra.mxu0 0.0
        %5451 = vmatprep.subr.mxu0 0.0
        %5452 = vmatpush1.msra.mxu0 0.0
        %5453 = vmatprep.subr.mxu0 0.0
        %5454 = vmatpush1.msra.mxu0 0.0
        %5455 = vmatprep.subr.mxu0 0.0
        %5456 = vmatpush1.msra.mxu0 0.0
        %5457 = vmatprep.subr.mxu0 0.0
        %5458 = vmatpush1.msra.mxu0 0.0
        %5459 = vmatprep.subr.mxu0 0.0
        %5460 = vmatpush1.msra.mxu0 0.0
        %5461 = vmatprep.mubr.f32.mxu0 0.0
        %5462 = vmatmul.mubr.f32.gmra.mrb[0].mxu0 %v5386
        %v5463 = vpop.f32.mrb[0].mxu0
        %v5464 = vadd.f32 0.0, %v5463
        %v5465 = vpop.f32.mrb[0].mxu0
        %5466 = vmatprep.mubr.f32.mxu0 0.0
        %5467 = vmatmul.mubr.f32.gmra.mrb[0].mxu0 %v5389
        %v5468 = vpop.f32.mrb[0].mxu0
        %v5469 = vadd.f32 0.0, %v5468
        %v5470 = vpop.f32.mrb[0].mxu0
        %5471 = vmatprep.mubr.f32.mxu0 0.0
        %5472 = vmatmul.mubr.f32.gmra.mrb[0].mxu0 %v5392
        %v5473 = vpop.f32.mrb[0].mxu0
        %v5474 = vadd.f32 0.0, %v5473
        %v5475 = vpop.f32.mrb[0].mxu0
        %5476 = vmatprep.mubr.f32.mxu0 0.0
        %5477 = vmatmul.mubr.f32.gmra.mrb[0].mxu0 %v5395
        %v5478 = vpop.f32.mrb[0].mxu0
        %v5479 = vadd.f32 0.0, %v5478
        %v5480 = vpop.f32.mrb[0].mxu0
        %5481 = vdwg.mxu0
        %5482 = vrot.lane.b32.xlu0 %v590, 40
        %v5483 = vpop.permute.xlu0 %5482
        %5484 = vrot.lane.b32.xlu0 %v595, 40
        %v5485 = vpop.permute.xlu0 %5484
        %5486 = vrot.lane.b32.xlu0 %v600, 40
        %v5487 = vpop.permute.xlu0 %5486
        %5488 = vrot.lane.b32.xlu0 %v605, 40
        %v5489 = vpop.permute.xlu0 %5488
        %v5495 = vsel %vm414, %v5084, 0
        %v5498 = vsel %vm414, %v5086, 0
        %v5501 = vsel %vm414, %v5088, 0
        %v5504 = vsel %vm414, %v5090, 0
        %5506 = vmatprep.subr.mxu0 0.0
        %5507 = vmatpush1.msra.mxu0 %v5483
        %5508 = vmatprep.subr.mxu0 0.0
        %5509 = vmatpush1.msra.mxu0 %v5485
        %5510 = vmatprep.subr.mxu0 0.0
        %5511 = vmatpush1.msra.mxu0 %v5487
        %5512 = vmatprep.subr.mxu0 0.0
        %5513 = vmatpush1.msra.mxu0 %v5489
        %5514 = vmatprep.subr.mxu0 0.0
        %5515 = vmatpush1.msra.mxu0 0.0
        %5516 = vmatprep.subr.mxu0 0.0
        %5517 = vmatpush1.msra.mxu0 0.0
        %5518 = vmatprep.subr.mxu0 0.0
        %5519 = vmatpush1.msra.mxu0 0.0
        %5520 = vmatprep.subr.mxu0 0.0
        %5521 = vmatpush1.msra.mxu0 0.0
        %5522 = vmatprep.subr.mxu0 0.0
        %5523 = vmatpush1.msra.mxu0 0.0
        %5524 = vmatprep.subr.mxu0 0.0
        %5525 = vmatpush1.msra.mxu0 0.0
        %5526 = vmatprep.subr.mxu0 0.0
        %5527 = vmatpush1.msra.mxu0 0.0
        %5528 = vmatprep.subr.mxu0 0.0
        %5529 = vmatpush1.msra.mxu0 0.0
        %5530 = vmatprep.subr.mxu0 0.0
        %5531 = vmatpush1.msra.mxu0 0.0
        %5532 = vmatprep.subr.mxu0 0.0
        %5533 = vmatpush1.msra.mxu0 0.0
        %5534 = vmatprep.subr.mxu0 0.0
        %5535 = vmatpush1.msra.mxu0 0.0
        %5536 = vmatprep.subr.mxu0 0.0
        %5537 = vmatpush1.msra.mxu0 0.0
        %5538 = vmatprep.subr.mxu0 0.0
        %5539 = vmatpush1.msra.mxu0 0.0
        %5540 = vmatprep.subr.mxu0 0.0
        %5541 = vmatpush1.msra.mxu0 0.0
        %5542 = vmatprep.subr.mxu0 0.0
        %5543 = vmatpush1.msra.mxu0 0.0
        %5544 = vmatprep.subr.mxu0 0.0
        %5545 = vmatpush1.msra.mxu0 0.0
        %5546 = vmatprep.subr.mxu0 0.0
        %5547 = vmatpush1.msra.mxu0 0.0
        %5548 = vmatprep.subr.mxu0 0.0
        %5549 = vmatpush1.msra.mxu0 0.0
        %5550 = vmatprep.subr.mxu0 0.0
        %5551 = vmatpush1.msra.mxu0 0.0
        %5552 = vmatprep.subr.mxu0 0.0
        %5553 = vmatpush1.msra.mxu0 0.0
        %5554 = vmatprep.subr.mxu0 0.0
        %5555 = vmatpush1.msra.mxu0 0.0
        %5556 = vmatprep.subr.mxu0 0.0
        %5557 = vmatpush1.msra.mxu0 0.0
        %5558 = vmatprep.subr.mxu0 0.0
        %5559 = vmatpush1.msra.mxu0 0.0
        %5560 = vmatprep.subr.mxu0 0.0
        %5561 = vmatpush1.msra.mxu0 0.0
        %5562 = vmatprep.subr.mxu0 0.0
        %5563 = vmatpush1.msra.mxu0 0.0
        %5564 = vmatprep.subr.mxu0 0.0
        %5565 = vmatpush1.msra.mxu0 0.0
        %5566 = vmatprep.subr.mxu0 0.0
        %5567 = vmatpush1.msra.mxu0 0.0
        %5568 = vmatprep.subr.mxu0 0.0
        %5569 = vmatpush1.msra.mxu0 0.0
        %5570 = vmatprep.mubr.f32.mxu0 0.0
        %5571 = vmatmul.mubr.f32.gmra.mrb[0].mxu0 %v5495
        %v5572 = vpop.f32.mrb[0].mxu0
        %v5573 = vadd.f32 0.0, %v5572
        %v5574 = vpop.f32.mrb[0].mxu0
        %5575 = vmatprep.mubr.f32.mxu0 0.0
        %5576 = vmatmul.mubr.f32.gmra.mrb[0].mxu0 %v5498
        %v5577 = vpop.f32.mrb[0].mxu0
        %v5578 = vadd.f32 0.0, %v5577
        %v5579 = vpop.f32.mrb[0].mxu0
        %5580 = vmatprep.mubr.f32.mxu0 0.0
        %5581 = vmatmul.mubr.f32.gmra.mrb[0].mxu0 %v5501
        %v5582 = vpop.f32.mrb[0].mxu0
        %v5583 = vadd.f32 0.0, %v5582
        %v5584 = vpop.f32.mrb[0].mxu0
        %5585 = vmatprep.mubr.f32.mxu0 0.0
        %5586 = vmatmul.mubr.f32.gmra.mrb[0].mxu0 %v5504
        %v5587 = vpop.f32.mrb[0].mxu0
        %v5588 = vadd.f32 0.0, %v5587
        %v5589 = vpop.f32.mrb[0].mxu0
        %5590 = vdwg.mxu0
        %v5591 = vmul.f32 %v5246, %v5139
        %v5592 = vmul.f32 %v5251, %v5140
        %v5593 = vmul.f32 %v5256, %v5141
        %v5594 = vmul.f32 %v5261, %v5142
        %v5595 = vmul.f32 %v5355, %v5143
        %v5596 = vmul.f32 %v5360, %v5144
        %v5597 = vmul.f32 %v5365, %v5145
        %v5598 = vmul.f32 %v5370, %v5146
        %v5599 = vmul.f32 %v5464, %v5147
        %v5600 = vmul.f32 %v5469, %v5148
        %v5601 = vmul.f32 %v5474, %v5149
        %v5602 = vmul.f32 %v5479, %v5150
        %v5603 = vmul.f32 %v5573, %v5151
        %v5604 = vmul.f32 %v5578, %v5152
        %v5605 = vmul.f32 %v5583, %v5153
        %v5606 = vmul.f32 %v5588, %v5154
        %v5607 = vld [vmem:[#allocation10 + $0x18] sm:$0xff]
        %v5609 = vsel %vm652, %v5591, 0
        %v5612 = vsel %vm652, %v5592, 0
        %v5615 = vsel %vm652, %v5593, 0
        %v5618 = vsel %vm652, %v5594, 0
        %v5621 = vsel %vm652, %v5595, 0
        %v5624 = vsel %vm652, %v5596, 0
        %v5627 = vsel %vm652, %v5597, 0
        %v5630 = vsel %vm652, %v5598, 0
        %v5633 = vsel %vm652, %v5599, 0
        %v5636 = vsel %vm652, %v5600, 0
        %v5639 = vsel %vm652, %v5601, 0
        %v5642 = vsel %vm652, %v5602, 0
        %v5645 = vsel %vm652, %v5603, 0
        %v5648 = vsel %vm652, %v5604, 0
        %v5651 = vsel %vm652, %v5605, 0
        %v5654 = vsel %vm652, %v5606, 0
        %5656 = vmatprep.subr.mxu0 0.0
        %5657 = vmatpush1.msra.mxu0 %v5607
        %5658 = vmatprep.subr.mxu0 0.0
        %5659 = vmatpush1.msra.mxu0 0.0
        %5660 = vmatprep.subr.mxu0 0.0
        %5661 = vmatpush1.msra.mxu0 0.0
        %5662 = vmatprep.subr.mxu0 0.0
        %5663 = vmatpush1.msra.mxu0 0.0
        %5664 = vmatprep.subr.mxu0 0.0
        %5665 = vmatpush1.msra.mxu0 0.0
        %5666 = vmatprep.subr.mxu0 0.0
        %5667 = vmatpush1.msra.mxu0 0.0
        %5668 = vmatprep.subr.mxu0 0.0
        %5669 = vmatpush1.msra.mxu0 0.0
        %5670 = vmatprep.subr.mxu0 0.0
        %5671 = vmatpush1.msra.mxu0 0.0
        %5672 = vmatprep.subr.mxu0 0.0
        %5673 = vmatpush1.msra.mxu0 0.0
        %5674 = vmatprep.subr.mxu0 0.0
        %5675 = vmatpush1.msra.mxu0 0.0
        %5676 = vmatprep.subr.mxu0 0.0
        %5677 = vmatpush1.msra.mxu0 0.0
        %5678 = vmatprep.subr.mxu0 0.0
        %5679 = vmatpush1.msra.mxu0 0.0
        %5680 = vmatprep.subr.mxu0 0.0
        %5681 = vmatpush1.msra.mxu0 0.0
        %5682 = vmatprep.subr.mxu0 0.0
        %5683 = vmatpush1.msra.mxu0 0.0
        %5684 = vmatprep.subr.mxu0 0.0
        %5685 = vmatpush1.msra.mxu0 0.0
        %5686 = vmatprep.subr.mxu0 0.0
        %5687 = vmatpush1.msra.mxu0 0.0
        %5688 = vmatprep.subr.mxu0 0.0
        %5689 = vmatpush1.msra.mxu0 0.0
        %5690 = vmatprep.subr.mxu0 0.0
        %5691 = vmatpush1.msra.mxu0 0.0
        %5692 = vmatprep.subr.mxu0 0.0
        %5693 = vmatpush1.msra.mxu0 0.0
        %5694 = vmatprep.subr.mxu0 0.0
        %5695 = vmatpush1.msra.mxu0 0.0
        %5696 = vmatprep.subr.mxu0 0.0
        %5697 = vmatpush1.msra.mxu0 0.0
        %5698 = vmatprep.subr.mxu0 0.0
        %5699 = vmatpush1.msra.mxu0 0.0
        %5700 = vmatprep.subr.mxu0 0.0
        %5701 = vmatpush1.msra.mxu0 0.0
        %5702 = vmatprep.subr.mxu0 0.0
        %5703 = vmatpush1.msra.mxu0 0.0
        %5704 = vmatprep.subr.mxu0 0.0
        %5705 = vmatpush1.msra.mxu0 0.0
        %5706 = vmatprep.subr.mxu0 0.0
        %5707 = vmatpush1.msra.mxu0 0.0
        %5708 = vmatprep.subr.mxu0 0.0
        %5709 = vmatpush1.msra.mxu0 0.0
        %5710 = vmatprep.subr.mxu0 0.0
        %5711 = vmatpush1.msra.mxu0 0.0
        %5712 = vmatprep.subr.mxu0 0.0
        %5713 = vmatpush1.msra.mxu0 0.0
        %5714 = vmatprep.subr.mxu0 0.0
        %5715 = vmatpush1.msra.mxu0 0.0
        %5716 = vmatprep.subr.mxu0 0.0
        %5717 = vmatpush1.msra.mxu0 0.0
        %5718 = vmatprep.subr.mxu0 0.0
        %5719 = vmatpush1.msra.mxu0 0.0
        %5720 = vmatprep.mubr.f32.mxu0 0.0
        %5721 = vmatmul.mubr.f32.gmra.mrb[0].mxu0 %v5609
        %v5722 = vpop.f32.mrb[0].mxu0
        %v5723 = vadd.f32 0.0, %v5722
        %v5724 = vpop.f32.mrb[0].mxu0
        %5725 = vmatprep.mubr.f32.mxu0 0.0
        %5726 = vmatmul.mubr.f32.gmra.mrb[0].mxu0 %v5612
        %v5727 = vpop.f32.mrb[0].mxu0
        %v5728 = vadd.f32 0.0, %v5727
        %v5729 = vpop.f32.mrb[0].mxu0
        %5730 = vmatprep.mubr.f32.mxu0 0.0
        %5731 = vmatmul.mubr.f32.gmra.mrb[0].mxu0 %v5615
        %v5732 = vpop.f32.mrb[0].mxu0
        %v5733 = vadd.f32 0.0, %v5732
        %v5734 = vpop.f32.mrb[0].mxu0
        %5735 = vmatprep.mubr.f32.mxu0 0.0
        %5736 = vmatmul.mubr.f32.gmra.mrb[0].mxu0 %v5618
        %v5737 = vpop.f32.mrb[0].mxu0
        %v5738 = vadd.f32 0.0, %v5737
        %v5739 = vpop.f32.mrb[0].mxu0
        %5740 = vmatprep.mubr.f32.mxu0 0.0
        %5741 = vmatmul.mubr.f32.gmra.mrb[0].mxu0 %v5621
        %v5742 = vpop.f32.mrb[0].mxu0
        %v5743 = vadd.f32 0.0, %v5742
        %v5744 = vpop.f32.mrb[0].mxu0
        %5745 = vmatprep.mubr.f32.mxu0 0.0
        %5746 = vmatmul.mubr.f32.gmra.mrb[0].mxu0 %v5624
        %v5747 = vpop.f32.mrb[0].mxu0
        %v5748 = vadd.f32 0.0, %v5747
        %v5749 = vpop.f32.mrb[0].mxu0
        %5750 = vmatprep.mubr.f32.mxu0 0.0
        %5751 = vmatmul.mubr.f32.gmra.mrb[0].mxu0 %v5627
        %v5752 = vpop.f32.mrb[0].mxu0
        %v5753 = vadd.f32 0.0, %v5752
        %v5754 = vpop.f32.mrb[0].mxu0
        %5755 = vmatprep.mubr.f32.mxu0 0.0
        %5756 = vmatmul.mubr.f32.gmra.mrb[0].mxu0 %v5630
        %v5757 = vpop.f32.mrb[0].mxu0
        %v5758 = vadd.f32 0.0, %v5757
        %v5759 = vpop.f32.mrb[0].mxu0
        %5760 = vmatprep.mubr.f32.mxu0 0.0
        %5761 = vmatmul.mubr.f32.gmra.mrb[0].mxu0 %v5633
        %v5762 = vpop.f32.mrb[0].mxu0
        %v5763 = vadd.f32 0.0, %v5762
        %v5764 = vpop.f32.mrb[0].mxu0
        %5765 = vmatprep.mubr.f32.mxu0 0.0
        %5766 = vmatmul.mubr.f32.gmra.mrb[0].mxu0 %v5636
        %v5767 = vpop.f32.mrb[0].mxu0
        %v5768 = vadd.f32 0.0, %v5767
        %v5769 = vpop.f32.mrb[0].mxu0
        %5770 = vmatprep.mubr.f32.mxu0 0.0
        %5771 = vmatmul.mubr.f32.gmra.mrb[0].mxu0 %v5639
        %v5772 = vpop.f32.mrb[0].mxu0
        %v5773 = vadd.f32 0.0, %v5772
        %v5774 = vpop.f32.mrb[0].mxu0
        %5775 = vmatprep.mubr.f32.mxu0 0.0
        %5776 = vmatmul.mubr.f32.gmra.mrb[0].mxu0 %v5642
        %v5777 = vpop.f32.mrb[0].mxu0
        %v5778 = vadd.f32 0.0, %v5777
        %v5779 = vpop.f32.mrb[0].mxu0
        %5780 = vmatprep.mubr.f32.mxu0 0.0
        %5781 = vmatmul.mubr.f32.gmra.mrb[0].mxu0 %v5645
        %v5782 = vpop.f32.mrb[0].mxu0
        %v5783 = vadd.f32 0.0, %v5782
        %v5784 = vpop.f32.mrb[0].mxu0
        %5785 = vmatprep.mubr.f32.mxu0 0.0
        %5786 = vmatmul.mubr.f32.gmra.mrb[0].mxu0 %v5648
        %v5787 = vpop.f32.mrb[0].mxu0
        %v5788 = vadd.f32 0.0, %v5787
        %v5789 = vpop.f32.mrb[0].mxu0
        %5790 = vmatprep.mubr.f32.mxu0 0.0
        %5791 = vmatmul.mubr.f32.gmra.mrb[0].mxu0 %v5651
        %v5792 = vpop.f32.mrb[0].mxu0
        %v5793 = vadd.f32 0.0, %v5792
        %v5794 = vpop.f32.mrb[0].mxu0
        %5795 = vmatprep.mubr.f32.mxu0 0.0
        %5796 = vmatmul.mubr.f32.gmra.mrb[0].mxu0 %v5654
        %v5797 = vpop.f32.mrb[0].mxu0
        %v5798 = vadd.f32 0.0, %v5797
        %v5799 = vpop.f32.mrb[0].mxu0
        %5800 = vdwg.mxu0
        %v5801 = vadd.f32 %v4495, %v5723
        %v5802 = vadd.f32 %v4496, %v5728
        %v5803 = vadd.f32 %v4497, %v5733
        %v5804 = vadd.f32 %v4498, %v5738
        %v5805 = vadd.f32 %v4499, %v5743
        %v5806 = vadd.f32 %v4500, %v5748
        %v5807 = vadd.f32 %v4501, %v5753
        %v5808 = vadd.f32 %v4502, %v5758
        %v5809 = vadd.f32 %v4503, %v5763
        %v5810 = vadd.f32 %v4504, %v5768
        %v5811 = vadd.f32 %v4505, %v5773
        %v5812 = vadd.f32 %v4506, %v5778
        %v5813 = vadd.f32 %v4507, %v5783
        %v5814 = vadd.f32 %v4508, %v5788
        %v5815 = vadd.f32 %v4509, %v5793
        %v5816 = vadd.f32 %v4510, %v5798
        %v5817 = vld [vmem:[%s6] sm:$0x1]
        %v5819 = vlaneseq
        %v5820 = vshrl.u32 %v5819, 7
        %v5821 = vsub.s32 0, %v5820
        %v5822 = vrot.slane %v5817, %v5821
        %v5824 = vadd.f32 %v5801, %v5822
        %v5825 = vadd.f32 %v5802, %v5822
        %v5826 = vadd.f32 %v5803, %v5822
        %v5827 = vadd.f32 %v5804, %v5822
        %v5828 = vadd.f32 %v5805, %v5822
        %v5829 = vadd.f32 %v5806, %v5822
        %v5830 = vadd.f32 %v5807, %v5822
        %v5831 = vadd.f32 %v5808, %v5822
        %v5832 = vadd.f32 %v5809, %v5822
        %v5833 = vadd.f32 %v5810, %v5822
        %v5834 = vadd.f32 %v5811, %v5822
        %v5835 = vadd.f32 %v5812, %v5822
        %v5836 = vadd.f32 %v5813, %v5822
        %v5837 = vadd.f32 %v5814, %v5822
        %v5838 = vadd.f32 %v5815, %v5822
        %v5839 = vadd.f32 %v5816, %v5822
        %5840 = vst.msk [vmem:[%s381] sm:$0xff] %vm414, %v5824
        %5841 = vst.msk [vmem:[%s381 + $0x8] sm:$0xff] %vm414, %v5825
        %5842 = vst.msk [vmem:[%s381 + $0x10] sm:$0xff] %vm414, %v5826
        %5843 = vst.msk [vmem:[%s381 + $0x18] sm:$0xff] %vm414, %v5827
        %5844 = vst.msk [vmem:[%s381 + $0x20] sm:$0xff] %vm414, %v5828
        %5845 = vst.msk [vmem:[%s381 + $0x28] sm:$0xff] %vm414, %v5829
        %5846 = vst.msk [vmem:[%s381 + $0x30] sm:$0xff] %vm414, %v5830
        %5847 = vst.msk [vmem:[%s381 + $0x38] sm:$0xff] %vm414, %v5831
        %5848 = vst.msk [vmem:[%s381 + $0x40] sm:$0xff] %vm414, %v5832
        %5849 = vst.msk [vmem:[%s381 + $0x48] sm:$0xff] %vm414, %v5833
        %5850 = vst.msk [vmem:[%s381 + $0x50] sm:$0xff] %vm414, %v5834
        %5851 = vst.msk [vmem:[%s381 + $0x58] sm:$0xff] %vm414, %v5835
        %5852 = vst.msk [vmem:[%s381 + $0x60] sm:$0xff] %vm414, %v5836
        %5853 = vst.msk [vmem:[%s381 + $0x68] sm:$0xff] %vm414, %v5837
        %5854 = vst.msk [vmem:[%s381 + $0x70] sm:$0xff] %vm414, %v5838
        %5855 = vst.msk [vmem:[%s381 + $0x78] sm:$0xff] %vm414, %v5839
        %s5856 = sand.u32 %s207, 1
        %s5857 = scalar_lea.sflag [#allocation4], %s5856
        %s5858 = sand.u32 %s207, 1
        %s5859 = smul.addr %s5858, 128
        %s5860 = scalar_lea.vmem [#allocation11], %s5859
        // Predicated region
        $region69: #{tpu_custom_call.1} parent=47 // pred_check
          %p5861 = pneg %p217
        $region70: #{tpu_custom_call.1} parent=47 // pred_check_branch
          %5863 = sbr.rel (%p5861) target = $region72
        $region71: #{tpu_custom_call.1} parent=47 // pred_region
          %s5864 = sadd.s32 %s30, %s31
          %s5865 = smul.u32 4, %s5864
          %s5867 = ssub.s32 2048, 2048
          %5868 = vsyncadd %s5857, %s5867
          %s5869 = smul.addr %s5865, 4
          %s5870 = smul.addr %s5869, 128
          %s5871 = scalar_lea.hbm %s7, %s5870
          %s5872 = sshll.u32 %s5860, 4
          %s5873 = int_to_ptr.vmem [resolvable:$true] %s5872
          %5878 = dma.vmem_to_hbm [thread:$0]  %s5873, 2048, %s5871, %s5857, 128, 128, 8
        $region72: #{tpu_custom_call.1} parent=47 // pred_fallthru
          _
      $region48: #{tpu_custom_call.1} parent=5 // pred_fallthru
        _
      %p5879 = scmp.le.s32.totalorder 2, %s21
      // Predicated region
      $region73: #{tpu_custom_call.1} parent=5 // pred_check
        %p5880 = pneg %p5879
      $region74: #{tpu_custom_call.1} parent=5 // pred_check_branch
        %5882 = sbr.rel (%p5880) target = $region76
      $region75: #{tpu_custom_call.1} parent=5 // pred_region
        %s5883 = ssub.s32 %s21, 2
        // Predicated region
        $region77: #{tpu_custom_call.1} parent=75 // pred_check
          %p5884 = pneg %p223
        $region78: #{tpu_custom_call.1} parent=75 // pred_check_branch
          %5886 = sbr.rel (%p5884) target = $region80
        $region79: #{tpu_custom_call.1} parent=75 // pred_region
          %s5887 = sand.u32 %s208, 1
          %s5888 = scalar_lea.sflag [#allocation4], %s5887
          %s5889 = sand.u32 %s208, 1
          %s5890 = smul.addr %s5889, 128
          %s5891 = scalar_lea.vmem [#allocation11], %s5890
          %5892 = dma.done %s5888, 2048
        $region80: #{tpu_custom_call.1} parent=75 // pred_fallthru
          _
      $region76: #{tpu_custom_call.1} parent=5 // pred_fallthru
        _
    $region6: #{tpu_custom_call.1} parent=1 // loop_footer
      %s25 = sadd.s32 1, %s21
    $region7: #{tpu_custom_call.1} parent=1 // loop_footer_branch
      %20 = sbr.rel target = $region3
    $region8: #{tpu_custom_call.1} parent=1 // loop_exit
      _
    %5893 = vsyncpa [#allocation3], 1
    %s5894 = scalar_lea.sflag [#allocation3], 1
    %5895 = vsyncpa %s5894, 1
    %5896 = vsyncpa [#allocation6], 1
    %5897 = vsyncpa [#allocation9], 1
    %5898 = vsyncpa [#allocation4], 1
    %s5899 = scalar_lea.sflag [#allocation4], 1
    %5900 = vsyncpa %s5899, 1

</llo_original>
